<compile_context>
chip_gen: v6e
topology: v6e:2x2x1
jax: 0.10.0
libtpu: 0.0.40
codegen_flags: <defaults>
</compile_context>

<pallas_src>
import functools
import jax
import jax.numpy as jnp
from jax.experimental import pallas as pl
from jax.experimental.pallas import tpu as pltpu

EPS = 1e-5


# ----------------------------------------------------------------------------
# Pallas kernel: fused (transposed) matmul + bias + ReLU, lane-dense output
# ----------------------------------------------------------------------------
def _mm_bias_relu_kernel(w_ref, p_ref, b_ref, o_ref):
    # bf16 x bf16 -> f32 accumulate on the MXU; epilogue stays in f32.
    acc = jnp.dot(w_ref[...], p_ref[...], preferred_element_type=jnp.float32)
    o_ref[...] = jnp.maximum(acc + b_ref[...], 0.0)


def _choose_tm(m):
    # Largest tile <= 512 that still leaves >= 2 grid blocks (v7x: 2 TCs).
    for tm in (512, 256, 128):
        if m >= 2 * tm:
            return tm
    return 128


def _round_up(x, mult):
    return (x + mult - 1) // mult * mult


def matmul_bias_relu_T(w2, patches_t, bias, tm):
    """out[c, m] = relu(sum_k w2[c, k] * patches_t[k, m] + bias[c, 0])."""
    cout, kpad = w2.shape
    _, mpad = patches_t.shape
    grid = (mpad // tm,)
    return pl.pallas_call(
        _mm_bias_relu_kernel,
        out_shape=jax.ShapeDtypeStruct((cout, mpad), jnp.float32),
        grid=grid,
        in_specs=[
            pl.BlockSpec((cout, kpad), lambda i: (0, 0)),   # weights: resident
            pl.BlockSpec((kpad, tm), lambda i: (0, i)),      # patches: lane=M
            pl.BlockSpec((cout, 1), lambda i: (0, 0)),       # bias
        ],
        out_specs=pl.BlockSpec((cout, tm), lambda i: (0, i)),  # lane-dense store
        compiler_params=pltpu.CompilerParams(
            dimension_semantics=("parallel",),
            vmem_limit_bytes=32 * 1024 * 1024,
        ),
    )(w2, patches_t, bias)


# ----------------------------------------------------------------------------
# Inference-mode BN folding (identical to RepVggUnit.switch_to_deploy)
# ----------------------------------------------------------------------------
def _fuse_bn(kernel, bn):
    gamma, beta, mean, var = bn
    t = gamma / jnp.sqrt(var + EPS)
    return kernel * t[:, None, None, None], beta - mean * t


def _reparam(p, cin, cout, stride):
    k3, b3 = _fuse_bn(p["conv3_w"], p["bn3"])
    k1, b1 = _fuse_bn(p["conv1_w"], p["bn1"])
    kernel = k3 + jnp.pad(k1, ((0, 0), (0, 0), (1, 1), (1, 1)))
    bias = b3 + b1
    if p.get("bn_id") is not None:
        # Identity-BN branch exists only when cin == cout and stride == 1.
        assert cin == cout and stride == 1
        kid = jnp.zeros((cout, cin, 3, 3), jnp.float32)
        kid = kid.at[jnp.arange(cout), jnp.arange(cin), 1, 1].set(1.0)
        kid, bid = _fuse_bn(kid, p["bn_id"])
        kernel = kernel + kid
        bias = bias + bid
    return kernel, bias


# ----------------------------------------------------------------------------
# RepVggUnit forward: relu(conv3x3_reparam(x, stride, pad=1) + bias)
# x is channels-first (Cin, N, H, W); returns (Cout, N, OH, OW)
# ----------------------------------------------------------------------------
def rep_vgg_unit(x_cf, p, stride):
    cin, n, h, w = x_cf.shape
    cout = p["conv3_w"].shape[0]
    kernel, bias = _reparam(p, cin, cout, stride)

    oh = (h - 1) // stride + 1
    ow = (w - 1) // stride + 1
    m = n * oh * ow

    # Transposed im2col in bf16: patches_T[(kh,kw,ci), n*oh*ow]
    xpad = jnp.pad(x_cf.astype(jnp.bfloat16), ((0, 0), (0, 0), (1, 1), (1, 1)))
    taps = []
    for kh in range(3):
        for kw in range(3):
            t = xpad[:, :, kh:kh + stride * oh:stride, kw:kw + stride * ow:stride]
            taps.append(t.reshape(cin, m))
    patches_t = jnp.concatenate(taps, axis=0)                     # (9*cin, m)

    k = 9 * cin
    kpad = _round_up(k, 16)            # bf16 sublane packing (16, 128)
    tm = _choose_tm(m)
    mpad = _round_up(m, tm)
    patches_t = jnp.pad(patches_t, ((0, kpad - k), (0, mpad - m)))

    # Weight in (cout, kh*kw*cin) order to match patches_T row order.
    w2 = jnp.transpose(kernel, (0, 2, 3, 1)).reshape(cout, k)
    w2 = jnp.pad(w2, ((0, 0), (0, kpad - k))).astype(jnp.bfloat16)
    bias2 = bias.reshape(cout, 1).astype(jnp.float32)

    out_t = matmul_bias_relu_T(w2, patches_t, bias2, tm)          # (cout, mpad)
    return out_t[:, :m].reshape(cout, n, oh, ow)


# ----------------------------------------------------------------------------
# Encoder forward
# ----------------------------------------------------------------------------
def encoder_forward(x_nchw, params):
    x_cf = jnp.transpose(x_nchw, (1, 0, 2, 3))        # (C, N, H, W)

    def run_stage(x, stage):
        for (p, stride) in stage:
            x = rep_vgg_unit(x, p, stride)
        return x

    x1 = run_stage(x_cf, params["ds1"])
    x2 = run_stage(x1, params["ds2"])
    x3 = run_stage(x2, params["ds3"])
    x4 = run_stage(x3, params["ds4"])

    to_nchw = lambda x: jnp.transpose(x, (1, 0, 2, 3))
    return to_nchw(x1), to_nchw(x2), to_nchw(x3), to_nchw(x4)


# ----------------------------------------------------------------------------
# Deterministic parameter construction
# ----------------------------------------------------------------------------
def _bn_params(key, c):
    k1, k2, k3, k4 = jax.random.split(key, 4)
    gamma = 1.0 + 0.1 * jax.random.normal(k1, (c,), jnp.float32)
    beta = 0.1 * jax.random.normal(k2, (c,), jnp.float32)
    mean = 0.1 * jax.random.normal(k3, (c,), jnp.float32)
    var = 0.5 + jax.random.uniform(k4, (c,), jnp.float32)
    return (gamma, beta, mean, var)


def _rep_vgg_params(key, cin, cout, stride):
    k1, k2, k3, k4, k5 = jax.random.split(key, 5)
    return {
        "conv3_w": 0.1 * jax.random.normal(k1, (cout, cin, 3, 3), jnp.float32),
        "bn3": _bn_params(k2, cout),
        "conv1_w": 0.1 * jax.random.normal(k3, (cout, cin, 1, 1), jnp.float32),
        "bn1": _bn_params(k4, cout),
        "bn_id": _bn_params(k5, cin) if (cin == cout and stride == 1) else None,
    }


def init_encoder_params(key, input_channel, filters):
    f0, f1, f2, f3 = filters
    specs = {
        "ds1": [(input_channel, f0, 1), (f0, f0, 1)],
        "ds2": [(f0, f1, 1), (f1, f1, 2), (f1, f1, 1)],
        "ds3": [(f1, f2, 1), (f2, f2, 2), (f2, f2, 1)],
        "ds4": [(f2, f3, 1), (f3, f3, 2), (f3, f3, 1)],
    }
    n_units = sum(len(v) for v in specs.values())
    keys = jax.random.split(key, n_units)
    params, ki = {}, 0
    for name, units in specs.items():
        stage = []
        for (cin, cout, s) in units:
            stage.append((_rep_vgg_params(keys[ki], cin, cout, s), s))
            ki += 1
        params[name] = stage
    return params


# ----------------------------------------------------------------------------
if __name__ == "__main__":
    filters = [4, 8, 16, 32]
    input_channel = 3
    N, H, W = 2, 32, 32

    key = jax.random.PRNGKey(0)
    kx, kp = jax.random.split(key)
    x = jax.random.normal(kx, (N, input_channel, H, W), jnp.float32)
    params = init_encoder_params(kp, input_channel, filters)

    fwd = jax.jit(functools.partial(encoder_forward, params=params))
    outs = fwd(x)
    for a in outs:
        jax.block_until_ready(a)
    x1, x2, x3, x4 = outs

    assert x1.shape == (N, filters[0], 32, 32), x1.shape
    assert x2.shape == (N, filters[1], 16, 16), x2.shape
    assert x3.shape == (N, filters[2], 8, 8), x3.shape
    assert x4.shape == (N, filters[3], 4, 4), x4.shape
    assert all(a.dtype == jnp.float32 for a in (x1, x2, x3, x4))
    print("KERNEL_OK")
</pallas_src>

<mosaic_0001>
module attributes {stable_mosaic.version = 11 : i64} {
  func.func @_mm_bias_relu_kernel(%arg0: i32, %arg1: memref<4x32xbf16, #tpu.memory_space<vmem>>, %arg2: memref<32x512xbf16, #tpu.memory_space<vmem>>, %arg3: memref<4x1xf32, #tpu.memory_space<vmem>>, %arg4: memref<4x512xf32, #tpu.memory_space<vmem>>) attributes {dimension_semantics = [#tpu.dimension_semantics<parallel>], iteration_bounds = array<i64: 4>, scalar_prefetch = 0 : i64, scratch_operands = 0 : i64, tpu.core_type = #tpu.core_type<tc>, window_params = [{pipeline_mode = #tpu.pipeline_mode<synchronous>, transform_indices = @transform_0, window_bounds = array<i64: 4, 32>}, {transform_indices = @transform_1, window_bounds = array<i64: 32, 512>}, {pipeline_mode = #tpu.pipeline_mode<synchronous>, transform_indices = @transform_2, window_bounds = array<i64: 4, 1>}, {transform_indices = @transform_3, window_bounds = array<i64: 4, 512>}]} {
    %c0 = arith.constant 0 : index
    %c0_0 = arith.constant 0 : index
    %0 = vector.load %arg1[%c0, %c0_0] : memref<4x32xbf16, #tpu.memory_space<vmem>>, vector<4x32xbf16>
    %c0_1 = arith.constant 0 : index
    %c0_2 = arith.constant 0 : index
    %1 = vector.load %arg2[%c0_1, %c0_2] : memref<32x512xbf16, #tpu.memory_space<vmem>>, vector<32x512xbf16>
    %cst = arith.constant dense<0.000000e+00> : vector<4x512xf32>
    %2 = tpu.matmul %0, %1, %cst {dimension_numbers = #tpu.dot_dimension_numbers<[1], [0], [0], [1], [0, 0, 1, 1], [], []>} : vector<4x32xbf16>, vector<32x512xbf16>, vector<4x512xf32> -> vector<4x512xf32>
    %c0_3 = arith.constant 0 : index
    %c0_4 = arith.constant 0 : index
    %3 = vector.load %arg3[%c0_3, %c0_4] : memref<4x1xf32, #tpu.memory_space<vmem>>, vector<4x1xf32>
    %4 = vector.broadcast %3 : vector<4x1xf32> to vector<4x512xf32>
    %5 = arith.addf %2, %4 : vector<4x512xf32>
    %cst_5 = arith.constant 0.000000e+00 : f32
    %6 = vector.broadcast %cst_5 : f32 to vector<4x512xf32>
    %7 = arith.maximumf %5, %6 : vector<4x512xf32>
    %c0_6 = arith.constant 0 : index
    %c0_7 = arith.constant 0 : index
    %8 = vector.load %arg4[%c0_6, %c0_7] : memref<4x512xf32, #tpu.memory_space<vmem>>, vector<4x512xf32>
    tpu.vector_store %arg4[%c0_6, %c0_7], %7 {strides = array<i32>} : memref<4x512xf32, #tpu.memory_space<vmem>>, vector<4x512xf32>,
    return
  }
  func.func @transform_0(%arg0: i32) -> (i32, i32) {
    %c0_i32 = arith.constant 0 : i32
    %c0_i32_0 = arith.constant 0 : i32
    %c0_i32_1 = arith.constant 0 : i32
    return %c0_i32, %c0_i32_0 : i32, i32
  }
  func.func @transform_1(%arg0: i32) -> (i32, i32) {
    %c0_i32 = arith.constant 0 : i32
    %c0_i32_0 = arith.constant 0 : i32
    return %c0_i32, %arg0 : i32, i32
  }
  func.func @transform_2(%arg0: i32) -> (i32, i32) {
    %c0_i32 = arith.constant 0 : i32
    %c0_i32_0 = arith.constant 0 : i32
    %c0_i32_1 = arith.constant 0 : i32
    return %c0_i32, %c0_i32_0 : i32, i32
  }
  func.func @transform_3(%arg0: i32) -> (i32, i32) {
    %c0_i32 = arith.constant 0 : i32
    %c0_i32_0 = arith.constant 0 : i32
    return %c0_i32, %arg0 : i32, i32
  }
}

module attributes {stable_mosaic.version = 11 : i64} {
  func.func @_mm_bias_relu_kernel(%arg0: i32, %arg1: memref<4x48xbf16, #tpu.memory_space<vmem>>, %arg2: memref<48x512xbf16, #tpu.memory_space<vmem>>, %arg3: memref<4x1xf32, #tpu.memory_space<vmem>>, %arg4: memref<4x512xf32, #tpu.memory_space<vmem>>) attributes {dimension_semantics = [#tpu.dimension_semantics<parallel>], iteration_bounds = array<i64: 4>, scalar_prefetch = 0 : i64, scratch_operands = 0 : i64, tpu.core_type = #tpu.core_type<tc>, window_params = [{pipeline_mode = #tpu.pipeline_mode<synchronous>, transform_indices = @transform_0, window_bounds = array<i64: 4, 48>}, {transform_indices = @transform_1, window_bounds = array<i64: 48, 512>}, {pipeline_mode = #tpu.pipeline_mode<synchronous>, transform_indices = @transform_2, window_bounds = array<i64: 4, 1>}, {transform_indices = @transform_3, window_bounds = array<i64: 4, 512>}]} {
    %c0 = arith.constant 0 : index
    %c0_0 = arith.constant 0 : index
    %0 = vector.load %arg1[%c0, %c0_0] : memref<4x48xbf16, #tpu.memory_space<vmem>>, vector<4x48xbf16>
    %c0_1 = arith.constant 0 : index
    %c0_2 = arith.constant 0 : index
    %1 = vector.load %arg2[%c0_1, %c0_2] : memref<48x512xbf16, #tpu.memory_space<vmem>>, vector<48x512xbf16>
    %cst = arith.constant dense<0.000000e+00> : vector<4x512xf32>
    %2 = tpu.matmul %0, %1, %cst {dimension_numbers = #tpu.dot_dimension_numbers<[1], [0], [0], [1], [0, 0, 1, 1], [], []>} : vector<4x48xbf16>, vector<48x512xbf16>, vector<4x512xf32> -> vector<4x512xf32>
    %c0_3 = arith.constant 0 : index
    %c0_4 = arith.constant 0 : index
    %3 = vector.load %arg3[%c0_3, %c0_4] : memref<4x1xf32, #tpu.memory_space<vmem>>, vector<4x1xf32>
    %4 = vector.broadcast %3 : vector<4x1xf32> to vector<4x512xf32>
    %5 = arith.addf %2, %4 : vector<4x512xf32>
    %cst_5 = arith.constant 0.000000e+00 : f32
    %6 = vector.broadcast %cst_5 : f32 to vector<4x512xf32>
    %7 = arith.maximumf %5, %6 : vector<4x512xf32>
    %c0_6 = arith.constant 0 : index
    %c0_7 = arith.constant 0 : index
    %8 = vector.load %arg4[%c0_6, %c0_7] : memref<4x512xf32, #tpu.memory_space<vmem>>, vector<4x512xf32>
    tpu.vector_store %arg4[%c0_6, %c0_7], %7 {strides = array<i32>} : memref<4x512xf32, #tpu.memory_space<vmem>>, vector<4x512xf32>,
    return
  }
  func.func @transform_0(%arg0: i32) -> (i32, i32) {
    %c0_i32 = arith.constant 0 : i32
    %c0_i32_0 = arith.constant 0 : i32
    %c0_i32_1 = arith.constant 0 : i32
    return %c0_i32, %c0_i32_0 : i32, i32
  }
  func.func @transform_1(%arg0: i32) -> (i32, i32) {
    %c0_i32 = arith.constant 0 : i32
    %c0_i32_0 = arith.constant 0 : i32
    return %c0_i32, %arg0 : i32, i32
  }
  func.func @transform_2(%arg0: i32) -> (i32, i32) {
    %c0_i32 = arith.constant 0 : i32
    %c0_i32_0 = arith.constant 0 : i32
    %c0_i32_1 = arith.constant 0 : i32
    return %c0_i32, %c0_i32_0 : i32, i32
  }
  func.func @transform_3(%arg0: i32) -> (i32, i32) {
    %c0_i32 = arith.constant 0 : i32
    %c0_i32_0 = arith.constant 0 : i32
    return %c0_i32, %arg0 : i32, i32
  }
}

module attributes {stable_mosaic.version = 11 : i64} {
  func.func @_mm_bias_relu_kernel(%arg0: i32, %arg1: memref<8x48xbf16, #tpu.memory_space<vmem>>, %arg2: memref<48x512xbf16, #tpu.memory_space<vmem>>, %arg3: memref<8x1xf32, #tpu.memory_space<vmem>>, %arg4: memref<8x512xf32, #tpu.memory_space<vmem>>) attributes {dimension_semantics = [#tpu.dimension_semantics<parallel>], iteration_bounds = array<i64: 4>, scalar_prefetch = 0 : i64, scratch_operands = 0 : i64, tpu.core_type = #tpu.core_type<tc>, window_params = [{pipeline_mode = #tpu.pipeline_mode<synchronous>, transform_indices = @transform_0, window_bounds = array<i64: 8, 48>}, {transform_indices = @transform_1, window_bounds = array<i64: 48, 512>}, {pipeline_mode = #tpu.pipeline_mode<synchronous>, transform_indices = @transform_2, window_bounds = array<i64: 8, 1>}, {transform_indices = @transform_3, window_bounds = array<i64: 8, 512>}]} {
    %c0 = arith.constant 0 : index
    %c0_0 = arith.constant 0 : index
    %0 = vector.load %arg1[%c0, %c0_0] : memref<8x48xbf16, #tpu.memory_space<vmem>>, vector<8x48xbf16>
    %c0_1 = arith.constant 0 : index
    %c0_2 = arith.constant 0 : index
    %1 = vector.load %arg2[%c0_1, %c0_2] : memref<48x512xbf16, #tpu.memory_space<vmem>>, vector<48x512xbf16>
    %cst = arith.constant dense<0.000000e+00> : vector<8x512xf32>
    %2 = tpu.matmul %0, %1, %cst {dimension_numbers = #tpu.dot_dimension_numbers<[1], [0], [0], [1], [0, 0, 1, 1], [], []>} : vector<8x48xbf16>, vector<48x512xbf16>, vector<8x512xf32> -> vector<8x512xf32>
    %c0_3 = arith.constant 0 : index
    %c0_4 = arith.constant 0 : index
    %3 = vector.load %arg3[%c0_3, %c0_4] : memref<8x1xf32, #tpu.memory_space<vmem>>, vector<8x1xf32>
    %4 = vector.broadcast %3 : vector<8x1xf32> to vector<8x512xf32>
    %5 = arith.addf %2, %4 : vector<8x512xf32>
    %cst_5 = arith.constant 0.000000e+00 : f32
    %6 = vector.broadcast %cst_5 : f32 to vector<8x512xf32>
    %7 = arith.maximumf %5, %6 : vector<8x512xf32>
    %c0_6 = arith.constant 0 : index
    %c0_7 = arith.constant 0 : index
    %8 = vector.load %arg4[%c0_6, %c0_7] : memref<8x512xf32, #tpu.memory_space<vmem>>, vector<8x512xf32>
    tpu.vector_store %arg4[%c0_6, %c0_7], %7 {strides = array<i32>} : memref<8x512xf32, #tpu.memory_space<vmem>>, vector<8x512xf32>,
    return
  }
  func.func @transform_0(%arg0: i32) -> (i32, i32) {
    %c0_i32 = arith.constant 0 : i32
    %c0_i32_0 = arith.constant 0 : i32
    %c0_i32_1 = arith.constant 0 : i32
    return %c0_i32, %c0_i32_0 : i32, i32
  }
  func.func @transform_1(%arg0: i32) -> (i32, i32) {
    %c0_i32 = arith.constant 0 : i32
    %c0_i32_0 = arith.constant 0 : i32
    return %c0_i32, %arg0 : i32, i32
  }
  func.func @transform_2(%arg0: i32) -> (i32, i32) {
    %c0_i32 = arith.constant 0 : i32
    %c0_i32_0 = arith.constant 0 : i32
    %c0_i32_1 = arith.constant 0 : i32
    return %c0_i32, %c0_i32_0 : i32, i32
  }
  func.func @transform_3(%arg0: i32) -> (i32, i32) {
    %c0_i32 = arith.constant 0 : i32
    %c0_i32_0 = arith.constant 0 : i32
    return %c0_i32, %arg0 : i32, i32
  }
}

module attributes {stable_mosaic.version = 11 : i64} {
  func.func @_mm_bias_relu_kernel(%arg0: i32, %arg1: memref<8x80xbf16, #tpu.memory_space<vmem>>, %arg2: memref<80x256xbf16, #tpu.memory_space<vmem>>, %arg3: memref<8x1xf32, #tpu.memory_space<vmem>>, %arg4: memref<8x256xf32, #tpu.memory_space<vmem>>) attributes {dimension_semantics = [#tpu.dimension_semantics<parallel>], iteration_bounds = array<i64: 2>, scalar_prefetch = 0 : i64, scratch_operands = 0 : i64, tpu.core_type = #tpu.core_type<tc>, window_params = [{pipeline_mode = #tpu.pipeline_mode<synchronous>, transform_indices = @transform_0, window_bounds = array<i64: 8, 80>}, {transform_indices = @transform_1, window_bounds = array<i64: 80, 256>}, {pipeline_mode = #tpu.pipeline_mode<synchronous>, transform_indices = @transform_2, window_bounds = array<i64: 8, 1>}, {transform_indices = @transform_3, window_bounds = array<i64: 8, 256>}]} {
    %c0 = arith.constant 0 : index
    %c0_0 = arith.constant 0 : index
    %0 = vector.load %arg1[%c0, %c0_0] : memref<8x80xbf16, #tpu.memory_space<vmem>>, vector<8x80xbf16>
    %c0_1 = arith.constant 0 : index
    %c0_2 = arith.constant 0 : index
    %1 = vector.load %arg2[%c0_1, %c0_2] : memref<80x256xbf16, #tpu.memory_space<vmem>>, vector<80x256xbf16>
    %cst = arith.constant dense<0.000000e+00> : vector<8x256xf32>
    %2 = tpu.matmul %0, %1, %cst {dimension_numbers = #tpu.dot_dimension_numbers<[1], [0], [0], [1], [0, 0, 1, 1], [], []>} : vector<8x80xbf16>, vector<80x256xbf16>, vector<8x256xf32> -> vector<8x256xf32>
    %c0_3 = arith.constant 0 : index
    %c0_4 = arith.constant 0 : index
    %3 = vector.load %arg3[%c0_3, %c0_4] : memref<8x1xf32, #tpu.memory_space<vmem>>, vector<8x1xf32>
    %4 = vector.broadcast %3 : vector<8x1xf32> to vector<8x256xf32>
    %5 = arith.addf %2, %4 : vector<8x256xf32>
    %cst_5 = arith.constant 0.000000e+00 : f32
    %6 = vector.broadcast %cst_5 : f32 to vector<8x256xf32>
    %7 = arith.maximumf %5, %6 : vector<8x256xf32>
    %c0_6 = arith.constant 0 : index
    %c0_7 = arith.constant 0 : index
    %8 = vector.load %arg4[%c0_6, %c0_7] : memref<8x256xf32, #tpu.memory_space<vmem>>, vector<8x256xf32>
    tpu.vector_store %arg4[%c0_6, %c0_7], %7 {strides = array<i32>} : memref<8x256xf32, #tpu.memory_space<vmem>>, vector<8x256xf32>,
    return
  }
  func.func @transform_0(%arg0: i32) -> (i32, i32) {
    %c0_i32 = arith.constant 0 : i32
    %c0_i32_0 = arith.constant 0 : i32
    %c0_i32_1 = arith.constant 0 : i32
    return %c0_i32, %c0_i32_0 : i32, i32
  }
  func.func @transform_1(%arg0: i32) -> (i32, i32) {
    %c0_i32 = arith.constant 0 : i32
    %c0_i32_0 = arith.constant 0 : i32
    return %c0_i32, %arg0 : i32, i32
  }
  func.func @transform_2(%arg0: i32) -> (i32, i32) {
    %c0_i32 = arith.constant 0 : i32
    %c0_i32_0 = arith.constant 0 : i32
    %c0_i32_1 = arith.constant 0 : i32
    return %c0_i32, %c0_i32_0 : i32, i32
  }
  func.func @transform_3(%arg0: i32) -> (i32, i32) {
    %c0_i32 = arith.constant 0 : i32
    %c0_i32_0 = arith.constant 0 : i32
    return %c0_i32, %arg0 : i32, i32
  }
}

module attributes {stable_mosaic.version = 11 : i64} {
  func.func @_mm_bias_relu_kernel(%arg0: i32, %arg1: memref<16x80xbf16, #tpu.memory_space<vmem>>, %arg2: memref<80x256xbf16, #tpu.memory_space<vmem>>, %arg3: memref<16x1xf32, #tpu.memory_space<vmem>>, %arg4: memref<16x256xf32, #tpu.memory_space<vmem>>) attributes {dimension_semantics = [#tpu.dimension_semantics<parallel>], iteration_bounds = array<i64: 2>, scalar_prefetch = 0 : i64, scratch_operands = 0 : i64, tpu.core_type = #tpu.core_type<tc>, window_params = [{pipeline_mode = #tpu.pipeline_mode<synchronous>, transform_indices = @transform_0, window_bounds = array<i64: 16, 80>}, {transform_indices = @transform_1, window_bounds = array<i64: 80, 256>}, {pipeline_mode = #tpu.pipeline_mode<synchronous>, transform_indices = @transform_2, window_bounds = array<i64: 16, 1>}, {transform_indices = @transform_3, window_bounds = array<i64: 16, 256>}]} {
    %c0 = arith.constant 0 : index
    %c0_0 = arith.constant 0 : index
    %0 = vector.load %arg1[%c0, %c0_0] : memref<16x80xbf16, #tpu.memory_space<vmem>>, vector<16x80xbf16>
    %c0_1 = arith.constant 0 : index
    %c0_2 = arith.constant 0 : index
    %1 = vector.load %arg2[%c0_1, %c0_2] : memref<80x256xbf16, #tpu.memory_space<vmem>>, vector<80x256xbf16>
    %cst = arith.constant dense<0.000000e+00> : vector<16x256xf32>
    %2 = tpu.matmul %0, %1, %cst {dimension_numbers = #tpu.dot_dimension_numbers<[1], [0], [0], [1], [0, 0, 1, 1], [], []>} : vector<16x80xbf16>, vector<80x256xbf16>, vector<16x256xf32> -> vector<16x256xf32>
    %c0_3 = arith.constant 0 : index
    %c0_4 = arith.constant 0 : index
    %3 = vector.load %arg3[%c0_3, %c0_4] : memref<16x1xf32, #tpu.memory_space<vmem>>, vector<16x1xf32>
    %4 = vector.broadcast %3 : vector<16x1xf32> to vector<16x256xf32>
    %5 = arith.addf %2, %4 : vector<16x256xf32>
    %cst_5 = arith.constant 0.000000e+00 : f32
    %6 = vector.broadcast %cst_5 : f32 to vector<16x256xf32>
    %7 = arith.maximumf %5, %6 : vector<16x256xf32>
    %c0_6 = arith.constant 0 : index
    %c0_7 = arith.constant 0 : index
    %8 = vector.load %arg4[%c0_6, %c0_7] : memref<16x256xf32, #tpu.memory_space<vmem>>, vector<16x256xf32>
    tpu.vector_store %arg4[%c0_6, %c0_7], %7 {strides = array<i32>} : memref<16x256xf32, #tpu.memory_space<vmem>>, vector<16x256xf32>,
    return
  }
  func.func @transform_0(%arg0: i32) -> (i32, i32) {
    %c0_i32 = arith.constant 0 : i32
    %c0_i32_0 = arith.constant 0 : i32
    %c0_i32_1 = arith.constant 0 : i32
    return %c0_i32, %c0_i32_0 : i32, i32
  }
  func.func @transform_1(%arg0: i32) -> (i32, i32) {
    %c0_i32 = arith.constant 0 : i32
    %c0_i32_0 = arith.constant 0 : i32
    return %c0_i32, %arg0 : i32, i32
  }
  func.func @transform_2(%arg0: i32) -> (i32, i32) {
    %c0_i32 = arith.constant 0 : i32
    %c0_i32_0 = arith.constant 0 : i32
    %c0_i32_1 = arith.constant 0 : i32
    return %c0_i32, %c0_i32_0 : i32, i32
  }
  func.func @transform_3(%arg0: i32) -> (i32, i32) {
    %c0_i32 = arith.constant 0 : i32
    %c0_i32_0 = arith.constant 0 : i32
    return %c0_i32, %arg0 : i32, i32
  }
}

module attributes {stable_mosaic.version = 11 : i64} {
  func.func @_mm_bias_relu_kernel(%arg0: i32, %arg1: memref<16x144xbf16, #tpu.memory_space<vmem>>, %arg2: memref<144x128xbf16, #tpu.memory_space<vmem>>, %arg3: memref<16x1xf32, #tpu.memory_space<vmem>>, %arg4: memref<16x128xf32, #tpu.memory_space<vmem>>) attributes {dimension_semantics = [#tpu.dimension_semantics<parallel>], iteration_bounds = array<i64: 1>, scalar_prefetch = 0 : i64, scratch_operands = 0 : i64, tpu.core_type = #tpu.core_type<tc>, window_params = [{pipeline_mode = #tpu.pipeline_mode<synchronous>, transform_indices = @transform_0, window_bounds = array<i64: 16, 144>}, {transform_indices = @transform_1, window_bounds = array<i64: 144, 128>}, {pipeline_mode = #tpu.pipeline_mode<synchronous>, transform_indices = @transform_2, window_bounds = array<i64: 16, 1>}, {transform_indices = @transform_3, window_bounds = array<i64: 16, 128>}]} {
    %c0 = arith.constant 0 : index
    %c0_0 = arith.constant 0 : index
    %0 = vector.load %arg1[%c0, %c0_0] : memref<16x144xbf16, #tpu.memory_space<vmem>>, vector<16x144xbf16>
    %c0_1 = arith.constant 0 : index
    %c0_2 = arith.constant 0 : index
    %1 = vector.load %arg2[%c0_1, %c0_2] : memref<144x128xbf16, #tpu.memory_space<vmem>>, vector<144x128xbf16>
    %cst = arith.constant dense<0.000000e+00> : vector<16x128xf32>
    %2 = tpu.matmul %0, %1, %cst {dimension_numbers = #tpu.dot_dimension_numbers<[1], [0], [0], [1], [0, 0, 1, 1], [], []>} : vector<16x144xbf16>, vector<144x128xbf16>, vector<16x128xf32> -> vector<16x128xf32>
    %c0_3 = arith.constant 0 : index
    %c0_4 = arith.constant 0 : index
    %3 = vector.load %arg3[%c0_3, %c0_4] : memref<16x1xf32, #tpu.memory_space<vmem>>, vector<16x1xf32>
    %4 = vector.broadcast %3 : vector<16x1xf32> to vector<16x128xf32>
    %5 = arith.addf %2, %4 : vector<16x128xf32>
    %cst_5 = arith.constant 0.000000e+00 : f32
    %6 = vector.broadcast %cst_5 : f32 to vector<16x128xf32>
    %7 = arith.maximumf %5, %6 : vector<16x128xf32>
    %c0_6 = arith.constant 0 : index
    %c0_7 = arith.constant 0 : index
    %8 = vector.load %arg4[%c0_6, %c0_7] : memref<16x128xf32, #tpu.memory_space<vmem>>, vector<16x128xf32>
    tpu.vector_store %arg4[%c0_6, %c0_7], %7 {strides = array<i32>} : memref<16x128xf32, #tpu.memory_space<vmem>>, vector<16x128xf32>,
    return
  }
  func.func @transform_0(%arg0: i32) -> (i32, i32) {
    %c0_i32 = arith.constant 0 : i32
    %c0_i32_0 = arith.constant 0 : i32
    %c0_i32_1 = arith.constant 0 : i32
    return %c0_i32, %c0_i32_0 : i32, i32
  }
  func.func @transform_1(%arg0: i32) -> (i32, i32) {
    %c0_i32 = arith.constant 0 : i32
    %c0_i32_0 = arith.constant 0 : i32
    return %c0_i32, %arg0 : i32, i32
  }
  func.func @transform_2(%arg0: i32) -> (i32, i32) {
    %c0_i32 = arith.constant 0 : i32
    %c0_i32_0 = arith.constant 0 : i32
    %c0_i32_1 = arith.constant 0 : i32
    return %c0_i32, %c0_i32_0 : i32, i32
  }
  func.func @transform_3(%arg0: i32) -> (i32, i32) {
    %c0_i32 = arith.constant 0 : i32
    %c0_i32_0 = arith.constant 0 : i32
    return %c0_i32, %arg0 : i32, i32
  }
}

module attributes {stable_mosaic.version = 11 : i64} {
  func.func @_mm_bias_relu_kernel(%arg0: i32, %arg1: memref<32x144xbf16, #tpu.memory_space<vmem>>, %arg2: memref<144x128xbf16, #tpu.memory_space<vmem>>, %arg3: memref<32x1xf32, #tpu.memory_space<vmem>>, %arg4: memref<32x128xf32, #tpu.memory_space<vmem>>) attributes {dimension_semantics = [#tpu.dimension_semantics<parallel>], iteration_bounds = array<i64: 1>, scalar_prefetch = 0 : i64, scratch_operands = 0 : i64, tpu.core_type = #tpu.core_type<tc>, window_params = [{pipeline_mode = #tpu.pipeline_mode<synchronous>, transform_indices = @transform_0, window_bounds = array<i64: 32, 144>}, {transform_indices = @transform_1, window_bounds = array<i64: 144, 128>}, {pipeline_mode = #tpu.pipeline_mode<synchronous>, transform_indices = @transform_2, window_bounds = array<i64: 32, 1>}, {transform_indices = @transform_3, window_bounds = array<i64: 32, 128>}]} {
    %c0 = arith.constant 0 : index
    %c0_0 = arith.constant 0 : index
    %0 = vector.load %arg1[%c0, %c0_0] : memref<32x144xbf16, #tpu.memory_space<vmem>>, vector<32x144xbf16>
    %c0_1 = arith.constant 0 : index
    %c0_2 = arith.constant 0 : index
    %1 = vector.load %arg2[%c0_1, %c0_2] : memref<144x128xbf16, #tpu.memory_space<vmem>>, vector<144x128xbf16>
    %cst = arith.constant dense<0.000000e+00> : vector<32x128xf32>
    %2 = tpu.matmul %0, %1, %cst {dimension_numbers = #tpu.dot_dimension_numbers<[1], [0], [0], [1], [0, 0, 1, 1], [], []>} : vector<32x144xbf16>, vector<144x128xbf16>, vector<32x128xf32> -> vector<32x128xf32>
    %c0_3 = arith.constant 0 : index
    %c0_4 = arith.constant 0 : index
    %3 = vector.load %arg3[%c0_3, %c0_4] : memref<32x1xf32, #tpu.memory_space<vmem>>, vector<32x1xf32>
    %4 = vector.broadcast %3 : vector<32x1xf32> to vector<32x128xf32>
    %5 = arith.addf %2, %4 : vector<32x128xf32>
    %cst_5 = arith.constant 0.000000e+00 : f32
    %6 = vector.broadcast %cst_5 : f32 to vector<32x128xf32>
    %7 = arith.maximumf %5, %6 : vector<32x128xf32>
    %c0_6 = arith.constant 0 : index
    %c0_7 = arith.constant 0 : index
    %8 = vector.load %arg4[%c0_6, %c0_7] : memref<32x128xf32, #tpu.memory_space<vmem>>, vector<32x128xf32>
    tpu.vector_store %arg4[%c0_6, %c0_7], %7 {strides = array<i32>} : memref<32x128xf32, #tpu.memory_space<vmem>>, vector<32x128xf32>,
    return
  }
  func.func @transform_0(%arg0: i32) -> (i32, i32) {
    %c0_i32 = arith.constant 0 : i32
    %c0_i32_0 = arith.constant 0 : i32
    %c0_i32_1 = arith.constant 0 : i32
    return %c0_i32, %c0_i32_0 : i32, i32
  }
  func.func @transform_1(%arg0: i32) -> (i32, i32) {
    %c0_i32 = arith.constant 0 : i32
    %c0_i32_0 = arith.constant 0 : i32
    return %c0_i32, %arg0 : i32, i32
  }
  func.func @transform_2(%arg0: i32) -> (i32, i32) {
    %c0_i32 = arith.constant 0 : i32
    %c0_i32_0 = arith.constant 0 : i32
    %c0_i32_1 = arith.constant 0 : i32
    return %c0_i32, %c0_i32_0 : i32, i32
  }
  func.func @transform_3(%arg0: i32) -> (i32, i32) {
    %c0_i32 = arith.constant 0 : i32
    %c0_i32_0 = arith.constant 0 : i32
    return %c0_i32, %arg0 : i32, i32
  }
}

module attributes {stable_mosaic.version = 11 : i64} {
  func.func @_mm_bias_relu_kernel(%arg0: i32, %arg1: memref<32x288xbf16, #tpu.memory_space<vmem>>, %arg2: memref<288x128xbf16, #tpu.memory_space<vmem>>, %arg3: memref<32x1xf32, #tpu.memory_space<vmem>>, %arg4: memref<32x128xf32, #tpu.memory_space<vmem>>) attributes {dimension_semantics = [#tpu.dimension_semantics<parallel>], iteration_bounds = array<i64: 1>, scalar_prefetch = 0 : i64, scratch_operands = 0 : i64, tpu.core_type = #tpu.core_type<tc>, window_params = [{pipeline_mode = #tpu.pipeline_mode<synchronous>, transform_indices = @transform_0, window_bounds = array<i64: 32, 288>}, {transform_indices = @transform_1, window_bounds = array<i64: 288, 128>}, {pipeline_mode = #tpu.pipeline_mode<synchronous>, transform_indices = @transform_2, window_bounds = array<i64: 32, 1>}, {transform_indices = @transform_3, window_bounds = array<i64: 32, 128>}]} {
    %c0 = arith.constant 0 : index
    %c0_0 = arith.constant 0 : index
    %0 = vector.load %arg1[%c0, %c0_0] : memref<32x288xbf16, #tpu.memory_space<vmem>>, vector<32x288xbf16>
    %c0_1 = arith.constant 0 : index
    %c0_2 = arith.constant 0 : index
    %1 = vector.load %arg2[%c0_1, %c0_2] : memref<288x128xbf16, #tpu.memory_space<vmem>>, vector<288x128xbf16>
    %cst = arith.constant dense<0.000000e+00> : vector<32x128xf32>
    %2 = tpu.matmul %0, %1, %cst {dimension_numbers = #tpu.dot_dimension_numbers<[1], [0], [0], [1], [0, 0, 1, 1], [], []>} : vector<32x288xbf16>, vector<288x128xbf16>, vector<32x128xf32> -> vector<32x128xf32>
    %c0_3 = arith.constant 0 : index
    %c0_4 = arith.constant 0 : index
    %3 = vector.load %arg3[%c0_3, %c0_4] : memref<32x1xf32, #tpu.memory_space<vmem>>, vector<32x1xf32>
    %4 = vector.broadcast %3 : vector<32x1xf32> to vector<32x128xf32>
    %5 = arith.addf %2, %4 : vector<32x128xf32>
    %cst_5 = arith.constant 0.000000e+00 : f32
    %6 = vector.broadcast %cst_5 : f32 to vector<32x128xf32>
    %7 = arith.maximumf %5, %6 : vector<32x128xf32>
    %c0_6 = arith.constant 0 : index
    %c0_7 = arith.constant 0 : index
    %8 = vector.load %arg4[%c0_6, %c0_7] : memref<32x128xf32, #tpu.memory_space<vmem>>, vector<32x128xf32>
    tpu.vector_store %arg4[%c0_6, %c0_7], %7 {strides = array<i32>} : memref<32x128xf32, #tpu.memory_space<vmem>>, vector<32x128xf32>,
    return
  }
  func.func @transform_0(%arg0: i32) -> (i32, i32) {
    %c0_i32 = arith.constant 0 : i32
    %c0_i32_0 = arith.constant 0 : i32
    %c0_i32_1 = arith.constant 0 : i32
    return %c0_i32, %c0_i32_0 : i32, i32
  }
  func.func @transform_1(%arg0: i32) -> (i32, i32) {
    %c0_i32 = arith.constant 0 : i32
    %c0_i32_0 = arith.constant 0 : i32
    return %c0_i32, %arg0 : i32, i32
  }
  func.func @transform_2(%arg0: i32) -> (i32, i32) {
    %c0_i32 = arith.constant 0 : i32
    %c0_i32_0 = arith.constant 0 : i32
    %c0_i32_1 = arith.constant 0 : i32
    return %c0_i32, %c0_i32_0 : i32, i32
  }
  func.func @transform_3(%arg0: i32) -> (i32, i32) {
    %c0_i32 = arith.constant 0 : i32
    %c0_i32_0 = arith.constant 0 : i32
    return %c0_i32, %arg0 : i32, i32
  }
}

</mosaic_0001>

<llo_original>
// kernel: encoder_forward.11
$region0: #{encoder_forward.11}
  #allocation0 [shape = 'u32[]', space=smem, size = 0x4, offset = 0x4, fixed_abs, tag = 'smem constant byte address 0x4 - core index']
  #allocation1 [shape = 'u32[144,128]{1,0:T(1,128)}', space=vmem, size = 0x12000, scoped, tag = 'internal scratch']
  %s0 = inlined_call_operand.vmem [shape: bf16[4,32], index: 0, kind: input, shape index: {}]
  %s1 = inlined_call_operand.vmem [shape: bf16[32,2048], index: 1, kind: input, shape index: {}]
  %s2 = inlined_call_operand.vmem [shape: f32[4,1], index: 2, kind: input, shape index: {}]
  %s3 = inlined_call_operand.vmem [shape: f32[4,2048], index: 3, kind: output, shape index: {}]
  %s4 = sld [smem:[#allocation0]]
  $region68: #{encoder_forward.11} parent=0
    _
  %s6 = ssub.s32 1, %s4
  %s7 = scalar_select 0, %s6, %s4
  $region1: #{encoder_forward.11} parent=0
    #allocation2 [shape = 'u8[65536]{0}', space=vmem, size = 0x10000, scoped, tag = 'input window, operand 1']
    loop: start=0, step=1, limit=6
    $region2: #{encoder_forward.11} parent=1 // loop_pre_header
      _
    $region3: #{encoder_forward.11} parent=1 // loop_header
      %s9 = sphi 0, %s13
      %p10 = scmp.ge.s32.totalorder %s9, 6
      %s17 = sphi 0, %s17
      %s19 = sphi 0, %s17
      %s20 = sphi 0, %s19
      %s34 = sphi 0, %s20
      %s40 = sphi 0, %s42
      %s43 = sphi 0, %s40
      %s44 = sphi 0, %s43
      %s60 = sphi 0, %s44
      %s64 = sphi 0, %s64
      %s66 = sphi 0, %s64
      %s67 = sphi 0, %s66
      %s81 = sphi 0, %s67
      %s87 = sphi 0, %s89
      %s90 = sphi 0, %s87
      %s91 = sphi 0, %s90
      %s107 = sphi 0, %s91
    $region4: #{encoder_forward.11} parent=1 // loop_header_branch
      %12 = sbr.rel (%p10) target = $region8
    $region5: #{encoder_forward.11} parent=1 // loop_body
      %s14 = ssub.s32 %s9, 1
      %s15 = ssub.s32 %s9, 2
      %s16 = sadd.s32 %s9, 1
      %s18 = sadd.s32 %s17, 1
      %p21 = scmp.eq.s32.totalorder %s9, 3
      %p22 = scmp.ne.s32.totalorder %s17, %s19
      %p23 = scmp.eq.s32.totalorder %s9, 0
      %p24 = por %p22, %p23
      %p25 = scmp.ne.s32.totalorder %s17, %s19
      %p26 = scmp.eq.s32.totalorder %s14, 3
      %p27 = por %p25, %p26
      %p28 = scmp.ne.s32.totalorder %s19, %s20
      %p29 = scmp.eq.s32.totalorder %s14, 0
      %p30 = por %p28, %p29
      %p31 = scmp.ne.s32.totalorder %s19, %s20
      %p32 = scmp.eq.s32.totalorder %s15, 3
      %p33 = por %p31, %p32
      %p35 = scmp.ne.s32.totalorder %s20, %s34
      %p36 = scmp.eq.s32.totalorder %s15, 0
      %p37 = por %p35, %p36
      %s38 = ssub.s32 %s9, %s16
      %p39 = scmp.eq.s32.totalorder %s38, 0
      %s41 = sadd.s32 %s40, 1
      %s42 = scalar_select %p39, %s40, %s41
      %p45 = pneg %p39
      %p46 = scmp.eq.s32.totalorder %s9, 3
      %p47 = por %p45, %p46
      %p48 = scmp.ne.s32.totalorder %s40, %s43
      %p49 = scmp.eq.s32.totalorder %s9, 0
      %p50 = por %p48, %p49
      %p51 = scmp.ne.s32.totalorder %s40, %s43
      %p52 = scmp.eq.s32.totalorder %s14, 3
      %p53 = por %p51, %p52
      %p54 = scmp.ne.s32.totalorder %s43, %s44
      %p55 = scmp.eq.s32.totalorder %s14, 0
      %p56 = por %p54, %p55
      %p57 = scmp.ne.s32.totalorder %s43, %s44
      %p58 = scmp.eq.s32.totalorder %s15, 3
      %p59 = por %p57, %p58
      %p61 = scmp.ne.s32.totalorder %s44, %s60
      %p62 = scmp.eq.s32.totalorder %s15, 0
      %p63 = por %p61, %p62
      %s65 = sadd.s32 %s64, 1
      %p68 = scmp.eq.s32.totalorder %s9, 3
      %p69 = scmp.ne.s32.totalorder %s64, %s66
      %p70 = scmp.eq.s32.totalorder %s9, 0
      %p71 = por %p69, %p70
      %p72 = scmp.ne.s32.totalorder %s64, %s66
      %p73 = scmp.eq.s32.totalorder %s14, 3
      %p74 = por %p72, %p73
      %p75 = scmp.ne.s32.totalorder %s66, %s67
      %p76 = scmp.eq.s32.totalorder %s14, 0
      %p77 = por %p75, %p76
      %p78 = scmp.ne.s32.totalorder %s66, %s67
      %p79 = scmp.eq.s32.totalorder %s15, 3
      %p80 = por %p78, %p79
      %p82 = scmp.ne.s32.totalorder %s67, %s81
      %p83 = scmp.eq.s32.totalorder %s15, 0
      %p84 = por %p82, %p83
      %s85 = ssub.s32 %s9, %s16
      %p86 = scmp.eq.s32.totalorder %s85, 0
      %s88 = sadd.s32 %s87, 1
      %s89 = scalar_select %p86, %s87, %s88
      %p92 = pneg %p86
      %p93 = scmp.eq.s32.totalorder %s9, 3
      %p94 = por %p92, %p93
      %p95 = scmp.ne.s32.totalorder %s87, %s90
      %p96 = scmp.eq.s32.totalorder %s9, 0
      %p97 = por %p95, %p96
      %p98 = scmp.ne.s32.totalorder %s87, %s90
      %p99 = scmp.eq.s32.totalorder %s14, 3
      %p100 = por %p98, %p99
      %p101 = scmp.ne.s32.totalorder %s90, %s91
      %p102 = scmp.eq.s32.totalorder %s14, 0
      %p103 = por %p101, %p102
      %p104 = scmp.ne.s32.totalorder %s90, %s91
      %p105 = scmp.eq.s32.totalorder %s15, 3
      %p106 = por %p104, %p105
      %p108 = scmp.ne.s32.totalorder %s91, %s107
      %p109 = scmp.eq.s32.totalorder %s15, 0
      %p110 = por %p108, %p109
      %p111 = scmp.le.s32.totalorder 1, %s9
      %p112 = scmp.lt.s32.totalorder %s9, 5
      %p113 = pnand %p111, %p112
      %p114 = pneg %p113
      // Predicated region
      $region9: #{encoder_forward.11} parent=5 // pred_check
        _
      $region10: #{encoder_forward.11} parent=5 // pred_check_branch
        %116 = sbr.rel (%p113) target = $region12
      $region11: #{encoder_forward.11} parent=5 // pred_region
        %s117 = ssub.s32 %s9, 1
        // Predicated region
        $region13: #{encoder_forward.11} parent=11 // pred_check
          %p118 = pneg %p30
        $region14: #{encoder_forward.11} parent=11 // pred_check_branch
          %120 = sbr.rel (%p118) target = $region16
        $region15: #{encoder_forward.11} parent=11 // pred_region
          _
        $region16: #{encoder_forward.11} parent=11 // pred_fallthru
          _
        // Predicated region
        $region17: #{encoder_forward.11} parent=11 // pred_check
          %p121 = pneg %p77
        $region18: #{encoder_forward.11} parent=11 // pred_check_branch
          %123 = sbr.rel (%p121) target = $region20
        $region19: #{encoder_forward.11} parent=11 // pred_region
          _
        $region20: #{encoder_forward.11} parent=11 // pred_fallthru
          _
      $region12: #{encoder_forward.11} parent=5 // pred_fallthru
        _
      %p124 = scmp.lt.s32.totalorder %s9, 4
      // Predicated region
      $region21: #{encoder_forward.11} parent=5 // pred_check
        %p125 = pneg %p124
      $region22: #{encoder_forward.11} parent=5 // pred_check_branch
        %127 = sbr.rel (%p125) target = $region24
      $region23: #{encoder_forward.11} parent=5 // pred_region
        // Predicated region
        $region25: #{encoder_forward.11} parent=23 // pred_check
          %p128 = pneg %p50
        $region26: #{encoder_forward.11} parent=23 // pred_check_branch
          %130 = sbr.rel (%p128) target = $region28
        $region27: #{encoder_forward.11} parent=23 // pred_region
          %s131 = sand.u32 %s40, 1
          %s132 = sand.u32 %s40, 1
          %s133 = smul.addr %s132, 64
          %s134 = scalar_lea.vmem [#allocation2], %s133
          %s135 = smul.u32 4, %s9
          %s136 = smul.addr %s135, 4
          %s137 = scalar_lea.vmem %s1, %s136
          // Predicated region
          $region29: #{encoder_forward.11} parent=27 // pred_check
            _
          $region30: #{encoder_forward.11} parent=27 // pred_check_branch
            %139 = sbr.rel (0) target = $region32
          $region31: #{encoder_forward.11} parent=27 // pred_region
            // Predicated region
            $region33: #{encoder_forward.11} parent=31 // pred_check
              _
            $region34: #{encoder_forward.11} parent=31 // pred_check_branch
              %141 = sbr.rel (0) target = $region36
            $region35: #{encoder_forward.11} parent=31 // pred_region
              loop: start=0, step=1, limit=1
              $region37: #{encoder_forward.11} parent=35 // loop_pre_header
                _
              $region38: #{encoder_forward.11} parent=35 // loop_header
                %s143 = sphi 0, %s147
                %p144 = scmp.ge.s32.totalorder %s143, 1
                %s148 = sphi %s137, %s137
                %s149 = sphi %s134, %s134
              $region39: #{encoder_forward.11} parent=35 // loop_header_branch
                %146 = sbr.rel (%p144) target = $region43
              $region40: #{encoder_forward.11} parent=35 // loop_body
                %v150 = vld [vmem:[%s148] sm:$0xff]
                %151 = vst [vmem:[%s149] sm:$0xff] %v150
                %v152 = vld [vmem:[%s148 + $0x8] sm:$0xff]
                %153 = vst [vmem:[%s149 + $0x8] sm:$0xff] %v152
                %v154 = vld [vmem:[%s148 + $0x40] sm:$0xff]
                %155 = vst [vmem:[%s149 + $0x10] sm:$0xff] %v154
                %v156 = vld [vmem:[%s148 + $0x48] sm:$0xff]
                %157 = vst [vmem:[%s149 + $0x18] sm:$0xff] %v156
                %v158 = vld [vmem:[%s148 + $0x80] sm:$0xff]
                %159 = vst [vmem:[%s149 + $0x20] sm:$0xff] %v158
                %v160 = vld [vmem:[%s148 + $0x88] sm:$0xff]
                %161 = vst [vmem:[%s149 + $0x28] sm:$0xff] %v160
                %v162 = vld [vmem:[%s148 + $0xc0] sm:$0xff]
                %163 = vst [vmem:[%s149 + $0x30] sm:$0xff] %v162
                %v164 = vld [vmem:[%s148 + $0xc8] sm:$0xff]
                %165 = vst [vmem:[%s149 + $0x38] sm:$0xff] %v164
              $region41: #{encoder_forward.11} parent=35 // loop_footer
                %s147 = sadd.s32 1, %s143
              $region42: #{encoder_forward.11} parent=35 // loop_footer_branch
                %142 = sbr.rel target = $region38
              $region43: #{encoder_forward.11} parent=35 // loop_exit
                _
            $region36: #{encoder_forward.11} parent=31 // pred_fallthru
              _
            // Predicated region
            $region44: #{encoder_forward.11} parent=31 // pred_check
              _
            $region45: #{encoder_forward.11} parent=31 // pred_check_branch
              %167 = sbr.rel target = $region47
            $region46: #{encoder_forward.11} parent=31 // pred_region
              _
            $region47: #{encoder_forward.11} parent=31 // pred_fallthru
              _
          $region32: #{encoder_forward.11} parent=27 // pred_fallthru
            _
          %168 = vnop
        $region28: #{encoder_forward.11} parent=23 // pred_fallthru
          _
      $region24: #{encoder_forward.11} parent=5 // pred_fallthru
        _
      %p169 = scmp.le.s32.totalorder 1, %s9
      %p170 = scmp.lt.s32.totalorder %s9, 5
      %p171 = pnand %p169, %p170
      %p172 = pneg %p171
      // Predicated region
      $region48: #{encoder_forward.11} parent=5 // pred_check
        _
      $region49: #{encoder_forward.11} parent=5 // pred_check_branch
        %174 = sbr.rel (%p171) target = $region51
      $region50: #{encoder_forward.11} parent=5 // pred_region
        %s175 = ssub.s32 %s9, 1
        %s176 = sand.u32 %s43, 1
        %s177 = sand.u32 %s43, 1
        %s178 = smul.addr %s177, 64
        %s179 = scalar_lea.vmem [#allocation2], %s178
        // Predicated region
        $region52: #{encoder_forward.11} parent=50 // pred_check
          %p180 = pneg %p56
        $region53: #{encoder_forward.11} parent=50 // pred_check_branch
          %182 = sbr.rel (%p180) target = $region55
        $region54: #{encoder_forward.11} parent=50 // pred_region
          _
        $region55: #{encoder_forward.11} parent=50 // pred_fallthru
          _
        %p183 = pneg %p30
        %p184 = pneg %p27
        %s185 = sand.u32 %s43, 1
        %s186 = sand.u32 %s43, 1
        %s187 = smul.addr %s186, 64
        %s188 = scalar_lea.vmem [#allocation2], %s187
        %p189 = pneg %p56
        %p190 = pneg %p53
        %p191 = pneg %p77
        %p192 = pneg %p74
        %p193 = pneg %p103
        %p194 = pneg %p100
        %s195 = smul.u32 4, %s14
        %p196 = scmp.lt.s32.totalorder %s195, 15
        %s197 = scalar_select %p196, %s195, 15
        %s198 = smul.addr %s197, 4
        %s199 = scalar_lea.vmem %s3, %s198
        %s200 = smul.u32 4, %s14
        %s201 = smul.u32 4, %s14
        %p202 = scmp.lt.s32.totalorder %s201, 15
        %s203 = scalar_select %p202, %s201, 15
        %s204 = smul.addr %s203, 4
        %s205 = scalar_lea.vmem %s3, %s204
        %s206 = smul.u32 4, %s14
        %v208 = vld [vmem:[%s0] sm:$0x3]
        %v209 = vld [vmem:[%s179] sm:$0xff]
        %v210 = vld [vmem:[%s179 + $0x8] sm:$0xff]
        %v211 = vld [vmem:[%s179 + $0x10] sm:$0xff]
        %v212 = vld [vmem:[%s179 + $0x18] sm:$0xff]
        %v213 = vld [vmem:[%s179 + $0x20] sm:$0xff]
        %v214 = vld [vmem:[%s179 + $0x28] sm:$0xff]
        %v215 = vld [vmem:[%s179 + $0x30] sm:$0xff]
        %v216 = vld [vmem:[%s179 + $0x38] sm:$0xff]
        %v217 = vld [vmem:[%s2] sm:$0xf]
        %219 = vset.pattern.permute.xlu0 0
        %220 = vperm.xlu0 %219, %v217
        %v221 = vpop.permute.xlu0 %220
        %v231 = vunpack.c.l.b16 %v209
        %v232 = vunpack.c.h.b16 %v209
        %v233 = vunpack.c.l.b16 %v210
        %v234 = vunpack.c.h.b16 %v210
        %v235 = vunpack.c.l.b16 %v211
        %v236 = vunpack.c.h.b16 %v211
        %v237 = vunpack.c.l.b16 %v212
        %v238 = vunpack.c.h.b16 %v212
        %v239 = vunpack.c.l.b16 %v213
        %v240 = vunpack.c.h.b16 %v213
        %v241 = vunpack.c.l.b16 %v214
        %v242 = vunpack.c.h.b16 %v214
        %v243 = vunpack.c.l.b16 %v215
        %v244 = vunpack.c.h.b16 %v215
        %v245 = vunpack.c.l.b16 %v216
        %v246 = vunpack.c.h.b16 %v216
        %v247 = vpack.c.b16 %v235, %v231
        %v248 = vpack.c.b16 %v236, %v232
        %v249 = vpack.c.b16 %v237, %v233
        %v250 = vpack.c.b16 %v238, %v234
        %v251 = vpack.c.b16 %v243, %v239
        %v252 = vpack.c.b16 %v244, %v240
        %v253 = vpack.c.b16 %v245, %v241
        %v254 = vpack.c.b16 %v246, %v242
        %vm263 = vcmask 261120
        %v265 = vsel %vm263, %v208, 0
        %267 = vmatprep.subr.bf16.mxu0 0
        %268 = vmatpush1.bf16.msra.mxu0 0
        %269 = vmatprep.subr.bf16.mxu0 0
        %270 = vmatpush1.bf16.msra.mxu0 0
        %271 = vmatprep.subr.bf16.mxu0 0
        %272 = vmatpush1.bf16.msra.mxu0 0
        %273 = vmatprep.subr.bf16.mxu0 0
        %274 = vmatpush1.bf16.msra.mxu0 0
        %275 = vmatprep.subr.bf16.mxu0 0
        %276 = vmatpush1.bf16.msra.mxu0 0
        %277 = vmatprep.subr.bf16.mxu0 0
        %278 = vmatpush1.bf16.msra.mxu0 0
        %279 = vmatprep.subr.bf16.mxu0 %v252
        %280 = vmatpush1.bf16.msra.mxu0 %v251
        %281 = vmatprep.subr.bf16.mxu0 %v248
        %282 = vmatpush1.bf16.msra.mxu0 %v247
        %283 = vmatprep.subr.bf16.mxu0 0
        %284 = vmatpush2.bf16.msra.mxu0 0
        %285 = vmatprep.subr.bf16.mxu0 0
        %286 = vmatpush2.bf16.msra.mxu0 0
        %287 = vmatprep.subr.bf16.mxu0 0
        %288 = vmatpush2.bf16.msra.mxu0 0
        %289 = vmatprep.subr.bf16.mxu0 0
        %290 = vmatpush2.bf16.msra.mxu0 0
        %291 = vmatprep.subr.bf16.mxu0 0
        %292 = vmatpush2.bf16.msra.mxu0 0
        %293 = vmatprep.subr.bf16.mxu0 0
        %294 = vmatpush2.bf16.msra.mxu0 0
        %295 = vmatprep.subr.bf16.mxu0 0
        %296 = vmatpush2.bf16.msra.mxu0 0
        %297 = vmatprep.subr.bf16.mxu0 0
        %298 = vmatpush2.bf16.msra.mxu0 0
        %299 = vmatprep.mubr.bf16.mxu0 0
        %300 = vmatmul.mubr.bf16.gmra.mxu0 %v265
        %v301 = vpop.f32.mrf.mxu0
        %v302 = vadd.f32 %v221, %v301
        %v303 = vpop.f32.mrf.mxu0
        %v304 = vadd.f32 %v221, %v303
        %v305 = vpop.f32.mrf.mxu0
        %v306 = vpop.f32.mrf.mxu0
        %307 = vdwg.mxu0
        %308 = vmatprep.subr.bf16.mxu0 0
        %309 = vmatpush1.bf16.msra.mxu0 0
        %310 = vmatprep.subr.bf16.mxu0 0
        %311 = vmatpush1.bf16.msra.mxu0 0
        %312 = vmatprep.subr.bf16.mxu0 0
        %313 = vmatpush1.bf16.msra.mxu0 0
        %314 = vmatprep.subr.bf16.mxu0 0
        %315 = vmatpush1.bf16.msra.mxu0 0
        %316 = vmatprep.subr.bf16.mxu0 0
        %317 = vmatpush1.bf16.msra.mxu0 0
        %318 = vmatprep.subr.bf16.mxu0 0
        %319 = vmatpush1.bf16.msra.mxu0 0
        %320 = vmatprep.subr.bf16.mxu0 %v254
        %321 = vmatpush1.bf16.msra.mxu0 %v253
        %322 = vmatprep.subr.bf16.mxu0 %v250
        %323 = vmatpush1.bf16.msra.mxu0 %v249
        %324 = vmatprep.subr.bf16.mxu0 0
        %325 = vmatpush2.bf16.msra.mxu0 0
        %326 = vmatprep.subr.bf16.mxu0 0
        %327 = vmatpush2.bf16.msra.mxu0 0
        %328 = vmatprep.subr.bf16.mxu0 0
        %329 = vmatpush2.bf16.msra.mxu0 0
        %330 = vmatprep.subr.bf16.mxu0 0
        %331 = vmatpush2.bf16.msra.mxu0 0
        %332 = vmatprep.subr.bf16.mxu0 0
        %333 = vmatpush2.bf16.msra.mxu0 0
        %334 = vmatprep.subr.bf16.mxu0 0
        %335 = vmatpush2.bf16.msra.mxu0 0
        %336 = vmatprep.subr.bf16.mxu0 0
        %337 = vmatpush2.bf16.msra.mxu0 0
        %338 = vmatprep.subr.bf16.mxu0 0
        %339 = vmatpush2.bf16.msra.mxu0 0
        %340 = vmatprep.mubr.bf16.mxu0 0
        %341 = vmatmul.mubr.bf16.gmra.mxu0 %v265
        %v342 = vpop.f32.mrf.mxu0
        %v343 = vadd.f32 %v221, %v342
        %v344 = vpop.f32.mrf.mxu0
        %v345 = vadd.f32 %v221, %v344
        %v346 = vpop.f32.mrf.mxu0
        %v347 = vpop.f32.mrf.mxu0
        %348 = vdwg.mxu0
        %v349 = vmax.f32 %v302, 0.0
        %v350 = vmax.f32 %v304, 0.0
        %v351 = vmax.f32 %v343, 0.0
        %v352 = vmax.f32 %v345, 0.0
        %v357 = vcombine.low %v349, %v350
        %v358 = vcombine.low %v351, %v352
        %361 = vst [vmem:[%s205] sm:$0xff] %v357
        %362 = vst [vmem:[%s205 + $0x8] sm:$0xff] %v358
        %s363 = smul.u32 4, %s14
        %p364 = scmp.lt.s32.totalorder %s363, 15
        %s365 = scalar_select %p364, %s363, 15
        %s366 = smul.addr %s365, 4
        %s367 = scalar_lea.vmem %s3, %s366
        // Predicated region
        $region56: #{encoder_forward.11} parent=50 // pred_check
          %p368 = pneg %p100
        $region57: #{encoder_forward.11} parent=50 // pred_check_branch
          %370 = sbr.rel (%p368) target = $region59
        $region58: #{encoder_forward.11} parent=50 // pred_region
          %s371 = smul.u32 4, %s14
        $region59: #{encoder_forward.11} parent=50 // pred_fallthru
          _
      $region51: #{encoder_forward.11} parent=5 // pred_fallthru
        _
      %p372 = scmp.le.s32.totalorder 2, %s9
      // Predicated region
      $region60: #{encoder_forward.11} parent=5 // pred_check
        %p373 = pneg %p372
      $region61: #{encoder_forward.11} parent=5 // pred_check_branch
        %375 = sbr.rel (%p373) target = $region63
      $region62: #{encoder_forward.11} parent=5 // pred_region
        %s376 = ssub.s32 %s9, 2
        // Predicated region
        $region64: #{encoder_forward.11} parent=62 // pred_check
          %p377 = pneg %p106
        $region65: #{encoder_forward.11} parent=62 // pred_check_branch
          %379 = sbr.rel (%p377) target = $region67
        $region66: #{encoder_forward.11} parent=62 // pred_region
          %s380 = smul.u32 4, %s15
          %p381 = scmp.lt.s32.totalorder %s380, 15
          %s382 = scalar_select %p381, %s380, 15
          %s383 = smul.addr %s382, 4
          %s384 = scalar_lea.vmem %s3, %s383
        $region67: #{encoder_forward.11} parent=62 // pred_fallthru
          _
      $region63: #{encoder_forward.11} parent=5 // pred_fallthru
        _
    $region6: #{encoder_forward.11} parent=1 // loop_footer
      %s13 = sadd.s32 1, %s9
    $region7: #{encoder_forward.11} parent=1 // loop_footer_branch
      %8 = sbr.rel target = $region3
    $region8: #{encoder_forward.11} parent=1 // loop_exit
      _

// kernel: encoder_forward.12
$region0: #{encoder_forward.12}
  #allocation0 [shape = 'u32[]', space=smem, size = 0x4, offset = 0x4, fixed_abs, tag = 'smem constant byte address 0x4 - core index']
  #allocation1 [shape = 'u32[144,128]{1,0:T(1,128)}', space=vmem, size = 0x12000, scoped, tag = 'internal scratch']
  %s0 = inlined_call_operand.vmem [shape: bf16[4,48], index: 0, kind: input, shape index: {}]
  %s1 = inlined_call_operand.vmem [shape: bf16[48,2048], index: 1, kind: input, shape index: {}]
  %s2 = inlined_call_operand.vmem [shape: f32[4,1], index: 2, kind: input, shape index: {}]
  %s3 = inlined_call_operand.vmem [shape: f32[4,2048], index: 3, kind: output, shape index: {}]
  %s4 = sld [smem:[#allocation0]]
  $region68: #{encoder_forward.12} parent=0
    _
  %s6 = ssub.s32 1, %s4
  %s7 = scalar_select 0, %s6, %s4
  $region1: #{encoder_forward.12} parent=0
    #allocation2 [shape = 'u8[98304]{0}', space=vmem, size = 0x18000, scoped, tag = 'input window, operand 1']
    loop: start=0, step=1, limit=6
    $region2: #{encoder_forward.12} parent=1 // loop_pre_header
      _
    $region3: #{encoder_forward.12} parent=1 // loop_header
      %s9 = sphi 0, %s13
      %p10 = scmp.ge.s32.totalorder %s9, 6
      %s17 = sphi 0, %s17
      %s19 = sphi 0, %s17
      %s20 = sphi 0, %s19
      %s34 = sphi 0, %s20
      %s40 = sphi 0, %s42
      %s43 = sphi 0, %s40
      %s44 = sphi 0, %s43
      %s60 = sphi 0, %s44
      %s64 = sphi 0, %s64
      %s66 = sphi 0, %s64
      %s67 = sphi 0, %s66
      %s81 = sphi 0, %s67
      %s87 = sphi 0, %s89
      %s90 = sphi 0, %s87
      %s91 = sphi 0, %s90
      %s107 = sphi 0, %s91
    $region4: #{encoder_forward.12} parent=1 // loop_header_branch
      %12 = sbr.rel (%p10) target = $region8
    $region5: #{encoder_forward.12} parent=1 // loop_body
      %s14 = ssub.s32 %s9, 1
      %s15 = ssub.s32 %s9, 2
      %s16 = sadd.s32 %s9, 1
      %s18 = sadd.s32 %s17, 1
      %p21 = scmp.eq.s32.totalorder %s9, 3
      %p22 = scmp.ne.s32.totalorder %s17, %s19
      %p23 = scmp.eq.s32.totalorder %s9, 0
      %p24 = por %p22, %p23
      %p25 = scmp.ne.s32.totalorder %s17, %s19
      %p26 = scmp.eq.s32.totalorder %s14, 3
      %p27 = por %p25, %p26
      %p28 = scmp.ne.s32.totalorder %s19, %s20
      %p29 = scmp.eq.s32.totalorder %s14, 0
      %p30 = por %p28, %p29
      %p31 = scmp.ne.s32.totalorder %s19, %s20
      %p32 = scmp.eq.s32.totalorder %s15, 3
      %p33 = por %p31, %p32
      %p35 = scmp.ne.s32.totalorder %s20, %s34
      %p36 = scmp.eq.s32.totalorder %s15, 0
      %p37 = por %p35, %p36
      %s38 = ssub.s32 %s9, %s16
      %p39 = scmp.eq.s32.totalorder %s38, 0
      %s41 = sadd.s32 %s40, 1
      %s42 = scalar_select %p39, %s40, %s41
      %p45 = pneg %p39
      %p46 = scmp.eq.s32.totalorder %s9, 3
      %p47 = por %p45, %p46
      %p48 = scmp.ne.s32.totalorder %s40, %s43
      %p49 = scmp.eq.s32.totalorder %s9, 0
      %p50 = por %p48, %p49
      %p51 = scmp.ne.s32.totalorder %s40, %s43
      %p52 = scmp.eq.s32.totalorder %s14, 3
      %p53 = por %p51, %p52
      %p54 = scmp.ne.s32.totalorder %s43, %s44
      %p55 = scmp.eq.s32.totalorder %s14, 0
      %p56 = por %p54, %p55
      %p57 = scmp.ne.s32.totalorder %s43, %s44
      %p58 = scmp.eq.s32.totalorder %s15, 3
      %p59 = por %p57, %p58
      %p61 = scmp.ne.s32.totalorder %s44, %s60
      %p62 = scmp.eq.s32.totalorder %s15, 0
      %p63 = por %p61, %p62
      %s65 = sadd.s32 %s64, 1
      %p68 = scmp.eq.s32.totalorder %s9, 3
      %p69 = scmp.ne.s32.totalorder %s64, %s66
      %p70 = scmp.eq.s32.totalorder %s9, 0
      %p71 = por %p69, %p70
      %p72 = scmp.ne.s32.totalorder %s64, %s66
      %p73 = scmp.eq.s32.totalorder %s14, 3
      %p74 = por %p72, %p73
      %p75 = scmp.ne.s32.totalorder %s66, %s67
      %p76 = scmp.eq.s32.totalorder %s14, 0
      %p77 = por %p75, %p76
      %p78 = scmp.ne.s32.totalorder %s66, %s67
      %p79 = scmp.eq.s32.totalorder %s15, 3
      %p80 = por %p78, %p79
      %p82 = scmp.ne.s32.totalorder %s67, %s81
      %p83 = scmp.eq.s32.totalorder %s15, 0
      %p84 = por %p82, %p83
      %s85 = ssub.s32 %s9, %s16
      %p86 = scmp.eq.s32.totalorder %s85, 0
      %s88 = sadd.s32 %s87, 1
      %s89 = scalar_select %p86, %s87, %s88
      %p92 = pneg %p86
      %p93 = scmp.eq.s32.totalorder %s9, 3
      %p94 = por %p92, %p93
      %p95 = scmp.ne.s32.totalorder %s87, %s90
      %p96 = scmp.eq.s32.totalorder %s9, 0
      %p97 = por %p95, %p96
      %p98 = scmp.ne.s32.totalorder %s87, %s90
      %p99 = scmp.eq.s32.totalorder %s14, 3
      %p100 = por %p98, %p99
      %p101 = scmp.ne.s32.totalorder %s90, %s91
      %p102 = scmp.eq.s32.totalorder %s14, 0
      %p103 = por %p101, %p102
      %p104 = scmp.ne.s32.totalorder %s90, %s91
      %p105 = scmp.eq.s32.totalorder %s15, 3
      %p106 = por %p104, %p105
      %p108 = scmp.ne.s32.totalorder %s91, %s107
      %p109 = scmp.eq.s32.totalorder %s15, 0
      %p110 = por %p108, %p109
      %p111 = scmp.le.s32.totalorder 1, %s9
      %p112 = scmp.lt.s32.totalorder %s9, 5
      %p113 = pnand %p111, %p112
      %p114 = pneg %p113
      // Predicated region
      $region9: #{encoder_forward.12} parent=5 // pred_check
        _
      $region10: #{encoder_forward.12} parent=5 // pred_check_branch
        %116 = sbr.rel (%p113) target = $region12
      $region11: #{encoder_forward.12} parent=5 // pred_region
        %s117 = ssub.s32 %s9, 1
        // Predicated region
        $region13: #{encoder_forward.12} parent=11 // pred_check
          %p118 = pneg %p30
        $region14: #{encoder_forward.12} parent=11 // pred_check_branch
          %120 = sbr.rel (%p118) target = $region16
        $region15: #{encoder_forward.12} parent=11 // pred_region
          _
        $region16: #{encoder_forward.12} parent=11 // pred_fallthru
          _
        // Predicated region
        $region17: #{encoder_forward.12} parent=11 // pred_check
          %p121 = pneg %p77
        $region18: #{encoder_forward.12} parent=11 // pred_check_branch
          %123 = sbr.rel (%p121) target = $region20
        $region19: #{encoder_forward.12} parent=11 // pred_region
          _
        $region20: #{encoder_forward.12} parent=11 // pred_fallthru
          _
      $region12: #{encoder_forward.12} parent=5 // pred_fallthru
        _
      %p124 = scmp.lt.s32.totalorder %s9, 4
      // Predicated region
      $region21: #{encoder_forward.12} parent=5 // pred_check
        %p125 = pneg %p124
      $region22: #{encoder_forward.12} parent=5 // pred_check_branch
        %127 = sbr.rel (%p125) target = $region24
      $region23: #{encoder_forward.12} parent=5 // pred_region
        // Predicated region
        $region25: #{encoder_forward.12} parent=23 // pred_check
          %p128 = pneg %p50
        $region26: #{encoder_forward.12} parent=23 // pred_check_branch
          %130 = sbr.rel (%p128) target = $region28
        $region27: #{encoder_forward.12} parent=23 // pred_region
          %s131 = sand.u32 %s40, 1
          %s132 = sand.u32 %s40, 1
          %s133 = smul.addr %s132, 96
          %s134 = scalar_lea.vmem [#allocation2], %s133
          %s135 = smul.u32 4, %s9
          %s136 = smul.addr %s135, 4
          %s137 = scalar_lea.vmem %s1, %s136
          // Predicated region
          $region29: #{encoder_forward.12} parent=27 // pred_check
            _
          $region30: #{encoder_forward.12} parent=27 // pred_check_branch
            %139 = sbr.rel (0) target = $region32
          $region31: #{encoder_forward.12} parent=27 // pred_region
            // Predicated region
            $region33: #{encoder_forward.12} parent=31 // pred_check
              _
            $region34: #{encoder_forward.12} parent=31 // pred_check_branch
              %141 = sbr.rel (0) target = $region36
            $region35: #{encoder_forward.12} parent=31 // pred_region
              loop: start=0, step=1, limit=1
              $region37: #{encoder_forward.12} parent=35 // loop_pre_header
                _
              $region38: #{encoder_forward.12} parent=35 // loop_header
                %s143 = sphi 0, %s147
                %p144 = scmp.ge.s32.totalorder %s143, 1
                %s148 = sphi %s137, %s137
                %s149 = sphi %s134, %s134
              $region39: #{encoder_forward.12} parent=35 // loop_header_branch
                %146 = sbr.rel (%p144) target = $region43
              $region40: #{encoder_forward.12} parent=35 // loop_body
                %v150 = vld [vmem:[%s148] sm:$0xff]
                %151 = vst [vmem:[%s149] sm:$0xff] %v150
                %v152 = vld [vmem:[%s148 + $0x8] sm:$0xff]
                %153 = vst [vmem:[%s149 + $0x8] sm:$0xff] %v152
                %v154 = vld [vmem:[%s148 + $0x40] sm:$0xff]
                %155 = vst [vmem:[%s149 + $0x10] sm:$0xff] %v154
                %v156 = vld [vmem:[%s148 + $0x48] sm:$0xff]
                %157 = vst [vmem:[%s149 + $0x18] sm:$0xff] %v156
                %v158 = vld [vmem:[%s148 + $0x80] sm:$0xff]
                %159 = vst [vmem:[%s149 + $0x20] sm:$0xff] %v158
                %v160 = vld [vmem:[%s148 + $0x88] sm:$0xff]
                %161 = vst [vmem:[%s149 + $0x28] sm:$0xff] %v160
                %v162 = vld [vmem:[%s148 + $0xc0] sm:$0xff]
                %163 = vst [vmem:[%s149 + $0x30] sm:$0xff] %v162
                %v164 = vld [vmem:[%s148 + $0xc8] sm:$0xff]
                %165 = vst [vmem:[%s149 + $0x38] sm:$0xff] %v164
                %v166 = vld [vmem:[%s148 + $0x100] sm:$0xff]
                %167 = vst [vmem:[%s149 + $0x40] sm:$0xff] %v166
                %v168 = vld [vmem:[%s148 + $0x108] sm:$0xff]
                %169 = vst [vmem:[%s149 + $0x48] sm:$0xff] %v168
                %v170 = vld [vmem:[%s148 + $0x140] sm:$0xff]
                %171 = vst [vmem:[%s149 + $0x50] sm:$0xff] %v170
                %v172 = vld [vmem:[%s148 + $0x148] sm:$0xff]
                %173 = vst [vmem:[%s149 + $0x58] sm:$0xff] %v172
              $region41: #{encoder_forward.12} parent=35 // loop_footer
                %s147 = sadd.s32 1, %s143
              $region42: #{encoder_forward.12} parent=35 // loop_footer_branch
                %142 = sbr.rel target = $region38
              $region43: #{encoder_forward.12} parent=35 // loop_exit
                _
            $region36: #{encoder_forward.12} parent=31 // pred_fallthru
              _
            // Predicated region
            $region44: #{encoder_forward.12} parent=31 // pred_check
              _
            $region45: #{encoder_forward.12} parent=31 // pred_check_branch
              %175 = sbr.rel target = $region47
            $region46: #{encoder_forward.12} parent=31 // pred_region
              _
            $region47: #{encoder_forward.12} parent=31 // pred_fallthru
              _
          $region32: #{encoder_forward.12} parent=27 // pred_fallthru
            _
          %176 = vnop
        $region28: #{encoder_forward.12} parent=23 // pred_fallthru
          _
      $region24: #{encoder_forward.12} parent=5 // pred_fallthru
        _
      %p177 = scmp.le.s32.totalorder 1, %s9
      %p178 = scmp.lt.s32.totalorder %s9, 5
      %p179 = pnand %p177, %p178
      %p180 = pneg %p179
      // Predicated region
      $region48: #{encoder_forward.12} parent=5 // pred_check
        _
      $region49: #{encoder_forward.12} parent=5 // pred_check_branch
        %182 = sbr.rel (%p179) target = $region51
      $region50: #{encoder_forward.12} parent=5 // pred_region
        %s183 = ssub.s32 %s9, 1
        %s184 = sand.u32 %s43, 1
        %s185 = sand.u32 %s43, 1
        %s186 = smul.addr %s185, 96
        %s187 = scalar_lea.vmem [#allocation2], %s186
        // Predicated region
        $region52: #{encoder_forward.12} parent=50 // pred_check
          %p188 = pneg %p56
        $region53: #{encoder_forward.12} parent=50 // pred_check_branch
          %190 = sbr.rel (%p188) target = $region55
        $region54: #{encoder_forward.12} parent=50 // pred_region
          _
        $region55: #{encoder_forward.12} parent=50 // pred_fallthru
          _
        %p191 = pneg %p30
        %p192 = pneg %p27
        %s193 = sand.u32 %s43, 1
        %s194 = sand.u32 %s43, 1
        %s195 = smul.addr %s194, 96
        %s196 = scalar_lea.vmem [#allocation2], %s195
        %p197 = pneg %p56
        %p198 = pneg %p53
        %p199 = pneg %p77
        %p200 = pneg %p74
        %p201 = pneg %p103
        %p202 = pneg %p100
        %s203 = smul.u32 4, %s14
        %p204 = scmp.lt.s32.totalorder %s203, 15
        %s205 = scalar_select %p204, %s203, 15
        %s206 = smul.addr %s205, 4
        %s207 = scalar_lea.vmem %s3, %s206
        %s208 = smul.u32 4, %s14
        %s209 = smul.u32 4, %s14
        %p210 = scmp.lt.s32.totalorder %s209, 15
        %s211 = scalar_select %p210, %s209, 15
        %s212 = smul.addr %s211, 4
        %s213 = scalar_lea.vmem %s3, %s212
        %s214 = smul.u32 4, %s14
        %v216 = vld [vmem:[%s0] sm:$0x3]
        %v217 = vld [vmem:[%s187] sm:$0xff]
        %v218 = vld [vmem:[%s187 + $0x8] sm:$0xff]
        %v219 = vld [vmem:[%s187 + $0x10] sm:$0xff]
        %v220 = vld [vmem:[%s187 + $0x18] sm:$0xff]
        %v221 = vld [vmem:[%s187 + $0x20] sm:$0xff]
        %v222 = vld [vmem:[%s187 + $0x28] sm:$0xff]
        %v223 = vld [vmem:[%s187 + $0x30] sm:$0xff]
        %v224 = vld [vmem:[%s187 + $0x38] sm:$0xff]
        %v225 = vld [vmem:[%s187 + $0x40] sm:$0xff]
        %v226 = vld [vmem:[%s187 + $0x48] sm:$0xff]
        %v227 = vld [vmem:[%s187 + $0x50] sm:$0xff]
        %v228 = vld [vmem:[%s187 + $0x58] sm:$0xff]
        %v229 = vld [vmem:[%s2] sm:$0xf]
        %231 = vset.pattern.permute.xlu0 0
        %232 = vperm.xlu0 %231, %v229
        %v233 = vpop.permute.xlu0 %232
        %v247 = vunpack.c.l.b16 %v217
        %v248 = vunpack.c.h.b16 %v217
        %v249 = vunpack.c.l.b16 %v218
        %v250 = vunpack.c.h.b16 %v218
        %v251 = vunpack.c.l.b16 %v219
        %v252 = vunpack.c.h.b16 %v219
        %v253 = vunpack.c.l.b16 %v220
        %v254 = vunpack.c.h.b16 %v220
        %v255 = vunpack.c.l.b16 %v221
        %v256 = vunpack.c.h.b16 %v221
        %v257 = vunpack.c.l.b16 %v222
        %v258 = vunpack.c.h.b16 %v222
        %v259 = vunpack.c.l.b16 %v223
        %v260 = vunpack.c.h.b16 %v223
        %v261 = vunpack.c.l.b16 %v224
        %v262 = vunpack.c.h.b16 %v224
        %v263 = vunpack.c.l.b16 %v225
        %v264 = vunpack.c.h.b16 %v225
        %v265 = vunpack.c.l.b16 %v226
        %v266 = vunpack.c.h.b16 %v226
        %v267 = vunpack.c.l.b16 %v227
        %v268 = vunpack.c.h.b16 %v227
        %v269 = vunpack.c.l.b16 %v228
        %v270 = vunpack.c.h.b16 %v228
        %v271 = vpack.c.b16 %v251, %v247
        %v272 = vpack.c.b16 %v252, %v248
        %v273 = vpack.c.b16 %v253, %v249
        %v274 = vpack.c.b16 %v254, %v250
        %v275 = vpack.c.b16 %v259, %v255
        %v276 = vpack.c.b16 %v260, %v256
        %v277 = vpack.c.b16 %v261, %v257
        %v278 = vpack.c.b16 %v262, %v258
        %v279 = vpack.c.b16 %v267, %v263
        %v280 = vpack.c.b16 %v268, %v264
        %v281 = vpack.c.b16 %v269, %v265
        %v282 = vpack.c.b16 %v270, %v266
        %vm295 = vcmask 392192
        %v297 = vsel %vm295, %v216, 0
        %299 = vmatprep.subr.bf16.mxu0 0
        %300 = vmatpush1.bf16.msra.mxu0 0
        %301 = vmatprep.subr.bf16.mxu0 0
        %302 = vmatpush1.bf16.msra.mxu0 0
        %303 = vmatprep.subr.bf16.mxu0 0
        %304 = vmatpush1.bf16.msra.mxu0 0
        %305 = vmatprep.subr.bf16.mxu0 0
        %306 = vmatpush1.bf16.msra.mxu0 0
        %307 = vmatprep.subr.bf16.mxu0 0
        %308 = vmatpush1.bf16.msra.mxu0 0
        %309 = vmatprep.subr.bf16.mxu0 %v280
        %310 = vmatpush1.bf16.msra.mxu0 %v279
        %311 = vmatprep.subr.bf16.mxu0 %v276
        %312 = vmatpush1.bf16.msra.mxu0 %v275
        %313 = vmatprep.subr.bf16.mxu0 %v272
        %314 = vmatpush1.bf16.msra.mxu0 %v271
        %315 = vmatprep.subr.bf16.mxu0 0
        %316 = vmatpush2.bf16.msra.mxu0 0
        %317 = vmatprep.subr.bf16.mxu0 0
        %318 = vmatpush2.bf16.msra.mxu0 0
        %319 = vmatprep.subr.bf16.mxu0 0
        %320 = vmatpush2.bf16.msra.mxu0 0
        %321 = vmatprep.subr.bf16.mxu0 0
        %322 = vmatpush2.bf16.msra.mxu0 0
        %323 = vmatprep.subr.bf16.mxu0 0
        %324 = vmatpush2.bf16.msra.mxu0 0
        %325 = vmatprep.subr.bf16.mxu0 0
        %326 = vmatpush2.bf16.msra.mxu0 0
        %327 = vmatprep.subr.bf16.mxu0 0
        %328 = vmatpush2.bf16.msra.mxu0 0
        %329 = vmatprep.subr.bf16.mxu0 0
        %330 = vmatpush2.bf16.msra.mxu0 0
        %331 = vmatprep.mubr.bf16.mxu0 0
        %332 = vmatmul.mubr.bf16.gmra.mxu0 %v297
        %v333 = vpop.f32.mrf.mxu0
        %v334 = vadd.f32 %v233, %v333
        %v335 = vpop.f32.mrf.mxu0
        %v336 = vadd.f32 %v233, %v335
        %v337 = vpop.f32.mrf.mxu0
        %v338 = vpop.f32.mrf.mxu0
        %339 = vdwg.mxu0
        %340 = vmatprep.subr.bf16.mxu0 0
        %341 = vmatpush1.bf16.msra.mxu0 0
        %342 = vmatprep.subr.bf16.mxu0 0
        %343 = vmatpush1.bf16.msra.mxu0 0
        %344 = vmatprep.subr.bf16.mxu0 0
        %345 = vmatpush1.bf16.msra.mxu0 0
        %346 = vmatprep.subr.bf16.mxu0 0
        %347 = vmatpush1.bf16.msra.mxu0 0
        %348 = vmatprep.subr.bf16.mxu0 0
        %349 = vmatpush1.bf16.msra.mxu0 0
        %350 = vmatprep.subr.bf16.mxu0 %v282
        %351 = vmatpush1.bf16.msra.mxu0 %v281
        %352 = vmatprep.subr.bf16.mxu0 %v278
        %353 = vmatpush1.bf16.msra.mxu0 %v277
        %354 = vmatprep.subr.bf16.mxu0 %v274
        %355 = vmatpush1.bf16.msra.mxu0 %v273
        %356 = vmatprep.subr.bf16.mxu0 0
        %357 = vmatpush2.bf16.msra.mxu0 0
        %358 = vmatprep.subr.bf16.mxu0 0
        %359 = vmatpush2.bf16.msra.mxu0 0
        %360 = vmatprep.subr.bf16.mxu0 0
        %361 = vmatpush2.bf16.msra.mxu0 0
        %362 = vmatprep.subr.bf16.mxu0 0
        %363 = vmatpush2.bf16.msra.mxu0 0
        %364 = vmatprep.subr.bf16.mxu0 0
        %365 = vmatpush2.bf16.msra.mxu0 0
        %366 = vmatprep.subr.bf16.mxu0 0
        %367 = vmatpush2.bf16.msra.mxu0 0
        %368 = vmatprep.subr.bf16.mxu0 0
        %369 = vmatpush2.bf16.msra.mxu0 0
        %370 = vmatprep.subr.bf16.mxu0 0
        %371 = vmatpush2.bf16.msra.mxu0 0
        %372 = vmatprep.mubr.bf16.mxu0 0
        %373 = vmatmul.mubr.bf16.gmra.mxu0 %v297
        %v374 = vpop.f32.mrf.mxu0
        %v375 = vadd.f32 %v233, %v374
        %v376 = vpop.f32.mrf.mxu0
        %v377 = vadd.f32 %v233, %v376
        %v378 = vpop.f32.mrf.mxu0
        %v379 = vpop.f32.mrf.mxu0
        %380 = vdwg.mxu0
        %v381 = vmax.f32 %v334, 0.0
        %v382 = vmax.f32 %v336, 0.0
        %v383 = vmax.f32 %v375, 0.0
        %v384 = vmax.f32 %v377, 0.0
        %v389 = vcombine.low %v381, %v382
        %v390 = vcombine.low %v383, %v384
        %393 = vst [vmem:[%s213] sm:$0xff] %v389
        %394 = vst [vmem:[%s213 + $0x8] sm:$0xff] %v390
        %s395 = smul.u32 4, %s14
        %p396 = scmp.lt.s32.totalorder %s395, 15
        %s397 = scalar_select %p396, %s395, 15
        %s398 = smul.addr %s397, 4
        %s399 = scalar_lea.vmem %s3, %s398
        // Predicated region
        $region56: #{encoder_forward.12} parent=50 // pred_check
          %p400 = pneg %p100
        $region57: #{encoder_forward.12} parent=50 // pred_check_branch
          %402 = sbr.rel (%p400) target = $region59
        $region58: #{encoder_forward.12} parent=50 // pred_region
          %s403 = smul.u32 4, %s14
        $region59: #{encoder_forward.12} parent=50 // pred_fallthru
          _
      $region51: #{encoder_forward.12} parent=5 // pred_fallthru
        _
      %p404 = scmp.le.s32.totalorder 2, %s9
      // Predicated region
      $region60: #{encoder_forward.12} parent=5 // pred_check
        %p405 = pneg %p404
      $region61: #{encoder_forward.12} parent=5 // pred_check_branch
        %407 = sbr.rel (%p405) target = $region63
      $region62: #{encoder_forward.12} parent=5 // pred_region
        %s408 = ssub.s32 %s9, 2
        // Predicated region
        $region64: #{encoder_forward.12} parent=62 // pred_check
          %p409 = pneg %p106
        $region65: #{encoder_forward.12} parent=62 // pred_check_branch
          %411 = sbr.rel (%p409) target = $region67
        $region66: #{encoder_forward.12} parent=62 // pred_region
          %s412 = smul.u32 4, %s15
          %p413 = scmp.lt.s32.totalorder %s412, 15
          %s414 = scalar_select %p413, %s412, 15
          %s415 = smul.addr %s414, 4
          %s416 = scalar_lea.vmem %s3, %s415
        $region67: #{encoder_forward.12} parent=62 // pred_fallthru
          _
      $region63: #{encoder_forward.12} parent=5 // pred_fallthru
        _
    $region6: #{encoder_forward.12} parent=1 // loop_footer
      %s13 = sadd.s32 1, %s9
    $region7: #{encoder_forward.12} parent=1 // loop_footer_branch
      %8 = sbr.rel target = $region3
    $region8: #{encoder_forward.12} parent=1 // loop_exit
      _

// kernel: encoder_forward.13
$region0: #{encoder_forward.13}
  #allocation0 [shape = 'u32[]', space=smem, size = 0x4, offset = 0x4, fixed_abs, tag = 'smem constant byte address 0x4 - core index']
  #allocation1 [shape = 'u32[144,128]{1,0:T(1,128)}', space=vmem, size = 0x12000, scoped, tag = 'internal scratch']
  %s0 = inlined_call_operand.vmem [shape: bf16[8,48], index: 0, kind: input, shape index: {}]
  %s1 = inlined_call_operand.vmem [shape: bf16[48,2048], index: 1, kind: input, shape index: {}]
  %s2 = inlined_call_operand.vmem [shape: f32[8,1], index: 2, kind: input, shape index: {}]
  %s3 = inlined_call_operand.vmem [shape: f32[8,2048], index: 3, kind: output, shape index: {}]
  %s4 = sld [smem:[#allocation0]]
  $region68: #{encoder_forward.13} parent=0
    _
  %s6 = ssub.s32 1, %s4
  %s7 = scalar_select 0, %s6, %s4
  $region1: #{encoder_forward.13} parent=0
    #allocation2 [shape = 'u8[98304]{0}', space=vmem, size = 0x18000, scoped, tag = 'input window, operand 1']
    loop: start=0, step=1, limit=6
    $region2: #{encoder_forward.13} parent=1 // loop_pre_header
      _
    $region3: #{encoder_forward.13} parent=1 // loop_header
      %s9 = sphi 0, %s13
      %p10 = scmp.ge.s32.totalorder %s9, 6
      %s17 = sphi 0, %s17
      %s19 = sphi 0, %s17
      %s20 = sphi 0, %s19
      %s34 = sphi 0, %s20
      %s40 = sphi 0, %s42
      %s43 = sphi 0, %s40
      %s44 = sphi 0, %s43
      %s60 = sphi 0, %s44
      %s64 = sphi 0, %s64
      %s66 = sphi 0, %s64
      %s67 = sphi 0, %s66
      %s81 = sphi 0, %s67
      %s87 = sphi 0, %s89
      %s90 = sphi 0, %s87
      %s91 = sphi 0, %s90
      %s107 = sphi 0, %s91
    $region4: #{encoder_forward.13} parent=1 // loop_header_branch
      %12 = sbr.rel (%p10) target = $region8
    $region5: #{encoder_forward.13} parent=1 // loop_body
      %s14 = ssub.s32 %s9, 1
      %s15 = ssub.s32 %s9, 2
      %s16 = sadd.s32 %s9, 1
      %s18 = sadd.s32 %s17, 1
      %p21 = scmp.eq.s32.totalorder %s9, 3
      %p22 = scmp.ne.s32.totalorder %s17, %s19
      %p23 = scmp.eq.s32.totalorder %s9, 0
      %p24 = por %p22, %p23
      %p25 = scmp.ne.s32.totalorder %s17, %s19
      %p26 = scmp.eq.s32.totalorder %s14, 3
      %p27 = por %p25, %p26
      %p28 = scmp.ne.s32.totalorder %s19, %s20
      %p29 = scmp.eq.s32.totalorder %s14, 0
      %p30 = por %p28, %p29
      %p31 = scmp.ne.s32.totalorder %s19, %s20
      %p32 = scmp.eq.s32.totalorder %s15, 3
      %p33 = por %p31, %p32
      %p35 = scmp.ne.s32.totalorder %s20, %s34
      %p36 = scmp.eq.s32.totalorder %s15, 0
      %p37 = por %p35, %p36
      %s38 = ssub.s32 %s9, %s16
      %p39 = scmp.eq.s32.totalorder %s38, 0
      %s41 = sadd.s32 %s40, 1
      %s42 = scalar_select %p39, %s40, %s41
      %p45 = pneg %p39
      %p46 = scmp.eq.s32.totalorder %s9, 3
      %p47 = por %p45, %p46
      %p48 = scmp.ne.s32.totalorder %s40, %s43
      %p49 = scmp.eq.s32.totalorder %s9, 0
      %p50 = por %p48, %p49
      %p51 = scmp.ne.s32.totalorder %s40, %s43
      %p52 = scmp.eq.s32.totalorder %s14, 3
      %p53 = por %p51, %p52
      %p54 = scmp.ne.s32.totalorder %s43, %s44
      %p55 = scmp.eq.s32.totalorder %s14, 0
      %p56 = por %p54, %p55
      %p57 = scmp.ne.s32.totalorder %s43, %s44
      %p58 = scmp.eq.s32.totalorder %s15, 3
      %p59 = por %p57, %p58
      %p61 = scmp.ne.s32.totalorder %s44, %s60
      %p62 = scmp.eq.s32.totalorder %s15, 0
      %p63 = por %p61, %p62
      %s65 = sadd.s32 %s64, 1
      %p68 = scmp.eq.s32.totalorder %s9, 3
      %p69 = scmp.ne.s32.totalorder %s64, %s66
      %p70 = scmp.eq.s32.totalorder %s9, 0
      %p71 = por %p69, %p70
      %p72 = scmp.ne.s32.totalorder %s64, %s66
      %p73 = scmp.eq.s32.totalorder %s14, 3
      %p74 = por %p72, %p73
      %p75 = scmp.ne.s32.totalorder %s66, %s67
      %p76 = scmp.eq.s32.totalorder %s14, 0
      %p77 = por %p75, %p76
      %p78 = scmp.ne.s32.totalorder %s66, %s67
      %p79 = scmp.eq.s32.totalorder %s15, 3
      %p80 = por %p78, %p79
      %p82 = scmp.ne.s32.totalorder %s67, %s81
      %p83 = scmp.eq.s32.totalorder %s15, 0
      %p84 = por %p82, %p83
      %s85 = ssub.s32 %s9, %s16
      %p86 = scmp.eq.s32.totalorder %s85, 0
      %s88 = sadd.s32 %s87, 1
      %s89 = scalar_select %p86, %s87, %s88
      %p92 = pneg %p86
      %p93 = scmp.eq.s32.totalorder %s9, 3
      %p94 = por %p92, %p93
      %p95 = scmp.ne.s32.totalorder %s87, %s90
      %p96 = scmp.eq.s32.totalorder %s9, 0
      %p97 = por %p95, %p96
      %p98 = scmp.ne.s32.totalorder %s87, %s90
      %p99 = scmp.eq.s32.totalorder %s14, 3
      %p100 = por %p98, %p99
      %p101 = scmp.ne.s32.totalorder %s90, %s91
      %p102 = scmp.eq.s32.totalorder %s14, 0
      %p103 = por %p101, %p102
      %p104 = scmp.ne.s32.totalorder %s90, %s91
      %p105 = scmp.eq.s32.totalorder %s15, 3
      %p106 = por %p104, %p105
      %p108 = scmp.ne.s32.totalorder %s91, %s107
      %p109 = scmp.eq.s32.totalorder %s15, 0
      %p110 = por %p108, %p109
      %p111 = scmp.le.s32.totalorder 1, %s9
      %p112 = scmp.lt.s32.totalorder %s9, 5
      %p113 = pnand %p111, %p112
      %p114 = pneg %p113
      // Predicated region
      $region9: #{encoder_forward.13} parent=5 // pred_check
        _
      $region10: #{encoder_forward.13} parent=5 // pred_check_branch
        %116 = sbr.rel (%p113) target = $region12
      $region11: #{encoder_forward.13} parent=5 // pred_region
        %s117 = ssub.s32 %s9, 1
        // Predicated region
        $region13: #{encoder_forward.13} parent=11 // pred_check
          %p118 = pneg %p30
        $region14: #{encoder_forward.13} parent=11 // pred_check_branch
          %120 = sbr.rel (%p118) target = $region16
        $region15: #{encoder_forward.13} parent=11 // pred_region
          _
        $region16: #{encoder_forward.13} parent=11 // pred_fallthru
          _
        // Predicated region
        $region17: #{encoder_forward.13} parent=11 // pred_check
          %p121 = pneg %p77
        $region18: #{encoder_forward.13} parent=11 // pred_check_branch
          %123 = sbr.rel (%p121) target = $region20
        $region19: #{encoder_forward.13} parent=11 // pred_region
          _
        $region20: #{encoder_forward.13} parent=11 // pred_fallthru
          _
      $region12: #{encoder_forward.13} parent=5 // pred_fallthru
        _
      %p124 = scmp.lt.s32.totalorder %s9, 4
      // Predicated region
      $region21: #{encoder_forward.13} parent=5 // pred_check
        %p125 = pneg %p124
      $region22: #{encoder_forward.13} parent=5 // pred_check_branch
        %127 = sbr.rel (%p125) target = $region24
      $region23: #{encoder_forward.13} parent=5 // pred_region
        // Predicated region
        $region25: #{encoder_forward.13} parent=23 // pred_check
          %p128 = pneg %p50
        $region26: #{encoder_forward.13} parent=23 // pred_check_branch
          %130 = sbr.rel (%p128) target = $region28
        $region27: #{encoder_forward.13} parent=23 // pred_region
          %s131 = sand.u32 %s40, 1
          %s132 = sand.u32 %s40, 1
          %s133 = smul.addr %s132, 96
          %s134 = scalar_lea.vmem [#allocation2], %s133
          %s135 = smul.u32 4, %s9
          %s136 = smul.addr %s135, 4
          %s137 = scalar_lea.vmem %s1, %s136
          // Predicated region
          $region29: #{encoder_forward.13} parent=27 // pred_check
            _
          $region30: #{encoder_forward.13} parent=27 // pred_check_branch
            %139 = sbr.rel (0) target = $region32
          $region31: #{encoder_forward.13} parent=27 // pred_region
            // Predicated region
            $region33: #{encoder_forward.13} parent=31 // pred_check
              _
            $region34: #{encoder_forward.13} parent=31 // pred_check_branch
              %141 = sbr.rel (0) target = $region36
            $region35: #{encoder_forward.13} parent=31 // pred_region
              loop: start=0, step=1, limit=1
              $region37: #{encoder_forward.13} parent=35 // loop_pre_header
                _
              $region38: #{encoder_forward.13} parent=35 // loop_header
                %s143 = sphi 0, %s147
                %p144 = scmp.ge.s32.totalorder %s143, 1
                %s148 = sphi %s137, %s137
                %s149 = sphi %s134, %s134
              $region39: #{encoder_forward.13} parent=35 // loop_header_branch
                %146 = sbr.rel (%p144) target = $region43
              $region40: #{encoder_forward.13} parent=35 // loop_body
                %v150 = vld [vmem:[%s148] sm:$0xff]
                %151 = vst [vmem:[%s149] sm:$0xff] %v150
                %v152 = vld [vmem:[%s148 + $0x8] sm:$0xff]
                %153 = vst [vmem:[%s149 + $0x8] sm:$0xff] %v152
                %v154 = vld [vmem:[%s148 + $0x40] sm:$0xff]
                %155 = vst [vmem:[%s149 + $0x10] sm:$0xff] %v154
                %v156 = vld [vmem:[%s148 + $0x48] sm:$0xff]
                %157 = vst [vmem:[%s149 + $0x18] sm:$0xff] %v156
                %v158 = vld [vmem:[%s148 + $0x80] sm:$0xff]
                %159 = vst [vmem:[%s149 + $0x20] sm:$0xff] %v158
                %v160 = vld [vmem:[%s148 + $0x88] sm:$0xff]
                %161 = vst [vmem:[%s149 + $0x28] sm:$0xff] %v160
                %v162 = vld [vmem:[%s148 + $0xc0] sm:$0xff]
                %163 = vst [vmem:[%s149 + $0x30] sm:$0xff] %v162
                %v164 = vld [vmem:[%s148 + $0xc8] sm:$0xff]
                %165 = vst [vmem:[%s149 + $0x38] sm:$0xff] %v164
                %v166 = vld [vmem:[%s148 + $0x100] sm:$0xff]
                %167 = vst [vmem:[%s149 + $0x40] sm:$0xff] %v166
                %v168 = vld [vmem:[%s148 + $0x108] sm:$0xff]
                %169 = vst [vmem:[%s149 + $0x48] sm:$0xff] %v168
                %v170 = vld [vmem:[%s148 + $0x140] sm:$0xff]
                %171 = vst [vmem:[%s149 + $0x50] sm:$0xff] %v170
                %v172 = vld [vmem:[%s148 + $0x148] sm:$0xff]
                %173 = vst [vmem:[%s149 + $0x58] sm:$0xff] %v172
              $region41: #{encoder_forward.13} parent=35 // loop_footer
                %s147 = sadd.s32 1, %s143
              $region42: #{encoder_forward.13} parent=35 // loop_footer_branch
                %142 = sbr.rel target = $region38
              $region43: #{encoder_forward.13} parent=35 // loop_exit
                _
            $region36: #{encoder_forward.13} parent=31 // pred_fallthru
              _
            // Predicated region
            $region44: #{encoder_forward.13} parent=31 // pred_check
              _
            $region45: #{encoder_forward.13} parent=31 // pred_check_branch
              %175 = sbr.rel target = $region47
            $region46: #{encoder_forward.13} parent=31 // pred_region
              _
            $region47: #{encoder_forward.13} parent=31 // pred_fallthru
              _
          $region32: #{encoder_forward.13} parent=27 // pred_fallthru
            _
          %176 = vnop
        $region28: #{encoder_forward.13} parent=23 // pred_fallthru
          _
      $region24: #{encoder_forward.13} parent=5 // pred_fallthru
        _
      %p177 = scmp.le.s32.totalorder 1, %s9
      %p178 = scmp.lt.s32.totalorder %s9, 5
      %p179 = pnand %p177, %p178
      %p180 = pneg %p179
      // Predicated region
      $region48: #{encoder_forward.13} parent=5 // pred_check
        _
      $region49: #{encoder_forward.13} parent=5 // pred_check_branch
        %182 = sbr.rel (%p179) target = $region51
      $region50: #{encoder_forward.13} parent=5 // pred_region
        %s183 = ssub.s32 %s9, 1
        %s184 = sand.u32 %s43, 1
        %s185 = sand.u32 %s43, 1
        %s186 = smul.addr %s185, 96
        %s187 = scalar_lea.vmem [#allocation2], %s186
        // Predicated region
        $region52: #{encoder_forward.13} parent=50 // pred_check
          %p188 = pneg %p56
        $region53: #{encoder_forward.13} parent=50 // pred_check_branch
          %190 = sbr.rel (%p188) target = $region55
        $region54: #{encoder_forward.13} parent=50 // pred_region
          _
        $region55: #{encoder_forward.13} parent=50 // pred_fallthru
          _
        %p191 = pneg %p30
        %p192 = pneg %p27
        %s193 = sand.u32 %s43, 1
        %s194 = sand.u32 %s43, 1
        %s195 = smul.addr %s194, 96
        %s196 = scalar_lea.vmem [#allocation2], %s195
        %p197 = pneg %p56
        %p198 = pneg %p53
        %p199 = pneg %p77
        %p200 = pneg %p74
        %p201 = pneg %p103
        %p202 = pneg %p100
        %s203 = smul.u32 4, %s14
        %p204 = scmp.lt.s32.totalorder %s203, 15
        %s205 = scalar_select %p204, %s203, 15
        %s206 = smul.addr %s205, 8
        %s207 = scalar_lea.vmem %s3, %s206
        %s208 = smul.u32 4, %s14
        %s209 = smul.u32 4, %s14
        %p210 = scmp.lt.s32.totalorder %s209, 15
        %s211 = scalar_select %p210, %s209, 15
        %s212 = smul.addr %s211, 8
        %s213 = scalar_lea.vmem %s3, %s212
        %s214 = smul.u32 4, %s14
        %v216 = vld [vmem:[%s0] sm:$0xf]
        %v217 = vld [vmem:[%s187] sm:$0xff]
        %v218 = vld [vmem:[%s187 + $0x8] sm:$0xff]
        %v219 = vld [vmem:[%s187 + $0x10] sm:$0xff]
        %v220 = vld [vmem:[%s187 + $0x18] sm:$0xff]
        %v221 = vld [vmem:[%s187 + $0x20] sm:$0xff]
        %v222 = vld [vmem:[%s187 + $0x28] sm:$0xff]
        %v223 = vld [vmem:[%s187 + $0x30] sm:$0xff]
        %v224 = vld [vmem:[%s187 + $0x38] sm:$0xff]
        %v225 = vld [vmem:[%s187 + $0x40] sm:$0xff]
        %v226 = vld [vmem:[%s187 + $0x48] sm:$0xff]
        %v227 = vld [vmem:[%s187 + $0x50] sm:$0xff]
        %v228 = vld [vmem:[%s187 + $0x58] sm:$0xff]
        %v229 = vld [vmem:[%s2] sm:$0xff]
        %231 = vset.pattern.permute.xlu0 0
        %232 = vperm.xlu0 %231, %v229
        %v233 = vpop.permute.xlu0 %232
        %v247 = vunpack.c.l.b16 %v217
        %v248 = vunpack.c.h.b16 %v217
        %v249 = vunpack.c.l.b16 %v218
        %v250 = vunpack.c.h.b16 %v218
        %v251 = vunpack.c.l.b16 %v219
        %v252 = vunpack.c.h.b16 %v219
        %v253 = vunpack.c.l.b16 %v220
        %v254 = vunpack.c.h.b16 %v220
        %v255 = vunpack.c.l.b16 %v221
        %v256 = vunpack.c.h.b16 %v221
        %v257 = vunpack.c.l.b16 %v222
        %v258 = vunpack.c.h.b16 %v222
        %v259 = vunpack.c.l.b16 %v223
        %v260 = vunpack.c.h.b16 %v223
        %v261 = vunpack.c.l.b16 %v224
        %v262 = vunpack.c.h.b16 %v224
        %v263 = vunpack.c.l.b16 %v225
        %v264 = vunpack.c.h.b16 %v225
        %v265 = vunpack.c.l.b16 %v226
        %v266 = vunpack.c.h.b16 %v226
        %v267 = vunpack.c.l.b16 %v227
        %v268 = vunpack.c.h.b16 %v227
        %v269 = vunpack.c.l.b16 %v228
        %v270 = vunpack.c.h.b16 %v228
        %v271 = vpack.c.b16 %v251, %v247
        %v272 = vpack.c.b16 %v252, %v248
        %v273 = vpack.c.b16 %v253, %v249
        %v274 = vpack.c.b16 %v254, %v250
        %v275 = vpack.c.b16 %v259, %v255
        %v276 = vpack.c.b16 %v260, %v256
        %v277 = vpack.c.b16 %v261, %v257
        %v278 = vpack.c.b16 %v262, %v258
        %v279 = vpack.c.b16 %v267, %v263
        %v280 = vpack.c.b16 %v268, %v264
        %v281 = vpack.c.b16 %v269, %v265
        %v282 = vpack.c.b16 %v270, %v266
        %vm295 = vcmask 392192
        %v297 = vsel %vm295, %v216, 0
        %299 = vmatprep.subr.bf16.mxu0 0
        %300 = vmatpush1.bf16.msra.mxu0 0
        %301 = vmatprep.subr.bf16.mxu0 0
        %302 = vmatpush1.bf16.msra.mxu0 0
        %303 = vmatprep.subr.bf16.mxu0 0
        %304 = vmatpush1.bf16.msra.mxu0 0
        %305 = vmatprep.subr.bf16.mxu0 0
        %306 = vmatpush1.bf16.msra.mxu0 0
        %307 = vmatprep.subr.bf16.mxu0 0
        %308 = vmatpush1.bf16.msra.mxu0 0
        %309 = vmatprep.subr.bf16.mxu0 %v280
        %310 = vmatpush1.bf16.msra.mxu0 %v279
        %311 = vmatprep.subr.bf16.mxu0 %v276
        %312 = vmatpush1.bf16.msra.mxu0 %v275
        %313 = vmatprep.subr.bf16.mxu0 %v272
        %314 = vmatpush1.bf16.msra.mxu0 %v271
        %315 = vmatprep.subr.bf16.mxu0 0
        %316 = vmatpush2.bf16.msra.mxu0 0
        %317 = vmatprep.subr.bf16.mxu0 0
        %318 = vmatpush2.bf16.msra.mxu0 0
        %319 = vmatprep.subr.bf16.mxu0 0
        %320 = vmatpush2.bf16.msra.mxu0 0
        %321 = vmatprep.subr.bf16.mxu0 0
        %322 = vmatpush2.bf16.msra.mxu0 0
        %323 = vmatprep.subr.bf16.mxu0 0
        %324 = vmatpush2.bf16.msra.mxu0 0
        %325 = vmatprep.subr.bf16.mxu0 0
        %326 = vmatpush2.bf16.msra.mxu0 0
        %327 = vmatprep.subr.bf16.mxu0 0
        %328 = vmatpush2.bf16.msra.mxu0 0
        %329 = vmatprep.subr.bf16.mxu0 0
        %330 = vmatpush2.bf16.msra.mxu0 0
        %331 = vmatprep.mubr.bf16.mxu0 0
        %332 = vmatmul.mubr.bf16.gmra.mxu0 %v297
        %v333 = vpop.f32.mrf.mxu0
        %v334 = vadd.f32 %v233, %v333
        %v335 = vpop.f32.mrf.mxu0
        %v336 = vadd.f32 %v233, %v335
        %v337 = vpop.f32.mrf.mxu0
        %v338 = vpop.f32.mrf.mxu0
        %339 = vdwg.mxu0
        %340 = vmatprep.subr.bf16.mxu0 0
        %341 = vmatpush1.bf16.msra.mxu0 0
        %342 = vmatprep.subr.bf16.mxu0 0
        %343 = vmatpush1.bf16.msra.mxu0 0
        %344 = vmatprep.subr.bf16.mxu0 0
        %345 = vmatpush1.bf16.msra.mxu0 0
        %346 = vmatprep.subr.bf16.mxu0 0
        %347 = vmatpush1.bf16.msra.mxu0 0
        %348 = vmatprep.subr.bf16.mxu0 0
        %349 = vmatpush1.bf16.msra.mxu0 0
        %350 = vmatprep.subr.bf16.mxu0 %v282
        %351 = vmatpush1.bf16.msra.mxu0 %v281
        %352 = vmatprep.subr.bf16.mxu0 %v278
        %353 = vmatpush1.bf16.msra.mxu0 %v277
        %354 = vmatprep.subr.bf16.mxu0 %v274
        %355 = vmatpush1.bf16.msra.mxu0 %v273
        %356 = vmatprep.subr.bf16.mxu0 0
        %357 = vmatpush2.bf16.msra.mxu0 0
        %358 = vmatprep.subr.bf16.mxu0 0
        %359 = vmatpush2.bf16.msra.mxu0 0
        %360 = vmatprep.subr.bf16.mxu0 0
        %361 = vmatpush2.bf16.msra.mxu0 0
        %362 = vmatprep.subr.bf16.mxu0 0
        %363 = vmatpush2.bf16.msra.mxu0 0
        %364 = vmatprep.subr.bf16.mxu0 0
        %365 = vmatpush2.bf16.msra.mxu0 0
        %366 = vmatprep.subr.bf16.mxu0 0
        %367 = vmatpush2.bf16.msra.mxu0 0
        %368 = vmatprep.subr.bf16.mxu0 0
        %369 = vmatpush2.bf16.msra.mxu0 0
        %370 = vmatprep.subr.bf16.mxu0 0
        %371 = vmatpush2.bf16.msra.mxu0 0
        %372 = vmatprep.mubr.bf16.mxu0 0
        %373 = vmatmul.mubr.bf16.gmra.mxu0 %v297
        %v374 = vpop.f32.mrf.mxu0
        %v375 = vadd.f32 %v233, %v374
        %v376 = vpop.f32.mrf.mxu0
        %v377 = vadd.f32 %v233, %v376
        %v378 = vpop.f32.mrf.mxu0
        %v379 = vpop.f32.mrf.mxu0
        %380 = vdwg.mxu0
        %v381 = vmax.f32 %v334, 0.0
        %v382 = vmax.f32 %v336, 0.0
        %v383 = vmax.f32 %v375, 0.0
        %v384 = vmax.f32 %v377, 0.0
        %385 = vst [vmem:[%s213] sm:$0xff] %v381
        %386 = vst [vmem:[%s213 + $0x8] sm:$0xff] %v382
        %387 = vst [vmem:[%s213 + $0x10] sm:$0xff] %v383
        %388 = vst [vmem:[%s213 + $0x18] sm:$0xff] %v384
        %s389 = smul.u32 4, %s14
        %p390 = scmp.lt.s32.totalorder %s389, 15
        %s391 = scalar_select %p390, %s389, 15
        %s392 = smul.addr %s391, 8
        %s393 = scalar_lea.vmem %s3, %s392
        // Predicated region
        $region56: #{encoder_forward.13} parent=50 // pred_check
          %p394 = pneg %p100
        $region57: #{encoder_forward.13} parent=50 // pred_check_branch
          %396 = sbr.rel (%p394) target = $region59
        $region58: #{encoder_forward.13} parent=50 // pred_region
          %s397 = smul.u32 4, %s14
        $region59: #{encoder_forward.13} parent=50 // pred_fallthru
          _
      $region51: #{encoder_forward.13} parent=5 // pred_fallthru
        _
      %p398 = scmp.le.s32.totalorder 2, %s9
      // Predicated region
      $region60: #{encoder_forward.13} parent=5 // pred_check
        %p399 = pneg %p398
      $region61: #{encoder_forward.13} parent=5 // pred_check_branch
        %401 = sbr.rel (%p399) target = $region63
      $region62: #{encoder_forward.13} parent=5 // pred_region
        %s402 = ssub.s32 %s9, 2
        // Predicated region
        $region64: #{encoder_forward.13} parent=62 // pred_check
          %p403 = pneg %p106
        $region65: #{encoder_forward.13} parent=62 // pred_check_branch
          %405 = sbr.rel (%p403) target = $region67
        $region66: #{encoder_forward.13} parent=62 // pred_region
          %s406 = smul.u32 4, %s15
          %p407 = scmp.lt.s32.totalorder %s406, 15
          %s408 = scalar_select %p407, %s406, 15
          %s409 = smul.addr %s408, 8
          %s410 = scalar_lea.vmem %s3, %s409
        $region67: #{encoder_forward.13} parent=62 // pred_fallthru
          _
      $region63: #{encoder_forward.13} parent=5 // pred_fallthru
        _
    $region6: #{encoder_forward.13} parent=1 // loop_footer
      %s13 = sadd.s32 1, %s9
    $region7: #{encoder_forward.13} parent=1 // loop_footer_branch
      %8 = sbr.rel target = $region3
    $region8: #{encoder_forward.13} parent=1 // loop_exit
      _

// kernel: encoder_forward.14
$region0: #{encoder_forward.14}
  #allocation0 [shape = 'u32[]', space=smem, size = 0x4, offset = 0x4, fixed_abs, tag = 'smem constant byte address 0x4 - core index']
  #allocation1 [shape = 'u32[144,128]{1,0:T(1,128)}', space=vmem, size = 0x12000, scoped, tag = 'internal scratch']
  %s0 = inlined_call_operand.vmem [shape: bf16[8,80], index: 0, kind: input, shape index: {}]
  %s1 = inlined_call_operand.vmem [shape: bf16[80,512], index: 1, kind: input, shape index: {}]
  %s2 = inlined_call_operand.vmem [shape: f32[8,1], index: 2, kind: input, shape index: {}]
  %s3 = inlined_call_operand.vmem [shape: f32[8,512], index: 3, kind: output, shape index: {}]
  %s4 = sld [smem:[#allocation0]]
  $region83: #{encoder_forward.14} parent=0
    _
  %s6 = ssub.s32 1, %s4
  %s7 = scalar_select 0, %s6, %s4
  $region1: #{encoder_forward.14} parent=0
    #allocation2 [shape = 'u8[81920]{0}', space=vmem, size = 0x14000, scoped, tag = 'input window, operand 1']
    loop: start=0, step=1, limit=4
    $region2: #{encoder_forward.14} parent=1 // loop_pre_header
      _
    $region3: #{encoder_forward.14} parent=1 // loop_header
      %s9 = sphi 0, %s13
      %p10 = scmp.ge.s32.totalorder %s9, 4
      %s17 = sphi 0, %s17
      %s19 = sphi 0, %s17
      %s20 = sphi 0, %s19
      %s34 = sphi 0, %s20
      %s40 = sphi 0, %s42
      %s43 = sphi 0, %s40
      %s44 = sphi 0, %s43
      %s60 = sphi 0, %s44
      %s64 = sphi 0, %s64
      %s66 = sphi 0, %s64
      %s67 = sphi 0, %s66
      %s81 = sphi 0, %s67
      %s87 = sphi 0, %s89
      %s90 = sphi 0, %s87
      %s91 = sphi 0, %s90
      %s107 = sphi 0, %s91
    $region4: #{encoder_forward.14} parent=1 // loop_header_branch
      %12 = sbr.rel (%p10) target = $region8
    $region5: #{encoder_forward.14} parent=1 // loop_body
      %s14 = ssub.s32 %s9, 1
      %s15 = ssub.s32 %s9, 2
      %s16 = sadd.s32 %s9, 1
      %s18 = sadd.s32 %s17, 1
      %p21 = scmp.eq.s32.totalorder %s9, 1
      %p22 = scmp.ne.s32.totalorder %s17, %s19
      %p23 = scmp.eq.s32.totalorder %s9, 0
      %p24 = por %p22, %p23
      %p25 = scmp.ne.s32.totalorder %s17, %s19
      %p26 = scmp.eq.s32.totalorder %s14, 1
      %p27 = por %p25, %p26
      %p28 = scmp.ne.s32.totalorder %s19, %s20
      %p29 = scmp.eq.s32.totalorder %s14, 0
      %p30 = por %p28, %p29
      %p31 = scmp.ne.s32.totalorder %s19, %s20
      %p32 = scmp.eq.s32.totalorder %s15, 1
      %p33 = por %p31, %p32
      %p35 = scmp.ne.s32.totalorder %s20, %s34
      %p36 = scmp.eq.s32.totalorder %s15, 0
      %p37 = por %p35, %p36
      %s38 = ssub.s32 %s9, %s16
      %p39 = scmp.eq.s32.totalorder %s38, 0
      %s41 = sadd.s32 %s40, 1
      %s42 = scalar_select %p39, %s40, %s41
      %p45 = pneg %p39
      %p46 = scmp.eq.s32.totalorder %s9, 1
      %p47 = por %p45, %p46
      %p48 = scmp.ne.s32.totalorder %s40, %s43
      %p49 = scmp.eq.s32.totalorder %s9, 0
      %p50 = por %p48, %p49
      %p51 = scmp.ne.s32.totalorder %s40, %s43
      %p52 = scmp.eq.s32.totalorder %s14, 1
      %p53 = por %p51, %p52
      %p54 = scmp.ne.s32.totalorder %s43, %s44
      %p55 = scmp.eq.s32.totalorder %s14, 0
      %p56 = por %p54, %p55
      %p57 = scmp.ne.s32.totalorder %s43, %s44
      %p58 = scmp.eq.s32.totalorder %s15, 1
      %p59 = por %p57, %p58
      %p61 = scmp.ne.s32.totalorder %s44, %s60
      %p62 = scmp.eq.s32.totalorder %s15, 0
      %p63 = por %p61, %p62
      %s65 = sadd.s32 %s64, 1
      %p68 = scmp.eq.s32.totalorder %s9, 1
      %p69 = scmp.ne.s32.totalorder %s64, %s66
      %p70 = scmp.eq.s32.totalorder %s9, 0
      %p71 = por %p69, %p70
      %p72 = scmp.ne.s32.totalorder %s64, %s66
      %p73 = scmp.eq.s32.totalorder %s14, 1
      %p74 = por %p72, %p73
      %p75 = scmp.ne.s32.totalorder %s66, %s67
      %p76 = scmp.eq.s32.totalorder %s14, 0
      %p77 = por %p75, %p76
      %p78 = scmp.ne.s32.totalorder %s66, %s67
      %p79 = scmp.eq.s32.totalorder %s15, 1
      %p80 = por %p78, %p79
      %p82 = scmp.ne.s32.totalorder %s67, %s81
      %p83 = scmp.eq.s32.totalorder %s15, 0
      %p84 = por %p82, %p83
      %s85 = ssub.s32 %s9, %s16
      %p86 = scmp.eq.s32.totalorder %s85, 0
      %s88 = sadd.s32 %s87, 1
      %s89 = scalar_select %p86, %s87, %s88
      %p92 = pneg %p86
      %p93 = scmp.eq.s32.totalorder %s9, 1
      %p94 = por %p92, %p93
      %p95 = scmp.ne.s32.totalorder %s87, %s90
      %p96 = scmp.eq.s32.totalorder %s9, 0
      %p97 = por %p95, %p96
      %p98 = scmp.ne.s32.totalorder %s87, %s90
      %p99 = scmp.eq.s32.totalorder %s14, 1
      %p100 = por %p98, %p99
      %p101 = scmp.ne.s32.totalorder %s90, %s91
      %p102 = scmp.eq.s32.totalorder %s14, 0
      %p103 = por %p101, %p102
      %p104 = scmp.ne.s32.totalorder %s90, %s91
      %p105 = scmp.eq.s32.totalorder %s15, 1
      %p106 = por %p104, %p105
      %p108 = scmp.ne.s32.totalorder %s91, %s107
      %p109 = scmp.eq.s32.totalorder %s15, 0
      %p110 = por %p108, %p109
      %p111 = scmp.le.s32.totalorder 1, %s9
      %p112 = scmp.lt.s32.totalorder %s9, 3
      %p113 = pnand %p111, %p112
      %p114 = pneg %p113
      // Predicated region
      $region9: #{encoder_forward.14} parent=5 // pred_check
        _
      $region10: #{encoder_forward.14} parent=5 // pred_check_branch
        %116 = sbr.rel (%p113) target = $region12
      $region11: #{encoder_forward.14} parent=5 // pred_region
        %s117 = ssub.s32 %s9, 1
        // Predicated region
        $region13: #{encoder_forward.14} parent=11 // pred_check
          %p118 = pneg %p30
        $region14: #{encoder_forward.14} parent=11 // pred_check_branch
          %120 = sbr.rel (%p118) target = $region16
        $region15: #{encoder_forward.14} parent=11 // pred_region
          _
        $region16: #{encoder_forward.14} parent=11 // pred_fallthru
          _
        // Predicated region
        $region17: #{encoder_forward.14} parent=11 // pred_check
          %p121 = pneg %p77
        $region18: #{encoder_forward.14} parent=11 // pred_check_branch
          %123 = sbr.rel (%p121) target = $region20
        $region19: #{encoder_forward.14} parent=11 // pred_region
          _
        $region20: #{encoder_forward.14} parent=11 // pred_fallthru
          _
      $region12: #{encoder_forward.14} parent=5 // pred_fallthru
        _
      %p124 = scmp.lt.s32.totalorder %s9, 2
      // Predicated region
      $region21: #{encoder_forward.14} parent=5 // pred_check
        %p125 = pneg %p124
      $region22: #{encoder_forward.14} parent=5 // pred_check_branch
        %127 = sbr.rel (%p125) target = $region24
      $region23: #{encoder_forward.14} parent=5 // pred_region
        // Predicated region
        $region25: #{encoder_forward.14} parent=23 // pred_check
          %p128 = pneg %p50
        $region26: #{encoder_forward.14} parent=23 // pred_check_branch
          %130 = sbr.rel (%p128) target = $region28
        $region27: #{encoder_forward.14} parent=23 // pred_region
          %s131 = sand.u32 %s40, 1
          %s132 = sand.u32 %s40, 1
          %s133 = smul.addr %s132, 80
          %s134 = scalar_lea.vmem [#allocation2], %s133
          %s135 = smul.u32 2, %s9
          %s136 = smul.addr %s135, 4
          %s137 = scalar_lea.vmem %s1, %s136
          // Predicated region
          $region29: #{encoder_forward.14} parent=27 // pred_check
            _
          $region30: #{encoder_forward.14} parent=27 // pred_check_branch
            %139 = sbr.rel (0) target = $region32
          $region31: #{encoder_forward.14} parent=27 // pred_region
            // Predicated region
            $region33: #{encoder_forward.14} parent=31 // pred_check
              _
            $region34: #{encoder_forward.14} parent=31 // pred_check_branch
              %141 = sbr.rel (0) target = $region36
            $region35: #{encoder_forward.14} parent=31 // pred_region
              // Predicated region
              $region48: #{encoder_forward.14} parent=35 // pred_check
                _
              $region49: #{encoder_forward.14} parent=35 // pred_check_branch
                %175 = sbr.rel (0) target = $region51
              $region50: #{encoder_forward.14} parent=35 // pred_region
                loop: start=0, step=1, limit=1
                $region52: #{encoder_forward.14} parent=50 // loop_pre_header
                  _
                $region53: #{encoder_forward.14} parent=50 // loop_header
                  %s177 = sphi 0, %s181
                  %p178 = scmp.ge.s32.totalorder %s177, 1
                  %s182 = sphi %s137, %s137
                  %s183 = sphi %s134, %s134
                $region54: #{encoder_forward.14} parent=50 // loop_header_branch
                  %180 = sbr.rel (%p178) target = $region58
                $region55: #{encoder_forward.14} parent=50 // loop_body
                  %v184 = vld [vmem:[%s182] sm:$0xff]
                  %185 = vst [vmem:[%s183] sm:$0xff] %v184
                  %v186 = vld [vmem:[%s182 + $0x10] sm:$0xff]
                  %187 = vst [vmem:[%s183 + $0x8] sm:$0xff] %v186
                  %v188 = vld [vmem:[%s182 + $0x20] sm:$0xff]
                  %189 = vst [vmem:[%s183 + $0x10] sm:$0xff] %v188
                  %v190 = vld [vmem:[%s182 + $0x30] sm:$0xff]
                  %191 = vst [vmem:[%s183 + $0x18] sm:$0xff] %v190
                  %v192 = vld [vmem:[%s182 + $0x40] sm:$0xff]
                  %193 = vst [vmem:[%s183 + $0x20] sm:$0xff] %v192
                  %v194 = vld [vmem:[%s182 + $0x50] sm:$0xff]
                  %195 = vst [vmem:[%s183 + $0x28] sm:$0xff] %v194
                  %v196 = vld [vmem:[%s182 + $0x60] sm:$0xff]
                  %197 = vst [vmem:[%s183 + $0x30] sm:$0xff] %v196
                  %v198 = vld [vmem:[%s182 + $0x70] sm:$0xff]
                  %199 = vst [vmem:[%s183 + $0x38] sm:$0xff] %v198
                  %v200 = vld [vmem:[%s182 + $0x80] sm:$0xff]
                  %201 = vst [vmem:[%s183 + $0x40] sm:$0xff] %v200
                  %v202 = vld [vmem:[%s182 + $0x90] sm:$0xff]
                  %203 = vst [vmem:[%s183 + $0x48] sm:$0xff] %v202
                $region56: #{encoder_forward.14} parent=50 // loop_footer
                  %s181 = sadd.s32 1, %s177
                $region57: #{encoder_forward.14} parent=50 // loop_footer_branch
                  %176 = sbr.rel target = $region53
                $region58: #{encoder_forward.14} parent=50 // loop_exit
                  _
              $region51: #{encoder_forward.14} parent=35 // pred_fallthru
                _
              // Predicated region
              $region59: #{encoder_forward.14} parent=35 // pred_check
                _
              $region60: #{encoder_forward.14} parent=35 // pred_check_branch
                %205 = sbr.rel target = $region62
              $region61: #{encoder_forward.14} parent=35 // pred_region
                _
              $region62: #{encoder_forward.14} parent=35 // pred_fallthru
                _
            $region36: #{encoder_forward.14} parent=31 // pred_fallthru
              _
            // Predicated region
            $region37: #{encoder_forward.14} parent=31 // pred_check
              _
            $region38: #{encoder_forward.14} parent=31 // pred_check_branch
              %143 = sbr.rel target = $region40
            $region39: #{encoder_forward.14} parent=31 // pred_region
              %s145 = ssub.s32 256, 1
              loop: start=0, step=1, limit=1
              $region41: #{encoder_forward.14} parent=39 // loop_pre_header
                _
              $region42: #{encoder_forward.14} parent=39 // loop_header
                %s147 = sphi 0, %s151
                %p148 = scmp.ge.s32.totalorder %s147, 1
                %s152 = sphi %s137, %s137
                %s153 = sphi %s134, %s134
              $region43: #{encoder_forward.14} parent=39 // loop_header_branch
                %150 = sbr.rel (%p148) target = $region47
              $region44: #{encoder_forward.14} parent=39 // loop_body
                %v154 = vld [vmem:[%s152] sm:%s145]
                %155 = vst [vmem:[%s153] sm:%s145] %v154
                %v156 = vld [vmem:[%s152 + $0x10] sm:%s145]
                %157 = vst [vmem:[%s153 + $0x8] sm:%s145] %v156
                %v158 = vld [vmem:[%s152 + $0x20] sm:%s145]
                %159 = vst [vmem:[%s153 + $0x10] sm:%s145] %v158
                %v160 = vld [vmem:[%s152 + $0x30] sm:%s145]
                %161 = vst [vmem:[%s153 + $0x18] sm:%s145] %v160
                %v162 = vld [vmem:[%s152 + $0x40] sm:%s145]
                %163 = vst [vmem:[%s153 + $0x20] sm:%s145] %v162
                %v164 = vld [vmem:[%s152 + $0x50] sm:%s145]
                %165 = vst [vmem:[%s153 + $0x28] sm:%s145] %v164
                %v166 = vld [vmem:[%s152 + $0x60] sm:%s145]
                %167 = vst [vmem:[%s153 + $0x30] sm:%s145] %v166
                %v168 = vld [vmem:[%s152 + $0x70] sm:%s145]
                %169 = vst [vmem:[%s153 + $0x38] sm:%s145] %v168
                %v170 = vld [vmem:[%s152 + $0x80] sm:%s145]
                %171 = vst [vmem:[%s153 + $0x40] sm:%s145] %v170
                %v172 = vld [vmem:[%s152 + $0x90] sm:%s145]
                %173 = vst [vmem:[%s153 + $0x48] sm:%s145] %v172
              $region45: #{encoder_forward.14} parent=39 // loop_footer
                %s151 = sadd.s32 1, %s147
              $region46: #{encoder_forward.14} parent=39 // loop_footer_branch
                %146 = sbr.rel target = $region42
              $region47: #{encoder_forward.14} parent=39 // loop_exit
                _
            $region40: #{encoder_forward.14} parent=31 // pred_fallthru
              _
          $region32: #{encoder_forward.14} parent=27 // pred_fallthru
            _
          %206 = vnop
        $region28: #{encoder_forward.14} parent=23 // pred_fallthru
          _
      $region24: #{encoder_forward.14} parent=5 // pred_fallthru
        _
      %p207 = scmp.le.s32.totalorder 1, %s9
      %p208 = scmp.lt.s32.totalorder %s9, 3
      %p209 = pnand %p207, %p208
      %p210 = pneg %p209
      // Predicated region
      $region63: #{encoder_forward.14} parent=5 // pred_check
        _
      $region64: #{encoder_forward.14} parent=5 // pred_check_branch
        %212 = sbr.rel (%p209) target = $region66
      $region65: #{encoder_forward.14} parent=5 // pred_region
        %s213 = ssub.s32 %s9, 1
        %s214 = sand.u32 %s43, 1
        %s215 = sand.u32 %s43, 1
        %s216 = smul.addr %s215, 80
        %s217 = scalar_lea.vmem [#allocation2], %s216
        // Predicated region
        $region67: #{encoder_forward.14} parent=65 // pred_check
          %p218 = pneg %p56
        $region68: #{encoder_forward.14} parent=65 // pred_check_branch
          %220 = sbr.rel (%p218) target = $region70
        $region69: #{encoder_forward.14} parent=65 // pred_region
          _
        $region70: #{encoder_forward.14} parent=65 // pred_fallthru
          _
        %p221 = pneg %p30
        %p222 = pneg %p27
        %s223 = sand.u32 %s43, 1
        %s224 = sand.u32 %s43, 1
        %s225 = smul.addr %s224, 80
        %s226 = scalar_lea.vmem [#allocation2], %s225
        %p227 = pneg %p56
        %p228 = pneg %p53
        %p229 = pneg %p77
        %p230 = pneg %p74
        %p231 = pneg %p103
        %p232 = pneg %p100
        %s233 = smul.u32 2, %s14
        %p234 = scmp.lt.s32.totalorder %s233, 3
        %s235 = scalar_select %p234, %s233, 3
        %s236 = smul.addr %s235, 8
        %s237 = scalar_lea.vmem %s3, %s236
        %s238 = smul.u32 2, %s14
        %s239 = smul.u32 2, %s14
        %p240 = scmp.lt.s32.totalorder %s239, 3
        %s241 = scalar_select %p240, %s239, 3
        %s242 = smul.addr %s241, 8
        %s243 = scalar_lea.vmem %s3, %s242
        %s244 = smul.u32 2, %s14
        %v246 = vld [vmem:[%s0] sm:$0xf]
        %v247 = vld [vmem:[%s217] sm:$0xff]
        %v248 = vld [vmem:[%s217 + $0x8] sm:$0xff]
        %v249 = vld [vmem:[%s217 + $0x10] sm:$0xff]
        %v250 = vld [vmem:[%s217 + $0x18] sm:$0xff]
        %v251 = vld [vmem:[%s217 + $0x20] sm:$0xff]
        %v252 = vld [vmem:[%s217 + $0x28] sm:$0xff]
        %v253 = vld [vmem:[%s217 + $0x30] sm:$0xff]
        %v254 = vld [vmem:[%s217 + $0x38] sm:$0xff]
        %v255 = vld [vmem:[%s217 + $0x40] sm:$0xff]
        %v256 = vld [vmem:[%s217 + $0x48] sm:$0xff]
        %v257 = vld [vmem:[%s2] sm:$0xff]
        %259 = vset.pattern.permute.xlu0 0
        %260 = vperm.xlu0 %259, %v257
        %v261 = vpop.permute.xlu0 %260
        %v273 = vunpack.c.l.b16 %v247
        %v274 = vunpack.c.h.b16 %v247
        %v275 = vunpack.c.l.b16 %v248
        %v276 = vunpack.c.h.b16 %v248
        %v277 = vunpack.c.l.b16 %v249
        %v278 = vunpack.c.h.b16 %v249
        %v279 = vunpack.c.l.b16 %v250
        %v280 = vunpack.c.h.b16 %v250
        %v281 = vunpack.c.l.b16 %v251
        %v282 = vunpack.c.h.b16 %v251
        %v283 = vunpack.c.l.b16 %v252
        %v284 = vunpack.c.h.b16 %v252
        %v285 = vunpack.c.l.b16 %v253
        %v286 = vunpack.c.h.b16 %v253
        %v287 = vunpack.c.l.b16 %v254
        %v288 = vunpack.c.h.b16 %v254
        %v289 = vunpack.c.l.b16 %v255
        %v290 = vunpack.c.h.b16 %v255
        %v291 = vunpack.c.l.b16 %v256
        %v292 = vunpack.c.h.b16 %v256
        %v293 = vpack.c.b16 %v275, %v273
        %v294 = vpack.c.b16 %v276, %v274
        %v295 = vpack.c.b16 %v279, %v277
        %v296 = vpack.c.b16 %v280, %v278
        %v297 = vpack.c.b16 %v283, %v281
        %v298 = vpack.c.b16 %v284, %v282
        %v299 = vpack.c.b16 %v287, %v285
        %v300 = vpack.c.b16 %v288, %v286
        %v301 = vpack.c.b16 %v291, %v289
        %v302 = vpack.c.b16 %v292, %v290
        %vm313 = vcmask 654336
        %v315 = vsel %vm313, %v246, 0
        %317 = vmatprep.subr.bf16.mxu0 0
        %318 = vmatpush1.bf16.msra.mxu0 0
        %319 = vmatprep.subr.bf16.mxu0 0
        %320 = vmatpush1.bf16.msra.mxu0 0
        %321 = vmatprep.subr.bf16.mxu0 0
        %322 = vmatpush1.bf16.msra.mxu0 0
        %323 = vmatprep.subr.bf16.mxu0 %v302
        %324 = vmatpush1.bf16.msra.mxu0 %v301
        %325 = vmatprep.subr.bf16.mxu0 %v300
        %326 = vmatpush1.bf16.msra.mxu0 %v299
        %327 = vmatprep.subr.bf16.mxu0 %v298
        %328 = vmatpush1.bf16.msra.mxu0 %v297
        %329 = vmatprep.subr.bf16.mxu0 %v296
        %330 = vmatpush1.bf16.msra.mxu0 %v295
        %331 = vmatprep.subr.bf16.mxu0 %v294
        %332 = vmatpush1.bf16.msra.mxu0 %v293
        %333 = vmatprep.subr.bf16.mxu0 0
        %334 = vmatpush2.bf16.msra.mxu0 0
        %335 = vmatprep.subr.bf16.mxu0 0
        %336 = vmatpush2.bf16.msra.mxu0 0
        %337 = vmatprep.subr.bf16.mxu0 0
        %338 = vmatpush2.bf16.msra.mxu0 0
        %339 = vmatprep.subr.bf16.mxu0 0
        %340 = vmatpush2.bf16.msra.mxu0 0
        %341 = vmatprep.subr.bf16.mxu0 0
        %342 = vmatpush2.bf16.msra.mxu0 0
        %343 = vmatprep.subr.bf16.mxu0 0
        %344 = vmatpush2.bf16.msra.mxu0 0
        %345 = vmatprep.subr.bf16.mxu0 0
        %346 = vmatpush2.bf16.msra.mxu0 0
        %347 = vmatprep.subr.bf16.mxu0 0
        %348 = vmatpush2.bf16.msra.mxu0 0
        %349 = vmatprep.mubr.bf16.mxu0 0
        %350 = vmatmul.mubr.bf16.gmra.mxu0 %v315
        %v351 = vpop.f32.mrf.mxu0
        %v352 = vadd.f32 %v261, %v351
        %v353 = vpop.f32.mrf.mxu0
        %v354 = vadd.f32 %v261, %v353
        %v355 = vpop.f32.mrf.mxu0
        %v356 = vpop.f32.mrf.mxu0
        %357 = vdwg.mxu0
        %v358 = vmax.f32 %v352, 0.0
        %v359 = vmax.f32 %v354, 0.0
        %360 = vst [vmem:[%s243] sm:$0xff] %v358
        %361 = vst [vmem:[%s243 + $0x8] sm:$0xff] %v359
        %s362 = smul.u32 2, %s14
        %p363 = scmp.lt.s32.totalorder %s362, 3
        %s364 = scalar_select %p363, %s362, 3
        %s365 = smul.addr %s364, 8
        %s366 = scalar_lea.vmem %s3, %s365
        // Predicated region
        $region71: #{encoder_forward.14} parent=65 // pred_check
          %p367 = pneg %p100
        $region72: #{encoder_forward.14} parent=65 // pred_check_branch
          %369 = sbr.rel (%p367) target = $region74
        $region73: #{encoder_forward.14} parent=65 // pred_region
          %s370 = smul.u32 2, %s14
        $region74: #{encoder_forward.14} parent=65 // pred_fallthru
          _
      $region66: #{encoder_forward.14} parent=5 // pred_fallthru
        _
      %p371 = scmp.le.s32.totalorder 2, %s9
      // Predicated region
      $region75: #{encoder_forward.14} parent=5 // pred_check
        %p372 = pneg %p371
      $region76: #{encoder_forward.14} parent=5 // pred_check_branch
        %374 = sbr.rel (%p372) target = $region78
      $region77: #{encoder_forward.14} parent=5 // pred_region
        %s375 = ssub.s32 %s9, 2
        // Predicated region
        $region79: #{encoder_forward.14} parent=77 // pred_check
          %p376 = pneg %p106
        $region80: #{encoder_forward.14} parent=77 // pred_check_branch
          %378 = sbr.rel (%p376) target = $region82
        $region81: #{encoder_forward.14} parent=77 // pred_region
          %s379 = smul.u32 2, %s15
          %p380 = scmp.lt.s32.totalorder %s379, 3
          %s381 = scalar_select %p380, %s379, 3
          %s382 = smul.addr %s381, 8
          %s383 = scalar_lea.vmem %s3, %s382
        $region82: #{encoder_forward.14} parent=77 // pred_fallthru
          _
      $region78: #{encoder_forward.14} parent=5 // pred_fallthru
        _
    $region6: #{encoder_forward.14} parent=1 // loop_footer
      %s13 = sadd.s32 1, %s9
    $region7: #{encoder_forward.14} parent=1 // loop_footer_branch
      %8 = sbr.rel target = $region3
    $region8: #{encoder_forward.14} parent=1 // loop_exit
      _

// kernel: encoder_forward.16
$region0: #{encoder_forward.16}
  #allocation0 [shape = 'u32[]', space=smem, size = 0x4, offset = 0x4, fixed_abs, tag = 'smem constant byte address 0x4 - core index']
  #allocation1 [shape = 'u32[144,128]{1,0:T(1,128)}', space=vmem, size = 0x12000, scoped, tag = 'internal scratch']
  %s0 = inlined_call_operand.vmem [shape: bf16[16,80], index: 0, kind: input, shape index: {}]
  %s1 = inlined_call_operand.vmem [shape: bf16[80,512], index: 1, kind: input, shape index: {}]
  %s2 = inlined_call_operand.vmem [shape: f32[16,1], index: 2, kind: input, shape index: {}]
  %s3 = inlined_call_operand.vmem [shape: f32[16,512], index: 3, kind: output, shape index: {}]
  %s4 = sld [smem:[#allocation0]]
  $region102: #{encoder_forward.16} parent=0
    _
  %s6 = ssub.s32 1, %s4
  %s7 = scalar_select 0, %s6, %s4
  $region1: #{encoder_forward.16} parent=0
    #allocation2 [shape = 'u8[81920]{0}', space=vmem, size = 0x14000, scoped, tag = 'input window, operand 1']
    #allocation3 [shape = 'u8[32768]{0}', space=vmem, size = 0x8000, scoped, tag = 'output window, operand 0']
    loop: start=0, step=1, limit=4
    $region2: #{encoder_forward.16} parent=1 // loop_pre_header
      _
    $region3: #{encoder_forward.16} parent=1 // loop_header
      %s9 = sphi 0, %s13
      %p10 = scmp.ge.s32.totalorder %s9, 4
      %s17 = sphi 0, %s17
      %s19 = sphi 0, %s17
      %s20 = sphi 0, %s19
      %s34 = sphi 0, %s20
      %s40 = sphi 0, %s42
      %s43 = sphi 0, %s40
      %s44 = sphi 0, %s43
      %s60 = sphi 0, %s44
      %s64 = sphi 0, %s64
      %s66 = sphi 0, %s64
      %s67 = sphi 0, %s66
      %s81 = sphi 0, %s67
      %s87 = sphi 0, %s89
      %s90 = sphi 0, %s87
      %s91 = sphi 0, %s90
      %s107 = sphi 0, %s91
    $region4: #{encoder_forward.16} parent=1 // loop_header_branch
      %12 = sbr.rel (%p10) target = $region8
    $region5: #{encoder_forward.16} parent=1 // loop_body
      %s14 = ssub.s32 %s9, 1
      %s15 = ssub.s32 %s9, 2
      %s16 = sadd.s32 %s9, 1
      %s18 = sadd.s32 %s17, 1
      %p21 = scmp.eq.s32.totalorder %s9, 1
      %p22 = scmp.ne.s32.totalorder %s17, %s19
      %p23 = scmp.eq.s32.totalorder %s9, 0
      %p24 = por %p22, %p23
      %p25 = scmp.ne.s32.totalorder %s17, %s19
      %p26 = scmp.eq.s32.totalorder %s14, 1
      %p27 = por %p25, %p26
      %p28 = scmp.ne.s32.totalorder %s19, %s20
      %p29 = scmp.eq.s32.totalorder %s14, 0
      %p30 = por %p28, %p29
      %p31 = scmp.ne.s32.totalorder %s19, %s20
      %p32 = scmp.eq.s32.totalorder %s15, 1
      %p33 = por %p31, %p32
      %p35 = scmp.ne.s32.totalorder %s20, %s34
      %p36 = scmp.eq.s32.totalorder %s15, 0
      %p37 = por %p35, %p36
      %s38 = ssub.s32 %s9, %s16
      %p39 = scmp.eq.s32.totalorder %s38, 0
      %s41 = sadd.s32 %s40, 1
      %s42 = scalar_select %p39, %s40, %s41
      %p45 = pneg %p39
      %p46 = scmp.eq.s32.totalorder %s9, 1
      %p47 = por %p45, %p46
      %p48 = scmp.ne.s32.totalorder %s40, %s43
      %p49 = scmp.eq.s32.totalorder %s9, 0
      %p50 = por %p48, %p49
      %p51 = scmp.ne.s32.totalorder %s40, %s43
      %p52 = scmp.eq.s32.totalorder %s14, 1
      %p53 = por %p51, %p52
      %p54 = scmp.ne.s32.totalorder %s43, %s44
      %p55 = scmp.eq.s32.totalorder %s14, 0
      %p56 = por %p54, %p55
      %p57 = scmp.ne.s32.totalorder %s43, %s44
      %p58 = scmp.eq.s32.totalorder %s15, 1
      %p59 = por %p57, %p58
      %p61 = scmp.ne.s32.totalorder %s44, %s60
      %p62 = scmp.eq.s32.totalorder %s15, 0
      %p63 = por %p61, %p62
      %s65 = sadd.s32 %s64, 1
      %p68 = scmp.eq.s32.totalorder %s9, 1
      %p69 = scmp.ne.s32.totalorder %s64, %s66
      %p70 = scmp.eq.s32.totalorder %s9, 0
      %p71 = por %p69, %p70
      %p72 = scmp.ne.s32.totalorder %s64, %s66
      %p73 = scmp.eq.s32.totalorder %s14, 1
      %p74 = por %p72, %p73
      %p75 = scmp.ne.s32.totalorder %s66, %s67
      %p76 = scmp.eq.s32.totalorder %s14, 0
      %p77 = por %p75, %p76
      %p78 = scmp.ne.s32.totalorder %s66, %s67
      %p79 = scmp.eq.s32.totalorder %s15, 1
      %p80 = por %p78, %p79
      %p82 = scmp.ne.s32.totalorder %s67, %s81
      %p83 = scmp.eq.s32.totalorder %s15, 0
      %p84 = por %p82, %p83
      %s85 = ssub.s32 %s9, %s16
      %p86 = scmp.eq.s32.totalorder %s85, 0
      %s88 = sadd.s32 %s87, 1
      %s89 = scalar_select %p86, %s87, %s88
      %p92 = pneg %p86
      %p93 = scmp.eq.s32.totalorder %s9, 1
      %p94 = por %p92, %p93
      %p95 = scmp.ne.s32.totalorder %s87, %s90
      %p96 = scmp.eq.s32.totalorder %s9, 0
      %p97 = por %p95, %p96
      %p98 = scmp.ne.s32.totalorder %s87, %s90
      %p99 = scmp.eq.s32.totalorder %s14, 1
      %p100 = por %p98, %p99
      %p101 = scmp.ne.s32.totalorder %s90, %s91
      %p102 = scmp.eq.s32.totalorder %s14, 0
      %p103 = por %p101, %p102
      %p104 = scmp.ne.s32.totalorder %s90, %s91
      %p105 = scmp.eq.s32.totalorder %s15, 1
      %p106 = por %p104, %p105
      %p108 = scmp.ne.s32.totalorder %s91, %s107
      %p109 = scmp.eq.s32.totalorder %s15, 0
      %p110 = por %p108, %p109
      %p111 = scmp.le.s32.totalorder 1, %s9
      %p112 = scmp.lt.s32.totalorder %s9, 3
      %p113 = pnand %p111, %p112
      %p114 = pneg %p113
      // Predicated region
      $region9: #{encoder_forward.16} parent=5 // pred_check
        _
      $region10: #{encoder_forward.16} parent=5 // pred_check_branch
        %116 = sbr.rel (%p113) target = $region12
      $region11: #{encoder_forward.16} parent=5 // pred_region
        %s117 = ssub.s32 %s9, 1
        // Predicated region
        $region13: #{encoder_forward.16} parent=11 // pred_check
          %p118 = pneg %p30
        $region14: #{encoder_forward.16} parent=11 // pred_check_branch
          %120 = sbr.rel (%p118) target = $region16
        $region15: #{encoder_forward.16} parent=11 // pred_region
          _
        $region16: #{encoder_forward.16} parent=11 // pred_fallthru
          _
        // Predicated region
        $region17: #{encoder_forward.16} parent=11 // pred_check
          %p121 = pneg %p77
        $region18: #{encoder_forward.16} parent=11 // pred_check_branch
          %123 = sbr.rel (%p121) target = $region20
        $region19: #{encoder_forward.16} parent=11 // pred_region
          _
        $region20: #{encoder_forward.16} parent=11 // pred_fallthru
          _
      $region12: #{encoder_forward.16} parent=5 // pred_fallthru
        _
      %p124 = scmp.lt.s32.totalorder %s9, 2
      // Predicated region
      $region21: #{encoder_forward.16} parent=5 // pred_check
        %p125 = pneg %p124
      $region22: #{encoder_forward.16} parent=5 // pred_check_branch
        %127 = sbr.rel (%p125) target = $region24
      $region23: #{encoder_forward.16} parent=5 // pred_region
        // Predicated region
        $region25: #{encoder_forward.16} parent=23 // pred_check
          %p128 = pneg %p50
        $region26: #{encoder_forward.16} parent=23 // pred_check_branch
          %130 = sbr.rel (%p128) target = $region28
        $region27: #{encoder_forward.16} parent=23 // pred_region
          %s131 = sand.u32 %s40, 1
          %s132 = sand.u32 %s40, 1
          %s133 = smul.addr %s132, 80
          %s134 = scalar_lea.vmem [#allocation2], %s133
          %s135 = smul.u32 2, %s9
          %s136 = smul.addr %s135, 4
          %s137 = scalar_lea.vmem %s1, %s136
          // Predicated region
          $region29: #{encoder_forward.16} parent=27 // pred_check
            _
          $region30: #{encoder_forward.16} parent=27 // pred_check_branch
            %139 = sbr.rel (0) target = $region32
          $region31: #{encoder_forward.16} parent=27 // pred_region
            // Predicated region
            $region33: #{encoder_forward.16} parent=31 // pred_check
              _
            $region34: #{encoder_forward.16} parent=31 // pred_check_branch
              %141 = sbr.rel (0) target = $region36
            $region35: #{encoder_forward.16} parent=31 // pred_region
              // Predicated region
              $region48: #{encoder_forward.16} parent=35 // pred_check
                _
              $region49: #{encoder_forward.16} parent=35 // pred_check_branch
                %175 = sbr.rel (0) target = $region51
              $region50: #{encoder_forward.16} parent=35 // pred_region
                loop: start=0, step=1, limit=1
                $region52: #{encoder_forward.16} parent=50 // loop_pre_header
                  _
                $region53: #{encoder_forward.16} parent=50 // loop_header
                  %s177 = sphi 0, %s181
                  %p178 = scmp.ge.s32.totalorder %s177, 1
                  %s182 = sphi %s137, %s137
                  %s183 = sphi %s134, %s134
                $region54: #{encoder_forward.16} parent=50 // loop_header_branch
                  %180 = sbr.rel (%p178) target = $region58
                $region55: #{encoder_forward.16} parent=50 // loop_body
                  %v184 = vld [vmem:[%s182] sm:$0xff]
                  %185 = vst [vmem:[%s183] sm:$0xff] %v184
                  %v186 = vld [vmem:[%s182 + $0x10] sm:$0xff]
                  %187 = vst [vmem:[%s183 + $0x8] sm:$0xff] %v186
                  %v188 = vld [vmem:[%s182 + $0x20] sm:$0xff]
                  %189 = vst [vmem:[%s183 + $0x10] sm:$0xff] %v188
                  %v190 = vld [vmem:[%s182 + $0x30] sm:$0xff]
                  %191 = vst [vmem:[%s183 + $0x18] sm:$0xff] %v190
                  %v192 = vld [vmem:[%s182 + $0x40] sm:$0xff]
                  %193 = vst [vmem:[%s183 + $0x20] sm:$0xff] %v192
                  %v194 = vld [vmem:[%s182 + $0x50] sm:$0xff]
                  %195 = vst [vmem:[%s183 + $0x28] sm:$0xff] %v194
                  %v196 = vld [vmem:[%s182 + $0x60] sm:$0xff]
                  %197 = vst [vmem:[%s183 + $0x30] sm:$0xff] %v196
                  %v198 = vld [vmem:[%s182 + $0x70] sm:$0xff]
                  %199 = vst [vmem:[%s183 + $0x38] sm:$0xff] %v198
                  %v200 = vld [vmem:[%s182 + $0x80] sm:$0xff]
                  %201 = vst [vmem:[%s183 + $0x40] sm:$0xff] %v200
                  %v202 = vld [vmem:[%s182 + $0x90] sm:$0xff]
                  %203 = vst [vmem:[%s183 + $0x48] sm:$0xff] %v202
                $region56: #{encoder_forward.16} parent=50 // loop_footer
                  %s181 = sadd.s32 1, %s177
                $region57: #{encoder_forward.16} parent=50 // loop_footer_branch
                  %176 = sbr.rel target = $region53
                $region58: #{encoder_forward.16} parent=50 // loop_exit
                  _
              $region51: #{encoder_forward.16} parent=35 // pred_fallthru
                _
              // Predicated region
              $region59: #{encoder_forward.16} parent=35 // pred_check
                _
              $region60: #{encoder_forward.16} parent=35 // pred_check_branch
                %205 = sbr.rel target = $region62
              $region61: #{encoder_forward.16} parent=35 // pred_region
                _
              $region62: #{encoder_forward.16} parent=35 // pred_fallthru
                _
            $region36: #{encoder_forward.16} parent=31 // pred_fallthru
              _
            // Predicated region
            $region37: #{encoder_forward.16} parent=31 // pred_check
              _
            $region38: #{encoder_forward.16} parent=31 // pred_check_branch
              %143 = sbr.rel target = $region40
            $region39: #{encoder_forward.16} parent=31 // pred_region
              %s145 = ssub.s32 256, 1
              loop: start=0, step=1, limit=1
              $region41: #{encoder_forward.16} parent=39 // loop_pre_header
                _
              $region42: #{encoder_forward.16} parent=39 // loop_header
                %s147 = sphi 0, %s151
                %p148 = scmp.ge.s32.totalorder %s147, 1
                %s152 = sphi %s137, %s137
                %s153 = sphi %s134, %s134
              $region43: #{encoder_forward.16} parent=39 // loop_header_branch
                %150 = sbr.rel (%p148) target = $region47
              $region44: #{encoder_forward.16} parent=39 // loop_body
                %v154 = vld [vmem:[%s152] sm:%s145]
                %155 = vst [vmem:[%s153] sm:%s145] %v154
                %v156 = vld [vmem:[%s152 + $0x10] sm:%s145]
                %157 = vst [vmem:[%s153 + $0x8] sm:%s145] %v156
                %v158 = vld [vmem:[%s152 + $0x20] sm:%s145]
                %159 = vst [vmem:[%s153 + $0x10] sm:%s145] %v158
                %v160 = vld [vmem:[%s152 + $0x30] sm:%s145]
                %161 = vst [vmem:[%s153 + $0x18] sm:%s145] %v160
                %v162 = vld [vmem:[%s152 + $0x40] sm:%s145]
                %163 = vst [vmem:[%s153 + $0x20] sm:%s145] %v162
                %v164 = vld [vmem:[%s152 + $0x50] sm:%s145]
                %165 = vst [vmem:[%s153 + $0x28] sm:%s145] %v164
                %v166 = vld [vmem:[%s152 + $0x60] sm:%s145]
                %167 = vst [vmem:[%s153 + $0x30] sm:%s145] %v166
                %v168 = vld [vmem:[%s152 + $0x70] sm:%s145]
                %169 = vst [vmem:[%s153 + $0x38] sm:%s145] %v168
                %v170 = vld [vmem:[%s152 + $0x80] sm:%s145]
                %171 = vst [vmem:[%s153 + $0x40] sm:%s145] %v170
                %v172 = vld [vmem:[%s152 + $0x90] sm:%s145]
                %173 = vst [vmem:[%s153 + $0x48] sm:%s145] %v172
              $region45: #{encoder_forward.16} parent=39 // loop_footer
                %s151 = sadd.s32 1, %s147
              $region46: #{encoder_forward.16} parent=39 // loop_footer_branch
                %146 = sbr.rel target = $region42
              $region47: #{encoder_forward.16} parent=39 // loop_exit
                _
            $region40: #{encoder_forward.16} parent=31 // pred_fallthru
              _
          $region32: #{encoder_forward.16} parent=27 // pred_fallthru
            _
          %206 = vnop
        $region28: #{encoder_forward.16} parent=23 // pred_fallthru
          _
      $region24: #{encoder_forward.16} parent=5 // pred_fallthru
        _
      %p207 = scmp.le.s32.totalorder 1, %s9
      %p208 = scmp.lt.s32.totalorder %s9, 3
      %p209 = pnand %p207, %p208
      %p210 = pneg %p209
      // Predicated region
      $region63: #{encoder_forward.16} parent=5 // pred_check
        _
      $region64: #{encoder_forward.16} parent=5 // pred_check_branch
        %212 = sbr.rel (%p209) target = $region66
      $region65: #{encoder_forward.16} parent=5 // pred_region
        %s213 = ssub.s32 %s9, 1
        %s214 = sand.u32 %s43, 1
        %s215 = sand.u32 %s43, 1
        %s216 = smul.addr %s215, 80
        %s217 = scalar_lea.vmem [#allocation2], %s216
        // Predicated region
        $region67: #{encoder_forward.16} parent=65 // pred_check
          %p218 = pneg %p56
        $region68: #{encoder_forward.16} parent=65 // pred_check_branch
          %220 = sbr.rel (%p218) target = $region70
        $region69: #{encoder_forward.16} parent=65 // pred_region
          _
        $region70: #{encoder_forward.16} parent=65 // pred_fallthru
          _
        %p221 = pneg %p30
        %p222 = pneg %p27
        %s223 = sand.u32 %s43, 1
        %s224 = sand.u32 %s43, 1
        %s225 = smul.addr %s224, 80
        %s226 = scalar_lea.vmem [#allocation2], %s225
        %p227 = pneg %p56
        %p228 = pneg %p53
        %p229 = pneg %p77
        %p230 = pneg %p74
        %p231 = pneg %p103
        %p232 = pneg %p100
        %s233 = sand.u32 %s90, 1
        %s234 = sand.u32 %s90, 1
        %s235 = smul.addr %s234, 32
        %s236 = scalar_lea.vmem [#allocation3], %s235
        %s237 = smul.u32 2, %s14
        %s238 = smul.u32 2, %s14
        %v240 = vld [vmem:[%s0] sm:$0xf]
        %v241 = vld [vmem:[%s0 + $0x4] sm:$0xf]
        %v242 = vld [vmem:[%s217] sm:$0xff]
        %v243 = vld [vmem:[%s217 + $0x8] sm:$0xff]
        %v244 = vld [vmem:[%s217 + $0x10] sm:$0xff]
        %v245 = vld [vmem:[%s217 + $0x18] sm:$0xff]
        %v246 = vld [vmem:[%s217 + $0x20] sm:$0xff]
        %v247 = vld [vmem:[%s217 + $0x28] sm:$0xff]
        %v248 = vld [vmem:[%s217 + $0x30] sm:$0xff]
        %v249 = vld [vmem:[%s217 + $0x38] sm:$0xff]
        %v250 = vld [vmem:[%s217 + $0x40] sm:$0xff]
        %v251 = vld [vmem:[%s217 + $0x48] sm:$0xff]
        %v252 = vld [vmem:[%s2] sm:$0xff]
        %v253 = vld [vmem:[%s2 + $0x8] sm:$0xff]
        %255 = vset.pattern.permute.xlu0 0
        %256 = vperm.xlu0 %255, %v252
        %v257 = vpop.permute.xlu0 %256
        %260 = vset.pattern.permute.xlu0 0
        %261 = vperm.xlu0 %260, %v253
        %v262 = vpop.permute.xlu0 %261
        %v266 = vunpack.c.l.b16 %v240
        %v267 = vunpack.c.l.b16 %v241
        %v268 = vpack.c.b16 %v267, %v266
        %v279 = vunpack.c.l.b16 %v242
        %v280 = vunpack.c.h.b16 %v242
        %v281 = vunpack.c.l.b16 %v243
        %v282 = vunpack.c.h.b16 %v243
        %v283 = vunpack.c.l.b16 %v244
        %v284 = vunpack.c.h.b16 %v244
        %v285 = vunpack.c.l.b16 %v245
        %v286 = vunpack.c.h.b16 %v245
        %v287 = vunpack.c.l.b16 %v246
        %v288 = vunpack.c.h.b16 %v246
        %v289 = vunpack.c.l.b16 %v247
        %v290 = vunpack.c.h.b16 %v247
        %v291 = vunpack.c.l.b16 %v248
        %v292 = vunpack.c.h.b16 %v248
        %v293 = vunpack.c.l.b16 %v249
        %v294 = vunpack.c.h.b16 %v249
        %v295 = vunpack.c.l.b16 %v250
        %v296 = vunpack.c.h.b16 %v250
        %v297 = vunpack.c.l.b16 %v251
        %v298 = vunpack.c.h.b16 %v251
        %v299 = vpack.c.b16 %v281, %v279
        %v300 = vpack.c.b16 %v282, %v280
        %v301 = vpack.c.b16 %v285, %v283
        %v302 = vpack.c.b16 %v286, %v284
        %v303 = vpack.c.b16 %v289, %v287
        %v304 = vpack.c.b16 %v290, %v288
        %v305 = vpack.c.b16 %v293, %v291
        %v306 = vpack.c.b16 %v294, %v292
        %v307 = vpack.c.b16 %v297, %v295
        %v308 = vpack.c.b16 %v298, %v296
        %vm319 = vcmask 654336
        %v321 = vsel %vm319, %v268, 0
        %323 = vmatprep.subr.bf16.mxu0 0
        %324 = vmatpush1.bf16.msra.mxu0 0
        %325 = vmatprep.subr.bf16.mxu0 0
        %326 = vmatpush1.bf16.msra.mxu0 0
        %327 = vmatprep.subr.bf16.mxu0 0
        %328 = vmatpush1.bf16.msra.mxu0 0
        %329 = vmatprep.subr.bf16.mxu0 %v308
        %330 = vmatpush1.bf16.msra.mxu0 %v307
        %331 = vmatprep.subr.bf16.mxu0 %v306
        %332 = vmatpush1.bf16.msra.mxu0 %v305
        %333 = vmatprep.subr.bf16.mxu0 %v304
        %334 = vmatpush1.bf16.msra.mxu0 %v303
        %335 = vmatprep.subr.bf16.mxu0 %v302
        %336 = vmatpush1.bf16.msra.mxu0 %v301
        %337 = vmatprep.subr.bf16.mxu0 %v300
        %338 = vmatpush1.bf16.msra.mxu0 %v299
        %339 = vmatprep.subr.bf16.mxu0 0
        %340 = vmatpush2.bf16.msra.mxu0 0
        %341 = vmatprep.subr.bf16.mxu0 0
        %342 = vmatpush2.bf16.msra.mxu0 0
        %343 = vmatprep.subr.bf16.mxu0 0
        %344 = vmatpush2.bf16.msra.mxu0 0
        %345 = vmatprep.subr.bf16.mxu0 0
        %346 = vmatpush2.bf16.msra.mxu0 0
        %347 = vmatprep.subr.bf16.mxu0 0
        %348 = vmatpush2.bf16.msra.mxu0 0
        %349 = vmatprep.subr.bf16.mxu0 0
        %350 = vmatpush2.bf16.msra.mxu0 0
        %351 = vmatprep.subr.bf16.mxu0 0
        %352 = vmatpush2.bf16.msra.mxu0 0
        %353 = vmatprep.subr.bf16.mxu0 0
        %354 = vmatpush2.bf16.msra.mxu0 0
        %355 = vmatprep.mubr.bf16.mxu0 0
        %356 = vmatmul.mubr.bf16.gmra.mxu0 %v321
        %v357 = vpop.f32.mrf.mxu0
        %v358 = vadd.f32 %v257, %v357
        %v359 = vpop.f32.mrf.mxu0
        %v360 = vadd.f32 %v257, %v359
        %v361 = vpop.f32.mrf.mxu0
        %v362 = vadd.f32 %v262, %v361
        %v363 = vpop.f32.mrf.mxu0
        %v364 = vadd.f32 %v262, %v363
        %365 = vdwg.mxu0
        %v366 = vmax.f32 %v358, 0.0
        %v367 = vmax.f32 %v360, 0.0
        %v368 = vmax.f32 %v362, 0.0
        %v369 = vmax.f32 %v364, 0.0
        %370 = vst [vmem:[%s236] sm:$0xff] %v366
        %371 = vst [vmem:[%s236 + $0x8] sm:$0xff] %v367
        %372 = vst [vmem:[%s236 + $0x10] sm:$0xff] %v368
        %373 = vst [vmem:[%s236 + $0x18] sm:$0xff] %v369
        %s374 = sand.u32 %s90, 1
        %s375 = sand.u32 %s90, 1
        %s376 = smul.addr %s375, 32
        %s377 = scalar_lea.vmem [#allocation3], %s376
        // Predicated region
        $region71: #{encoder_forward.16} parent=65 // pred_check
          %p378 = pneg %p100
        $region72: #{encoder_forward.16} parent=65 // pred_check_branch
          %380 = sbr.rel (%p378) target = $region74
        $region73: #{encoder_forward.16} parent=65 // pred_region
          %s381 = smul.u32 2, %s14
          %s382 = smul.addr %s381, 8
          %s383 = scalar_lea.vmem %s3, %s382
          // Predicated region
          $region75: #{encoder_forward.16} parent=73 // pred_check
            _
          $region76: #{encoder_forward.16} parent=73 // pred_check_branch
            %385 = sbr.rel (0) target = $region78
          $region77: #{encoder_forward.16} parent=73 // pred_region
            // Predicated region
            $region79: #{encoder_forward.16} parent=77 // pred_check
              _
            $region80: #{encoder_forward.16} parent=77 // pred_check_branch
              %387 = sbr.rel (0) target = $region82
            $region81: #{encoder_forward.16} parent=77 // pred_region
              loop: start=0, step=1, limit=1
              $region83: #{encoder_forward.16} parent=81 // loop_pre_header
                _
              $region84: #{encoder_forward.16} parent=81 // loop_header
                %s389 = sphi 0, %s393
                %p390 = scmp.ge.s32.totalorder %s389, 1
                %s394 = sphi %s377, %s377
                %s395 = sphi %s383, %s383
              $region85: #{encoder_forward.16} parent=81 // loop_header_branch
                %392 = sbr.rel (%p390) target = $region89
              $region86: #{encoder_forward.16} parent=81 // loop_body
                %v396 = vld [vmem:[%s394] sm:$0xff]
                %397 = vst [vmem:[%s395] sm:$0xff] %v396
                %v398 = vld [vmem:[%s394 + $0x8] sm:$0xff]
                %399 = vst [vmem:[%s395 + $0x8] sm:$0xff] %v398
                %v400 = vld [vmem:[%s394 + $0x10] sm:$0xff]
                %401 = vst [vmem:[%s395 + $0x20] sm:$0xff] %v400
                %v402 = vld [vmem:[%s394 + $0x18] sm:$0xff]
                %403 = vst [vmem:[%s395 + $0x28] sm:$0xff] %v402
              $region87: #{encoder_forward.16} parent=81 // loop_footer
                %s393 = sadd.s32 1, %s389
              $region88: #{encoder_forward.16} parent=81 // loop_footer_branch
                %388 = sbr.rel target = $region84
              $region89: #{encoder_forward.16} parent=81 // loop_exit
                _
            $region82: #{encoder_forward.16} parent=77 // pred_fallthru
              _
            // Predicated region
            $region90: #{encoder_forward.16} parent=77 // pred_check
              _
            $region91: #{encoder_forward.16} parent=77 // pred_check_branch
              %405 = sbr.rel target = $region93
            $region92: #{encoder_forward.16} parent=77 // pred_region
              _
            $region93: #{encoder_forward.16} parent=77 // pred_fallthru
              _
          $region78: #{encoder_forward.16} parent=73 // pred_fallthru
            _
          %406 = vnop
        $region74: #{encoder_forward.16} parent=65 // pred_fallthru
          _
      $region66: #{encoder_forward.16} parent=5 // pred_fallthru
        _
      %p407 = scmp.le.s32.totalorder 2, %s9
      // Predicated region
      $region94: #{encoder_forward.16} parent=5 // pred_check
        %p408 = pneg %p407
      $region95: #{encoder_forward.16} parent=5 // pred_check_branch
        %410 = sbr.rel (%p408) target = $region97
      $region96: #{encoder_forward.16} parent=5 // pred_region
        %s411 = ssub.s32 %s9, 2
        // Predicated region
        $region98: #{encoder_forward.16} parent=96 // pred_check
          %p412 = pneg %p106
        $region99: #{encoder_forward.16} parent=96 // pred_check_branch
          %414 = sbr.rel (%p412) target = $region101
        $region100: #{encoder_forward.16} parent=96 // pred_region
          %s415 = sand.u32 %s91, 1
          %s416 = sand.u32 %s91, 1
          %s417 = smul.addr %s416, 32
          %s418 = scalar_lea.vmem [#allocation3], %s417
        $region101: #{encoder_forward.16} parent=96 // pred_fallthru
          _
      $region97: #{encoder_forward.16} parent=5 // pred_fallthru
        _
    $region6: #{encoder_forward.16} parent=1 // loop_footer
      %s13 = sadd.s32 1, %s9
    $region7: #{encoder_forward.16} parent=1 // loop_footer_branch
      %8 = sbr.rel target = $region3
    $region8: #{encoder_forward.16} parent=1 // loop_exit
      _

// kernel: encoder_forward.17
$region0: #{encoder_forward.17}
  #allocation0 [shape = 'u32[]', space=smem, size = 0x4, offset = 0x4, fixed_abs, tag = 'smem constant byte address 0x4 - core index']
  #allocation1 [shape = 'u32[144,128]{1,0:T(1,128)}', space=vmem, size = 0x12000, scoped, tag = 'internal scratch']
  %s0 = inlined_call_operand.vmem [shape: bf16[16,144], index: 0, kind: input, shape index: {}]
  %s1 = inlined_call_operand.vmem [shape: bf16[144,128], index: 1, kind: input, shape index: {}]
  %s2 = inlined_call_operand.vmem [shape: f32[16,1], index: 2, kind: input, shape index: {}]
  %s3 = inlined_call_operand.vmem [shape: f32[16,128], index: 3, kind: output, shape index: {}]
  %s4 = sld [smem:[#allocation0]]
  $region22: #{encoder_forward.17} parent=0
    _
  %s6 = ssub.s32 1, %s4
  %s7 = scalar_select 0, %s6, %s4
  // Predicated region
  $region2: #{encoder_forward.17} parent=0 // pred_check
    _
  $region3: #{encoder_forward.17} parent=0 // pred_check_branch
    %9 = sbr.rel (0) target = $region5
  $region4: #{encoder_forward.17} parent=0 // pred_region
    _
  $region5: #{encoder_forward.17} parent=0 // pred_fallthru
    _
  // Predicated region
  $region6: #{encoder_forward.17} parent=0 // pred_check
    _
  $region7: #{encoder_forward.17} parent=0 // pred_check_branch
    %11 = sbr.rel (0) target = $region9
  $region8: #{encoder_forward.17} parent=0 // pred_region
    _
  $region9: #{encoder_forward.17} parent=0 // pred_fallthru
    _
  // Predicated region
  $region10: #{encoder_forward.17} parent=0 // pred_check
    _
  $region11: #{encoder_forward.17} parent=0 // pred_check_branch
    %13 = sbr.rel (0) target = $region13
  $region12: #{encoder_forward.17} parent=0 // pred_region
    _
  $region13: #{encoder_forward.17} parent=0 // pred_fallthru
    _
  %v15 = vld [vmem:[%s0] sm:$0xff]
  %v16 = vld [vmem:[%s0 + $0x8] sm:$0xff]
  %v17 = vld [vmem:[%s1] sm:$0xf]
  %v18 = vld [vmem:[%s1 + $0x4] sm:$0xf]
  %v19 = vld [vmem:[%s1 + $0x8] sm:$0xf]
  %v20 = vld [vmem:[%s1 + $0xc] sm:$0xf]
  %v21 = vld [vmem:[%s1 + $0x10] sm:$0xf]
  %v22 = vld [vmem:[%s1 + $0x14] sm:$0xf]
  %v23 = vld [vmem:[%s1 + $0x18] sm:$0xf]
  %v24 = vld [vmem:[%s1 + $0x1c] sm:$0xf]
  %v25 = vld [vmem:[%s1 + $0x20] sm:$0xf]
  %v26 = vld [vmem:[%s1 + $0x24] sm:$0xf]
  %v27 = vld [vmem:[%s1 + $0x28] sm:$0xf]
  %v28 = vld [vmem:[%s1 + $0x2c] sm:$0xf]
  %v29 = vld [vmem:[%s1 + $0x30] sm:$0xf]
  %v30 = vld [vmem:[%s1 + $0x34] sm:$0xf]
  %v31 = vld [vmem:[%s1 + $0x38] sm:$0xf]
  %v32 = vld [vmem:[%s1 + $0x3c] sm:$0xf]
  %v33 = vld [vmem:[%s1 + $0x40] sm:$0xf]
  %v34 = vld [vmem:[%s1 + $0x44] sm:$0xf]
  %v35 = vld [vmem:[%s2] sm:$0xff]
  %v36 = vld [vmem:[%s2 + $0x8] sm:$0xff]
  %38 = vset.pattern.permute.xlu0 0
  %39 = vperm.xlu0 %38, %v35
  %v40 = vpop.permute.xlu0 %39
  %43 = vset.pattern.permute.xlu0 0
  %44 = vperm.xlu0 %43, %v36
  %v45 = vpop.permute.xlu0 %44
  %v49 = vunpack.c.l.b16 %v15
  %v50 = vunpack.c.h.b16 %v15
  %v51 = vunpack.c.l.b16 %v16
  %v52 = vunpack.c.h.b16 %v16
  %v53 = vpack.c.b16 %v51, %v49
  %v54 = vpack.c.b16 %v52, %v50
  %v74 = vunpack.c.l.b16 %v17
  %v75 = vunpack.c.l.b16 %v18
  %v76 = vunpack.c.l.b16 %v19
  %v77 = vunpack.c.l.b16 %v20
  %v78 = vunpack.c.l.b16 %v21
  %v79 = vunpack.c.l.b16 %v22
  %v80 = vunpack.c.l.b16 %v23
  %v81 = vunpack.c.l.b16 %v24
  %v82 = vunpack.c.l.b16 %v25
  %v83 = vunpack.c.l.b16 %v26
  %v84 = vunpack.c.l.b16 %v27
  %v85 = vunpack.c.l.b16 %v28
  %v86 = vunpack.c.l.b16 %v29
  %v87 = vunpack.c.l.b16 %v30
  %v88 = vunpack.c.l.b16 %v31
  %v89 = vunpack.c.l.b16 %v32
  %v90 = vunpack.c.l.b16 %v33
  %v91 = vunpack.c.l.b16 %v34
  %v92 = vpack.c.b16 %v75, %v74
  %v93 = vpack.c.b16 %v77, %v76
  %v94 = vpack.c.b16 %v79, %v78
  %v95 = vpack.c.b16 %v81, %v80
  %v96 = vpack.c.b16 %v83, %v82
  %v97 = vpack.c.b16 %v85, %v84
  %v98 = vpack.c.b16 %v87, %v86
  %v99 = vpack.c.b16 %v89, %v88
  %v100 = vpack.c.b16 %v91, %v90
  %vm110 = vcmask 130048
  %v112 = vsel %vm110, %v54, 0
  %114 = vmatprep.subr.bf16.mxu0 0
  %115 = vmatpush1.bf16.msra.mxu0 %v99
  %116 = vmatprep.subr.bf16.mxu0 0
  %117 = vmatpush1.bf16.msra.mxu0 %v98
  %118 = vmatprep.subr.bf16.mxu0 0
  %119 = vmatpush1.bf16.msra.mxu0 %v97
  %120 = vmatprep.subr.bf16.mxu0 0
  %121 = vmatpush1.bf16.msra.mxu0 %v96
  %122 = vmatprep.subr.bf16.mxu0 0
  %123 = vmatpush1.bf16.msra.mxu0 %v95
  %124 = vmatprep.subr.bf16.mxu0 0
  %125 = vmatpush1.bf16.msra.mxu0 %v94
  %126 = vmatprep.subr.bf16.mxu0 0
  %127 = vmatpush1.bf16.msra.mxu0 %v93
  %128 = vmatprep.subr.bf16.mxu0 0
  %129 = vmatpush1.bf16.msra.mxu0 %v92
  %130 = vmatprep.subr.bf16.mxu0 0
  %131 = vmatpush2.bf16.msra.mxu0 0
  %132 = vmatprep.subr.bf16.mxu0 0
  %133 = vmatpush2.bf16.msra.mxu0 0
  %134 = vmatprep.subr.bf16.mxu0 0
  %135 = vmatpush2.bf16.msra.mxu0 0
  %136 = vmatprep.subr.bf16.mxu0 0
  %137 = vmatpush2.bf16.msra.mxu0 0
  %138 = vmatprep.subr.bf16.mxu0 0
  %139 = vmatpush2.bf16.msra.mxu0 0
  %140 = vmatprep.subr.bf16.mxu0 0
  %141 = vmatpush2.bf16.msra.mxu0 0
  %142 = vmatprep.subr.bf16.mxu0 0
  %143 = vmatpush2.bf16.msra.mxu0 0
  %144 = vmatprep.subr.bf16.mxu0 0
  %145 = vmatpush2.bf16.msra.mxu0 %v100
  %146 = vmatprep.mubr.bf16.mxu0 %v112
  %147 = vmatmul.mubr.bf16.gmra.mxu0 %v53
  %v148 = vpop.f32.mrf.mxu0
  %v149 = vadd.f32 %v40, %v148
  %v150 = vpop.f32.mrf.mxu0
  %v151 = vpop.f32.mrf.mxu0
  %v152 = vadd.f32 %v45, %v151
  %v153 = vpop.f32.mrf.mxu0
  %154 = vdwg.mxu0
  %v155 = vmax.f32 %v149, 0.0
  %v156 = vmax.f32 %v152, 0.0
  %157 = vst [vmem:[%s3] sm:$0xff] %v155
  %158 = vst [vmem:[%s3 + $0x8] sm:$0xff] %v156
  // Predicated region
  $region14: #{encoder_forward.17} parent=0 // pred_check
    _
  $region15: #{encoder_forward.17} parent=0 // pred_check_branch
    %160 = sbr.rel (0) target = $region17
  $region16: #{encoder_forward.17} parent=0 // pred_region
    _
  $region17: #{encoder_forward.17} parent=0 // pred_fallthru
    _
  // Predicated region
  $region18: #{encoder_forward.17} parent=0 // pred_check
    _
  $region19: #{encoder_forward.17} parent=0 // pred_check_branch
    %162 = sbr.rel (0) target = $region21
  $region20: #{encoder_forward.17} parent=0 // pred_region
    _
  $region21: #{encoder_forward.17} parent=0 // pred_fallthru
    _

// kernel: encoder_forward.19
$region0: #{encoder_forward.19}
  #allocation0 [shape = 'u32[]', space=smem, size = 0x4, offset = 0x4, fixed_abs, tag = 'smem constant byte address 0x4 - core index']
  #allocation1 [shape = 'u32[144,128]{1,0:T(1,128)}', space=vmem, size = 0x12000, scoped, tag = 'internal scratch']
  %s0 = inlined_call_operand.vmem [shape: bf16[32,144], index: 0, kind: input, shape index: {}]
  %s1 = inlined_call_operand.vmem [shape: bf16[144,128], index: 1, kind: input, shape index: {}]
  %s2 = inlined_call_operand.vmem [shape: f32[32,1], index: 2, kind: input, shape index: {}]
  %s3 = inlined_call_operand.vmem [shape: f32[32,128], index: 3, kind: output, shape index: {}]
  %s4 = sld [smem:[#allocation0]]
  $region22: #{encoder_forward.19} parent=0
    _
  %s6 = ssub.s32 1, %s4
  %s7 = scalar_select 0, %s6, %s4
  // Predicated region
  $region2: #{encoder_forward.19} parent=0 // pred_check
    _
  $region3: #{encoder_forward.19} parent=0 // pred_check_branch
    %9 = sbr.rel (0) target = $region5
  $region4: #{encoder_forward.19} parent=0 // pred_region
    _
  $region5: #{encoder_forward.19} parent=0 // pred_fallthru
    _
  // Predicated region
  $region6: #{encoder_forward.19} parent=0 // pred_check
    _
  $region7: #{encoder_forward.19} parent=0 // pred_check_branch
    %11 = sbr.rel (0) target = $region9
  $region8: #{encoder_forward.19} parent=0 // pred_region
    _
  $region9: #{encoder_forward.19} parent=0 // pred_fallthru
    _
  // Predicated region
  $region10: #{encoder_forward.19} parent=0 // pred_check
    _
  $region11: #{encoder_forward.19} parent=0 // pred_check_branch
    %13 = sbr.rel (0) target = $region13
  $region12: #{encoder_forward.19} parent=0 // pred_region
    _
  $region13: #{encoder_forward.19} parent=0 // pred_fallthru
    _
  %v15 = vld [vmem:[%s0] sm:$0xff]
  %v16 = vld [vmem:[%s0 + $0x8] sm:$0xff]
  %v17 = vld [vmem:[%s0 + $0x10] sm:$0xff]
  %v18 = vld [vmem:[%s0 + $0x18] sm:$0xff]
  %v19 = vld [vmem:[%s1] sm:$0xf]
  %v20 = vld [vmem:[%s1 + $0x4] sm:$0xf]
  %v21 = vld [vmem:[%s1 + $0x8] sm:$0xf]
  %v22 = vld [vmem:[%s1 + $0xc] sm:$0xf]
  %v23 = vld [vmem:[%s1 + $0x10] sm:$0xf]
  %v24 = vld [vmem:[%s1 + $0x14] sm:$0xf]
  %v25 = vld [vmem:[%s1 + $0x18] sm:$0xf]
  %v26 = vld [vmem:[%s1 + $0x1c] sm:$0xf]
  %v27 = vld [vmem:[%s1 + $0x20] sm:$0xf]
  %v28 = vld [vmem:[%s1 + $0x24] sm:$0xf]
  %v29 = vld [vmem:[%s1 + $0x28] sm:$0xf]
  %v30 = vld [vmem:[%s1 + $0x2c] sm:$0xf]
  %v31 = vld [vmem:[%s1 + $0x30] sm:$0xf]
  %v32 = vld [vmem:[%s1 + $0x34] sm:$0xf]
  %v33 = vld [vmem:[%s1 + $0x38] sm:$0xf]
  %v34 = vld [vmem:[%s1 + $0x3c] sm:$0xf]
  %v35 = vld [vmem:[%s1 + $0x40] sm:$0xf]
  %v36 = vld [vmem:[%s1 + $0x44] sm:$0xf]
  %v37 = vld [vmem:[%s2] sm:$0xff]
  %v38 = vld [vmem:[%s2 + $0x8] sm:$0xff]
  %v39 = vld [vmem:[%s2 + $0x10] sm:$0xff]
  %v40 = vld [vmem:[%s2 + $0x18] sm:$0xff]
  %42 = vset.pattern.permute.xlu0 0
  %43 = vperm.xlu0 %42, %v37
  %v44 = vpop.permute.xlu0 %43
  %47 = vset.pattern.permute.xlu0 0
  %48 = vperm.xlu0 %47, %v38
  %v49 = vpop.permute.xlu0 %48
  %52 = vset.pattern.permute.xlu0 0
  %53 = vperm.xlu0 %52, %v39
  %v54 = vpop.permute.xlu0 %53
  %57 = vset.pattern.permute.xlu0 0
  %58 = vperm.xlu0 %57, %v40
  %v59 = vpop.permute.xlu0 %58
  %v65 = vunpack.c.l.b16 %v15
  %v66 = vunpack.c.h.b16 %v15
  %v67 = vunpack.c.l.b16 %v16
  %v68 = vunpack.c.h.b16 %v16
  %v69 = vunpack.c.l.b16 %v17
  %v70 = vunpack.c.h.b16 %v17
  %v71 = vunpack.c.l.b16 %v18
  %v72 = vunpack.c.h.b16 %v18
  %v73 = vpack.c.b16 %v67, %v65
  %v74 = vpack.c.b16 %v68, %v66
  %v75 = vpack.c.b16 %v71, %v69
  %v76 = vpack.c.b16 %v72, %v70
  %v97 = vunpack.c.l.b16 %v19
  %v98 = vunpack.c.l.b16 %v20
  %v99 = vunpack.c.l.b16 %v21
  %v100 = vunpack.c.l.b16 %v22
  %v101 = vunpack.c.l.b16 %v23
  %v102 = vunpack.c.l.b16 %v24
  %v103 = vunpack.c.l.b16 %v25
  %v104 = vunpack.c.l.b16 %v26
  %v105 = vunpack.c.l.b16 %v27
  %v106 = vunpack.c.l.b16 %v28
  %v107 = vunpack.c.l.b16 %v29
  %v108 = vunpack.c.l.b16 %v30
  %v109 = vunpack.c.l.b16 %v31
  %v110 = vunpack.c.l.b16 %v32
  %v111 = vunpack.c.l.b16 %v33
  %v112 = vunpack.c.l.b16 %v34
  %v113 = vunpack.c.l.b16 %v35
  %v114 = vunpack.c.l.b16 %v36
  %v115 = vpack.c.b16 %v98, %v97
  %v116 = vpack.c.b16 %v100, %v99
  %v117 = vpack.c.b16 %v102, %v101
  %v118 = vpack.c.b16 %v104, %v103
  %v119 = vpack.c.b16 %v106, %v105
  %v120 = vpack.c.b16 %v108, %v107
  %v121 = vpack.c.b16 %v110, %v109
  %v122 = vpack.c.b16 %v112, %v111
  %v123 = vpack.c.b16 %v114, %v113
  %vm133 = vcmask 130048
  %v135 = vsel %vm133, %v74, 0
  %v138 = vsel %vm133, %v76, 0
  %140 = vmatprep.subr.bf16.mxu0 0
  %141 = vmatpush1.bf16.msra.mxu0 %v122
  %142 = vmatprep.subr.bf16.mxu0 0
  %143 = vmatpush1.bf16.msra.mxu0 %v121
  %144 = vmatprep.subr.bf16.mxu0 0
  %145 = vmatpush1.bf16.msra.mxu0 %v120
  %146 = vmatprep.subr.bf16.mxu0 0
  %147 = vmatpush1.bf16.msra.mxu0 %v119
  %148 = vmatprep.subr.bf16.mxu0 0
  %149 = vmatpush1.bf16.msra.mxu0 %v118
  %150 = vmatprep.subr.bf16.mxu0 0
  %151 = vmatpush1.bf16.msra.mxu0 %v117
  %152 = vmatprep.subr.bf16.mxu0 0
  %153 = vmatpush1.bf16.msra.mxu0 %v116
  %154 = vmatprep.subr.bf16.mxu0 0
  %155 = vmatpush1.bf16.msra.mxu0 %v115
  %156 = vmatprep.subr.bf16.mxu0 0
  %157 = vmatpush2.bf16.msra.mxu0 0
  %158 = vmatprep.subr.bf16.mxu0 0
  %159 = vmatpush2.bf16.msra.mxu0 0
  %160 = vmatprep.subr.bf16.mxu0 0
  %161 = vmatpush2.bf16.msra.mxu0 0
  %162 = vmatprep.subr.bf16.mxu0 0
  %163 = vmatpush2.bf16.msra.mxu0 0
  %164 = vmatprep.subr.bf16.mxu0 0
  %165 = vmatpush2.bf16.msra.mxu0 0
  %166 = vmatprep.subr.bf16.mxu0 0
  %167 = vmatpush2.bf16.msra.mxu0 0
  %168 = vmatprep.subr.bf16.mxu0 0
  %169 = vmatpush2.bf16.msra.mxu0 0
  %170 = vmatprep.subr.bf16.mxu0 0
  %171 = vmatpush2.bf16.msra.mxu0 %v123
  %172 = vmatprep.mubr.bf16.mxu0 %v135
  %173 = vmatmul.mubr.bf16.gmra.mxu0 %v73
  %v174 = vpop.f32.mrf.mxu0
  %v175 = vadd.f32 %v44, %v174
  %v176 = vpop.f32.mrf.mxu0
  %v177 = vpop.f32.mrf.mxu0
  %v178 = vadd.f32 %v49, %v177
  %v179 = vpop.f32.mrf.mxu0
  %180 = vmatprep.mubr.bf16.mxu0 %v138
  %181 = vmatmul.mubr.bf16.gmra.mxu0 %v75
  %v182 = vpop.f32.mrf.mxu0
  %v183 = vadd.f32 %v54, %v182
  %v184 = vpop.f32.mrf.mxu0
  %v185 = vpop.f32.mrf.mxu0
  %v186 = vadd.f32 %v59, %v185
  %v187 = vpop.f32.mrf.mxu0
  %188 = vdwg.mxu0
  %v189 = vmax.f32 %v175, 0.0
  %v190 = vmax.f32 %v178, 0.0
  %v191 = vmax.f32 %v183, 0.0
  %v192 = vmax.f32 %v186, 0.0
  %193 = vst [vmem:[%s3] sm:$0xff] %v189
  %194 = vst [vmem:[%s3 + $0x8] sm:$0xff] %v190
  %195 = vst [vmem:[%s3 + $0x10] sm:$0xff] %v191
  %196 = vst [vmem:[%s3 + $0x18] sm:$0xff] %v192
  // Predicated region
  $region14: #{encoder_forward.19} parent=0 // pred_check
    _
  $region15: #{encoder_forward.19} parent=0 // pred_check_branch
    %198 = sbr.rel (0) target = $region17
  $region16: #{encoder_forward.19} parent=0 // pred_region
    _
  $region17: #{encoder_forward.19} parent=0 // pred_fallthru
    _
  // Predicated region
  $region18: #{encoder_forward.19} parent=0 // pred_check
    _
  $region19: #{encoder_forward.19} parent=0 // pred_check_branch
    %200 = sbr.rel (0) target = $region21
  $region20: #{encoder_forward.19} parent=0 // pred_region
    _
  $region21: #{encoder_forward.19} parent=0 // pred_fallthru
    _

// kernel: encoder_forward.20
$region0: #{encoder_forward.20}
  #allocation0 [shape = 'u32[]', space=smem, size = 0x4, offset = 0x4, fixed_abs, tag = 'smem constant byte address 0x4 - core index']
  #allocation1 [shape = 'u32[144,128]{1,0:T(1,128)}', space=vmem, size = 0x12000, scoped, tag = 'internal scratch']
  %s0 = inlined_call_operand.vmem [shape: bf16[32,288], index: 0, kind: input, shape index: {}]
  %s1 = inlined_call_operand.vmem [shape: bf16[288,128], index: 1, kind: input, shape index: {}]
  %s2 = inlined_call_operand.vmem [shape: f32[32,1], index: 2, kind: input, shape index: {}]
  %s3 = inlined_call_operand.vmem [shape: f32[32,128], index: 3, kind: output, shape index: {}]
  %s4 = sld [smem:[#allocation0]]
  $region22: #{encoder_forward.20} parent=0
    _
  %s6 = ssub.s32 1, %s4
  %s7 = scalar_select 0, %s6, %s4
  // Predicated region
  $region2: #{encoder_forward.20} parent=0 // pred_check
    _
  $region3: #{encoder_forward.20} parent=0 // pred_check_branch
    %9 = sbr.rel (0) target = $region5
  $region4: #{encoder_forward.20} parent=0 // pred_region
    _
  $region5: #{encoder_forward.20} parent=0 // pred_fallthru
    _
  // Predicated region
  $region6: #{encoder_forward.20} parent=0 // pred_check
    _
  $region7: #{encoder_forward.20} parent=0 // pred_check_branch
    %11 = sbr.rel (0) target = $region9
  $region8: #{encoder_forward.20} parent=0 // pred_region
    _
  $region9: #{encoder_forward.20} parent=0 // pred_fallthru
    _
  // Predicated region
  $region10: #{encoder_forward.20} parent=0 // pred_check
    _
  $region11: #{encoder_forward.20} parent=0 // pred_check_branch
    %13 = sbr.rel (0) target = $region13
  $region12: #{encoder_forward.20} parent=0 // pred_region
    _
  $region13: #{encoder_forward.20} parent=0 // pred_fallthru
    _
  %v15 = vld [vmem:[%s0] sm:$0xff]
  %v16 = vld [vmem:[%s0 + $0x8] sm:$0xf]
  %v17 = vld [vmem:[%s0 + $0xc] sm:$0xff]
  %v18 = vld [vmem:[%s0 + $0x14] sm:$0xf]
  %v19 = vld [vmem:[%s0 + $0x18] sm:$0xff]
  %v20 = vld [vmem:[%s0 + $0x20] sm:$0xf]
  %v21 = vld [vmem:[%s0 + $0x24] sm:$0xff]
  %v22 = vld [vmem:[%s0 + $0x2c] sm:$0xf]
  %v23 = vld [vmem:[%s1] sm:$0xf]
  %v24 = vld [vmem:[%s1 + $0x4] sm:$0xf]
  %v25 = vld [vmem:[%s1 + $0x8] sm:$0xf]
  %v26 = vld [vmem:[%s1 + $0xc] sm:$0xf]
  %v27 = vld [vmem:[%s1 + $0x10] sm:$0xf]
  %v28 = vld [vmem:[%s1 + $0x14] sm:$0xf]
  %v29 = vld [vmem:[%s1 + $0x18] sm:$0xf]
  %v30 = vld [vmem:[%s1 + $0x1c] sm:$0xf]
  %v31 = vld [vmem:[%s1 + $0x20] sm:$0xf]
  %v32 = vld [vmem:[%s1 + $0x24] sm:$0xf]
  %v33 = vld [vmem:[%s1 + $0x28] sm:$0xf]
  %v34 = vld [vmem:[%s1 + $0x2c] sm:$0xf]
  %v35 = vld [vmem:[%s1 + $0x30] sm:$0xf]
  %v36 = vld [vmem:[%s1 + $0x34] sm:$0xf]
  %v37 = vld [vmem:[%s1 + $0x38] sm:$0xf]
  %v38 = vld [vmem:[%s1 + $0x3c] sm:$0xf]
  %v39 = vld [vmem:[%s1 + $0x40] sm:$0xf]
  %v40 = vld [vmem:[%s1 + $0x44] sm:$0xf]
  %v41 = vld [vmem:[%s1 + $0x48] sm:$0xf]
  %v42 = vld [vmem:[%s1 + $0x4c] sm:$0xf]
  %v43 = vld [vmem:[%s1 + $0x50] sm:$0xf]
  %v44 = vld [vmem:[%s1 + $0x54] sm:$0xf]
  %v45 = vld [vmem:[%s1 + $0x58] sm:$0xf]
  %v46 = vld [vmem:[%s1 + $0x5c] sm:$0xf]
  %v47 = vld [vmem:[%s1 + $0x60] sm:$0xf]
  %v48 = vld [vmem:[%s1 + $0x64] sm:$0xf]
  %v49 = vld [vmem:[%s1 + $0x68] sm:$0xf]
  %v50 = vld [vmem:[%s1 + $0x6c] sm:$0xf]
  %v51 = vld [vmem:[%s1 + $0x70] sm:$0xf]
  %v52 = vld [vmem:[%s1 + $0x74] sm:$0xf]
  %v53 = vld [vmem:[%s1 + $0x78] sm:$0xf]
  %v54 = vld [vmem:[%s1 + $0x7c] sm:$0xf]
  %v55 = vld [vmem:[%s1 + $0x80] sm:$0xf]
  %v56 = vld [vmem:[%s1 + $0x84] sm:$0xf]
  %v57 = vld [vmem:[%s1 + $0x88] sm:$0xf]
  %v58 = vld [vmem:[%s1 + $0x8c] sm:$0xf]
  %v59 = vld [vmem:[%s2] sm:$0xff]
  %v60 = vld [vmem:[%s2 + $0x8] sm:$0xff]
  %v61 = vld [vmem:[%s2 + $0x10] sm:$0xff]
  %v62 = vld [vmem:[%s2 + $0x18] sm:$0xff]
  %64 = vset.pattern.permute.xlu0 0
  %65 = vperm.xlu0 %64, %v59
  %v66 = vpop.permute.xlu0 %65
  %69 = vset.pattern.permute.xlu0 0
  %70 = vperm.xlu0 %69, %v60
  %v71 = vpop.permute.xlu0 %70
  %74 = vset.pattern.permute.xlu0 0
  %75 = vperm.xlu0 %74, %v61
  %v76 = vpop.permute.xlu0 %75
  %79 = vset.pattern.permute.xlu0 0
  %80 = vperm.xlu0 %79, %v62
  %v81 = vpop.permute.xlu0 %80
  %v91 = vunpack.c.l.b16 %v15
  %v92 = vunpack.c.h.b16 %v15
  %v93 = vunpack.c.l.b16 %v16
  %v94 = vunpack.c.l.b16 %v17
  %v95 = vunpack.c.h.b16 %v17
  %v96 = vunpack.c.l.b16 %v18
  %v97 = vunpack.c.l.b16 %v19
  %v98 = vunpack.c.h.b16 %v19
  %v99 = vunpack.c.l.b16 %v20
  %v100 = vunpack.c.l.b16 %v21
  %v101 = vunpack.c.h.b16 %v21
  %v102 = vunpack.c.l.b16 %v22
  %v103 = vpack.c.b16 %v94, %v91
  %v104 = vpack.c.b16 %v95, %v92
  %v105 = vpack.c.b16 %v96, %v93
  %v106 = vpack.c.b16 %v100, %v97
  %v107 = vpack.c.b16 %v101, %v98
  %v108 = vpack.c.b16 %v102, %v99
  %v149 = vunpack.c.l.b16 %v23
  %v150 = vunpack.c.l.b16 %v24
  %v151 = vunpack.c.l.b16 %v25
  %v152 = vunpack.c.l.b16 %v26
  %v153 = vunpack.c.l.b16 %v27
  %v154 = vunpack.c.l.b16 %v28
  %v155 = vunpack.c.l.b16 %v29
  %v156 = vunpack.c.l.b16 %v30
  %v157 = vunpack.c.l.b16 %v31
  %v158 = vunpack.c.l.b16 %v32
  %v159 = vunpack.c.l.b16 %v33
  %v160 = vunpack.c.l.b16 %v34
  %v161 = vunpack.c.l.b16 %v35
  %v162 = vunpack.c.l.b16 %v36
  %v163 = vunpack.c.l.b16 %v37
  %v164 = vunpack.c.l.b16 %v38
  %v165 = vunpack.c.l.b16 %v39
  %v166 = vunpack.c.l.b16 %v40
  %v167 = vunpack.c.l.b16 %v41
  %v168 = vunpack.c.l.b16 %v42
  %v169 = vunpack.c.l.b16 %v43
  %v170 = vunpack.c.l.b16 %v44
  %v171 = vunpack.c.l.b16 %v45
  %v172 = vunpack.c.l.b16 %v46
  %v173 = vunpack.c.l.b16 %v47
  %v174 = vunpack.c.l.b16 %v48
  %v175 = vunpack.c.l.b16 %v49
  %v176 = vunpack.c.l.b16 %v50
  %v177 = vunpack.c.l.b16 %v51
  %v178 = vunpack.c.l.b16 %v52
  %v179 = vunpack.c.l.b16 %v53
  %v180 = vunpack.c.l.b16 %v54
  %v181 = vunpack.c.l.b16 %v55
  %v182 = vunpack.c.l.b16 %v56
  %v183 = vunpack.c.l.b16 %v57
  %v184 = vunpack.c.l.b16 %v58
  %v185 = vpack.c.b16 %v150, %v149
  %v186 = vpack.c.b16 %v152, %v151
  %v187 = vpack.c.b16 %v154, %v153
  %v188 = vpack.c.b16 %v156, %v155
  %v189 = vpack.c.b16 %v158, %v157
  %v190 = vpack.c.b16 %v160, %v159
  %v191 = vpack.c.b16 %v162, %v161
  %v192 = vpack.c.b16 %v164, %v163
  %v193 = vpack.c.b16 %v166, %v165
  %v194 = vpack.c.b16 %v168, %v167
  %v195 = vpack.c.b16 %v170, %v169
  %v196 = vpack.c.b16 %v172, %v171
  %v197 = vpack.c.b16 %v174, %v173
  %v198 = vpack.c.b16 %v176, %v175
  %v199 = vpack.c.b16 %v178, %v177
  %v200 = vpack.c.b16 %v180, %v179
  %v201 = vpack.c.b16 %v182, %v181
  %v202 = vpack.c.b16 %v184, %v183
  %vm221 = vcmask 261120
  %v223 = vsel %vm221, %v105, 0
  %v226 = vsel %vm221, %v108, 0
  %228 = vmatprep.subr.bf16.mxu0 0
  %229 = vmatpush1.bf16.msra.mxu0 %v192
  %230 = vmatprep.subr.bf16.mxu0 0
  %231 = vmatpush1.bf16.msra.mxu0 %v191
  %232 = vmatprep.subr.bf16.mxu0 0
  %233 = vmatpush1.bf16.msra.mxu0 %v190
  %234 = vmatprep.subr.bf16.mxu0 0
  %235 = vmatpush1.bf16.msra.mxu0 %v189
  %236 = vmatprep.subr.bf16.mxu0 0
  %237 = vmatpush1.bf16.msra.mxu0 %v188
  %238 = vmatprep.subr.bf16.mxu0 0
  %239 = vmatpush1.bf16.msra.mxu0 %v187
  %240 = vmatprep.subr.bf16.mxu0 0
  %241 = vmatpush1.bf16.msra.mxu0 %v186
  %242 = vmatprep.subr.bf16.mxu0 0
  %243 = vmatpush1.bf16.msra.mxu0 %v185
  %244 = vmatprep.subr.bf16.mxu0 0
  %245 = vmatpush2.bf16.msra.mxu0 %v200
  %246 = vmatprep.subr.bf16.mxu0 0
  %247 = vmatpush2.bf16.msra.mxu0 %v199
  %248 = vmatprep.subr.bf16.mxu0 0
  %249 = vmatpush2.bf16.msra.mxu0 %v198
  %250 = vmatprep.subr.bf16.mxu0 0
  %251 = vmatpush2.bf16.msra.mxu0 %v197
  %252 = vmatprep.subr.bf16.mxu0 0
  %253 = vmatpush2.bf16.msra.mxu0 %v196
  %254 = vmatprep.subr.bf16.mxu0 0
  %255 = vmatpush2.bf16.msra.mxu0 %v195
  %256 = vmatprep.subr.bf16.mxu0 0
  %257 = vmatpush2.bf16.msra.mxu0 %v194
  %258 = vmatprep.subr.bf16.mxu0 0
  %259 = vmatpush2.bf16.msra.mxu0 %v193
  %260 = vmatprep.mubr.bf16.mxu0 %v104
  %261 = vmatmul.mubr.bf16.gmra.mxu0 %v103
  %v262 = vpop.f32.mrf.mxu0
  %v263 = vadd.f32 %v66, %v262
  %v264 = vpop.f32.mrf.mxu0
  %v265 = vpop.f32.mrf.mxu0
  %v266 = vadd.f32 %v71, %v265
  %v267 = vpop.f32.mrf.mxu0
  %268 = vmatprep.mubr.bf16.mxu0 %v107
  %269 = vmatmul.mubr.bf16.gmra.mxu0 %v106
  %v270 = vpop.f32.mrf.mxu0
  %v271 = vadd.f32 %v76, %v270
  %v272 = vpop.f32.mrf.mxu0
  %v273 = vpop.f32.mrf.mxu0
  %v274 = vadd.f32 %v81, %v273
  %v275 = vpop.f32.mrf.mxu0
  %276 = vdwg.mxu0
  %277 = vmatprep.subr.bf16.mxu0 0
  %278 = vmatpush1.bf16.msra.mxu0 0
  %279 = vmatprep.subr.bf16.mxu0 0
  %280 = vmatpush1.bf16.msra.mxu0 0
  %281 = vmatprep.subr.bf16.mxu0 0
  %282 = vmatpush1.bf16.msra.mxu0 0
  %283 = vmatprep.subr.bf16.mxu0 0
  %284 = vmatpush1.bf16.msra.mxu0 0
  %285 = vmatprep.subr.bf16.mxu0 0
  %286 = vmatpush1.bf16.msra.mxu0 0
  %287 = vmatprep.subr.bf16.mxu0 0
  %288 = vmatpush1.bf16.msra.mxu0 0
  %289 = vmatprep.subr.bf16.mxu0 0
  %290 = vmatpush1.bf16.msra.mxu0 %v202
  %291 = vmatprep.subr.bf16.mxu0 0
  %292 = vmatpush1.bf16.msra.mxu0 %v201
  %293 = vmatprep.subr.bf16.mxu0 0
  %294 = vmatpush2.bf16.msra.mxu0 0
  %295 = vmatprep.subr.bf16.mxu0 0
  %296 = vmatpush2.bf16.msra.mxu0 0
  %297 = vmatprep.subr.bf16.mxu0 0
  %298 = vmatpush2.bf16.msra.mxu0 0
  %299 = vmatprep.subr.bf16.mxu0 0
  %300 = vmatpush2.bf16.msra.mxu0 0
  %301 = vmatprep.subr.bf16.mxu0 0
  %302 = vmatpush2.bf16.msra.mxu0 0
  %303 = vmatprep.subr.bf16.mxu0 0
  %304 = vmatpush2.bf16.msra.mxu0 0
  %305 = vmatprep.subr.bf16.mxu0 0
  %306 = vmatpush2.bf16.msra.mxu0 0
  %307 = vmatprep.subr.bf16.mxu0 0
  %308 = vmatpush2.bf16.msra.mxu0 0
  %309 = vmatprep.mubr.bf16.mxu0 0
  %310 = vmatmul.mubr.bf16.gmra.mxu0 %v223
  %v311 = vpop.f32.mrf.mxu0
  %v312 = vadd.f32 %v263, %v311
  %v313 = vpop.f32.mrf.mxu0
  %v314 = vpop.f32.mrf.mxu0
  %v315 = vadd.f32 %v266, %v314
  %v316 = vpop.f32.mrf.mxu0
  %317 = vmatprep.mubr.bf16.mxu0 0
  %318 = vmatmul.mubr.bf16.gmra.mxu0 %v226
  %v319 = vpop.f32.mrf.mxu0
  %v320 = vadd.f32 %v271, %v319
  %v321 = vpop.f32.mrf.mxu0
  %v322 = vpop.f32.mrf.mxu0
  %v323 = vadd.f32 %v274, %v322
  %v324 = vpop.f32.mrf.mxu0
  %325 = vdwg.mxu0
  %v326 = vmax.f32 %v312, 0.0
  %v327 = vmax.f32 %v315, 0.0
  %v328 = vmax.f32 %v320, 0.0
  %v329 = vmax.f32 %v323, 0.0
  %330 = vst [vmem:[%s3] sm:$0xff] %v326
  %331 = vst [vmem:[%s3 + $0x8] sm:$0xff] %v327
  %332 = vst [vmem:[%s3 + $0x10] sm:$0xff] %v328
  %333 = vst [vmem:[%s3 + $0x18] sm:$0xff] %v329
  // Predicated region
  $region14: #{encoder_forward.20} parent=0 // pred_check
    _
  $region15: #{encoder_forward.20} parent=0 // pred_check_branch
    %335 = sbr.rel (0) target = $region17
  $region16: #{encoder_forward.20} parent=0 // pred_region
    _
  $region17: #{encoder_forward.20} parent=0 // pred_fallthru
    _
  // Predicated region
  $region18: #{encoder_forward.20} parent=0 // pred_check
    _
  $region19: #{encoder_forward.20} parent=0 // pred_check_branch
    %337 = sbr.rel (0) target = $region21
  $region20: #{encoder_forward.20} parent=0 // pred_region
    _
  $region21: #{encoder_forward.20} parent=0 // pred_fallthru
    _

</llo_original>
